<compile_context>
chip_gen: v7x
topology: tpu7x:2x2x1
jax: 0.10.0
libtpu: 0.0.40
codegen_flags: <defaults>
</compile_context>

<pallas_src>
import numpy as np
import jax
import jax.numpy as jnp
from jax import lax
from jax.experimental import pallas as pl
from jax.experimental.pallas import tpu as pltpu


# ----------------------------------------------------------------------------
# System-model setup (host-side numpy glue, mirrors the torch module __init__).
# ----------------------------------------------------------------------------
def solve_dare(A, B, Q, R, iters=10000, tol=1e-12):
    """Fixed-point iteration for the discrete algebraic Riccati equation (test scaffolding)."""
    X = Q.copy()
    for _ in range(iters):
        XB = X @ B
        G = np.linalg.solve(B.T @ XB + R, XB.T @ A)
        Xn = A.T @ X @ A - A.T @ XB @ G + Q
        if np.max(np.abs(Xn - X)) < tol * max(1.0, np.max(np.abs(Xn))):
            return Xn
        X = Xn
    return X


def build_params(dim_x=4, dim_z=2, seed=0):
    rng = np.random.RandomState(seed)
    A = rng.randn(dim_x, dim_x)
    F = 0.9 * A / np.abs(np.linalg.eigvals(A)).max()      # stable, invertible
    H = rng.randn(dim_x, dim_z)                            # H is (dim_x, dim_z), as in the module
    Qc = rng.randn(dim_x, dim_x)
    Q = Qc @ Qc.T + 0.1 * np.eye(dim_x)
    Rc = rng.randn(dim_z, dim_z)
    R = Rc @ Rc.T + 0.1 * np.eye(dim_z)

    Sigma = solve_dare(F.T, H, Q, R)                       # solve_discrete_are(a=F^T, b=H, q=Q, r=R)
    Ka_0 = Sigma @ H @ np.linalg.inv(H.T @ Sigma @ H + R)
    K = F @ Ka_0
    tildeF = F - K @ H.T
    smootherRecursiveGain = Sigma @ tildeF.T @ np.linalg.inv(Sigma)
    smootherGain = np.linalg.inv(F) - smootherRecursiveGain

    p = dict(F=F, H=H, Q=Q, R=R, tildeF=tildeF, K=K, Ka_0=Ka_0,
             smootherRecursiveGain=smootherRecursiveGain, smootherGain=smootherGain,
             theoreticalBarSigma=Sigma)
    return {k: np.asarray(v, np.float32) for k, v in p.items()}


# ----------------------------------------------------------------------------
# In-kernel helpers.
# ----------------------------------------------------------------------------
def _apply_rows(m, d_out, d_in, rows):
    """rows: list of d_in arrays (all same shape); m: flat list of d_out*d_in scalars (row-major).
    Returns list of d_out arrays: out[i] = sum_j m[i,j] * rows[j] — pure VPU scalar*vector FMAs."""
    out = []
    for i in range(d_out):
        acc = m[i * d_in] * rows[0]
        for j in range(1, d_in):
            acc = acc + m[i * d_in + j] * rows[j]
        out.append(acc)
    return out


def _serial_scan(n_steps, body, init):
    """carry = body(k, carry) for k in [0, n_steps)."""
    if n_steps <= 0:
        return init
    if n_steps <= 16:                      # short chains: static unroll (bounded live ranges)
        carry = init
        for k in range(n_steps):
            carry = body(k, carry)
        return carry
    return lax.fori_loop(0, n_steps, body, init, unroll=8)


# ----------------------------------------------------------------------------
# Pallas kernel: forward Kalman recursion + backward smoother recursion.
# ----------------------------------------------------------------------------
def _kalman_kernel(z_ref, x0_ref, tF_ref, K_ref, Ht_ref, Ka0_ref, sG_ref, sRG_ref,
                   xf_ref, xs_ref, kz_ref, filt_ref):
    # z_ref  : (dim_z, N, B) VMEM          x0_ref : (dim_x, B) VMEM
    # xf_ref, xs_ref (outputs) and kz_ref, filt_ref (scratch): (dim_x, N, B) VMEM
    # tF/K/Ht/Ka0/sG/sRG refs: flattened row-major 1-D f32 constants in SMEM.
    dim_x, N = xf_ref.shape[0], xf_ref.shape[1]
    dim_z = z_ref.shape[0]

    # Load the tiny constant matrices once into scalar registers (no per-iter broadcasts).
    tF = [tF_ref[t] for t in range(dim_x * dim_x)]     # tildeF
    Km = [K_ref[t] for t in range(dim_x * dim_z)]      # K
    Ht = [Ht_ref[t] for t in range(dim_z * dim_x)]     # H^T
    Ka0 = [Ka0_ref[t] for t in range(dim_x * dim_z)]   # Ka_0
    sG = [sG_ref[t] for t in range(dim_x * dim_x)]     # smootherGain
    sRG = [sRG_ref[t] for t in range(dim_x * dim_x)]   # smootherRecursiveGain

    # ---- hoisted, fully batched: Kz = K @ z over all (N, B) at once (dense planes) ----
    z_planes = [z_ref[j] for j in range(dim_z)]                 # (N, B) each, lane-dense
    kz_planes = _apply_rows(Km, dim_x, dim_z, z_planes)
    for i in range(dim_x):
        kz_ref[i] = kz_planes[i]

    # ---- forward filter: x[k+1] = tildeF @ x[k] + Kz[k]; carry = dim_x lane-vectors (B,) ----
    x_rows = [x0_ref[i] for i in range(dim_x)]
    for i in range(dim_x):
        xf_ref[i, 0, :] = x_rows[i]

    def fwd_body(k, rows):
        new = _apply_rows(tF, dim_x, dim_x, rows)
        new = [new[i] + kz_ref[i, k, :] for i in range(dim_x)]
        for i in range(dim_x):
            xf_ref[i, k + 1, :] = new[i]
        return new

    x_last = _serial_scan(N - 1, fwd_body, x_rows)

    # ---- hoisted, fully batched: filt = smootherGain @ xf (dense planes).  Time index 0 is
    #      never read by the backward loop, but computing the full aligned plane is cheaper
    #      than a sublane-offset slice. ----
    xf_planes = [xf_ref[j] for j in range(dim_x)]
    filt_planes = _apply_rows(sG, dim_x, dim_x, xf_planes)
    for i in range(dim_x):
        filt_ref[i] = filt_planes[i]

    # ---- smoother init: xs[N-1] = xf[N-1] + Ka_0 @ (z[N-1] - H^T @ xf[N-1]) ----
    zN = [z_ref[j, N - 1, :] for j in range(dim_z)]
    hx = _apply_rows(Ht, dim_z, dim_x, x_last)
    bar = [zN[j] - hx[j] for j in range(dim_z)]
    corr = _apply_rows(Ka0, dim_x, dim_z, bar)
    s_rows = [x_last[i] + corr[i] for i in range(dim_x)]
    for i in range(dim_x):
        xs_ref[i, N - 1, :] = s_rows[i]

    # ---- backward smoother: xs[k] = sRG @ xs[k+1] + filt[k+1] ----
    def bwd_body(t, rows):
        k = N - 2 - t
        new = _apply_rows(sRG, dim_x, dim_x, rows)
        new = [new[i] + filt_ref[i, k + 1, :] for i in range(dim_x)]
        for i in range(dim_x):
            xs_ref[i, k, :] = new[i]
        return new

    _serial_scan(N - 1, bwd_body, s_rows)


# ----------------------------------------------------------------------------
# Wrapper: layout plumbing + pallas_call.
# ----------------------------------------------------------------------------
def filter_smoother(z, filterStateInit, params, enable_smoothing=True, b_block=None):
    """z: (N, B, dim_z, 1); filterStateInit: (*, B, dim_x, 1).
    Returns (hat_x_k_plus_1_given_k, hat_x_k_given_N), both (N, B, dim_x, 1) float32."""
    N, B, dim_z = int(z.shape[0]), int(z.shape[1]), int(z.shape[2])
    dim_x = int(params["tildeF"].shape[0])

    # Lane-dense layout: batch on lanes, time on sublanes, state dim as the (untiled) major axis.
    z_t = jnp.transpose(z[..., 0].astype(jnp.float32), (2, 0, 1))                  # (dim_z, N, B)
    x0_t = jnp.transpose(filterStateInit[0, :, :, 0].astype(jnp.float32), (1, 0))  # (dim_x, B)

    # Flattened constants -> SMEM (1-D avoids the [8,128] SMEM padding of 2-D refs).
    flat = lambda a: jnp.asarray(np.asarray(a, np.float32).reshape(-1))
    mats = (flat(params["tildeF"]), flat(params["K"]), flat(params["H"].T),
            flat(params["Ka_0"]), flat(params["smootherGain"]),
            flat(params["smootherRecursiveGain"]))

    # Batch split only pays on megacore (v7x), and only when each half stays 128-lane aligned.
    if b_block is None:
        b_block = B // 2 if (B % 256 == 0) else B
    assert B % b_block == 0
    num_b = B // b_block

    # VMEM budget, padded to (8,128) tiles: z/xf/xs double-buffered + 2 hoisted scratch slabs.
    rup = lambda x, m: ((x + m - 1) // m) * m
    plane_bytes = 4 * rup(N, 8) * rup(b_block, 128)
    est = plane_bytes * (2 * dim_z + 6 * dim_x) + (1 << 20)
    vmem_limit = int(min(60 << 20, max(16 << 20, 2 * est)))

    smem = pl.BlockSpec(memory_space=pltpu.MemorySpace.SMEM)
    seq_spec = pl.BlockSpec((dim_x, N, b_block), lambda b: (0, 0, b))
    in_specs = [pl.BlockSpec((dim_z, N, b_block), lambda b: (0, 0, b)),   # z
                pl.BlockSpec((dim_x, b_block), lambda b: (0, b)),         # x0
                smem, smem, smem, smem, smem, smem]                       # constants
    out_specs = (seq_spec, seq_spec)
    out_shape = (jax.ShapeDtypeStruct((dim_x, N, B), jnp.float32),
                 jax.ShapeDtypeStruct((dim_x, N, B), jnp.float32))

    xf_t, xs_t = pl.pallas_call(
        _kalman_kernel,
        grid=(num_b,),
        out_shape=out_shape,
        in_specs=in_specs,
        out_specs=out_specs,
        scratch_shapes=[pltpu.VMEM((dim_x, N, b_block), jnp.float32),   # K @ z     (hoisted)
                        pltpu.VMEM((dim_x, N, b_block), jnp.float32)],  # sG @ xf   (hoisted)
        compiler_params=pltpu.CompilerParams(
            dimension_semantics=("parallel",),
            vmem_limit_bytes=vmem_limit),
    )(z_t, x0_t, *mats)

    xf = jnp.transpose(xf_t, (1, 2, 0))[..., None]   # (N, B, dim_x, 1)
    xs = jnp.transpose(xs_t, (1, 2, 0))[..., None]
    if not enable_smoothing:                         # module returns zeros when smoothing is off
        xs = jnp.zeros_like(xs)
    return xf, xs


# ----------------------------------------------------------------------------
# Pure-numpy reference (mirrors the torch forward exactly).
# ----------------------------------------------------------------------------
def ref_forward(z, x0, p):
    N, B = z.shape[0], z.shape[1]
    dim_x = p["tildeF"].shape[0]
    xf = np.zeros((N, B, dim_x, 1), np.float32)
    xs = np.zeros_like(xf)
    xf[0] = x0
    Kz = np.matmul(p["K"], z)
    for k in range(N - 1):
        xf[k + 1] = p["tildeF"] @ xf[k] + Kz[k]
    bar_z = z[N - 1] - p["H"].T @ xf[N - 1]
    xs[N - 1] = xf[N - 1] + p["Ka_0"] @ bar_z
    filt = np.matmul(p["smootherGain"], xf)
    for k in range(N - 2, -1, -1):
        xs[k] = p["smootherRecursiveGain"] @ xs[k + 1] + filt[k + 1]
    return xf, xs


if __name__ == "__main__":
    dim_x, dim_z = 4, 2
    N, B = 8, 2
    params = build_params(dim_x=dim_x, dim_z=dim_z, seed=0)

    key = jax.random.PRNGKey(0)
    k1, k2 = jax.random.split(key)
    z = jax.random.normal(k1, (N, B, dim_z, 1), dtype=jnp.float32)
    filterStateInit = jax.random.normal(k2, (1, B, dim_x, 1), dtype=jnp.float32)

    xf, xs = filter_smoother(z, filterStateInit, params)
    xf, xs = jax.block_until_ready((xf, xs))

    xf_ref, xs_ref = ref_forward(np.asarray(z), np.asarray(filterStateInit[0]), params)
    assert np.allclose(np.asarray(xf), xf_ref, rtol=1e-4, atol=1e-4), "filter mismatch"
    assert np.allclose(np.asarray(xs), xs_ref, rtol=1e-4, atol=1e-4), "smoother mismatch"

    print("KERNEL_OK")
</pallas_src>

<mosaic_0001>
module attributes {stable_mosaic.version = 11 : i64} {
  func.func @_kalman_kernel(%arg0: i32, %arg1: memref<2x8x2xf32, #tpu.memory_space<vmem>>, %arg2: memref<4x2xf32, #tpu.memory_space<vmem>>, %arg3: memref<16xf32, #tpu.memory_space<smem>>, %arg4: memref<8xf32, #tpu.memory_space<smem>>, %arg5: memref<8xf32, #tpu.memory_space<smem>>, %arg6: memref<8xf32, #tpu.memory_space<smem>>, %arg7: memref<16xf32, #tpu.memory_space<smem>>, %arg8: memref<16xf32, #tpu.memory_space<smem>>, %arg9: memref<4x8x2xf32, #tpu.memory_space<vmem>>, %arg10: memref<4x8x2xf32, #tpu.memory_space<vmem>>, %arg11: memref<4x8x2xf32, #tpu.memory_space<vmem>>, %arg12: memref<4x8x2xf32, #tpu.memory_space<vmem>>) attributes {dimension_semantics = [#tpu.dimension_semantics<parallel>], iteration_bounds = array<i64: 1>, scalar_prefetch = 0 : i64, scratch_operands = 2 : i64, tpu.core_type = #tpu.core_type<tc>, window_params = [{transform_indices = @transform_0, window_bounds = array<i64: 2, 8, 2>}, {transform_indices = @transform_1, window_bounds = array<i64: 4, 2>}, {transform_indices = @transform_2, window_bounds = array<i64: 16>}, {transform_indices = @transform_3, window_bounds = array<i64: 8>}, {transform_indices = @transform_4, window_bounds = array<i64: 8>}, {transform_indices = @transform_5, window_bounds = array<i64: 8>}, {transform_indices = @transform_6, window_bounds = array<i64: 16>}, {transform_indices = @transform_7, window_bounds = array<i64: 16>}, {transform_indices = @transform_8, window_bounds = array<i64: 4, 8, 2>}, {transform_indices = @transform_9, window_bounds = array<i64: 4, 8, 2>}]} {
    %c0 = arith.constant 0 : index
    %0 = memref.load %arg3[%c0] : memref<16xf32, #tpu.memory_space<smem>>
    %c1 = arith.constant 1 : index
    %1 = memref.load %arg3[%c1] : memref<16xf32, #tpu.memory_space<smem>>
    %c2 = arith.constant 2 : index
    %2 = memref.load %arg3[%c2] : memref<16xf32, #tpu.memory_space<smem>>
    %c3 = arith.constant 3 : index
    %3 = memref.load %arg3[%c3] : memref<16xf32, #tpu.memory_space<smem>>
    %c4 = arith.constant 4 : index
    %4 = memref.load %arg3[%c4] : memref<16xf32, #tpu.memory_space<smem>>
    %c5 = arith.constant 5 : index
    %5 = memref.load %arg3[%c5] : memref<16xf32, #tpu.memory_space<smem>>
    %c6 = arith.constant 6 : index
    %6 = memref.load %arg3[%c6] : memref<16xf32, #tpu.memory_space<smem>>
    %c7 = arith.constant 7 : index
    %7 = memref.load %arg3[%c7] : memref<16xf32, #tpu.memory_space<smem>>
    %c8 = arith.constant 8 : index
    %8 = memref.load %arg3[%c8] : memref<16xf32, #tpu.memory_space<smem>>
    %c9 = arith.constant 9 : index
    %9 = memref.load %arg3[%c9] : memref<16xf32, #tpu.memory_space<smem>>
    %c10 = arith.constant 10 : index
    %10 = memref.load %arg3[%c10] : memref<16xf32, #tpu.memory_space<smem>>
    %c11 = arith.constant 11 : index
    %11 = memref.load %arg3[%c11] : memref<16xf32, #tpu.memory_space<smem>>
    %c12 = arith.constant 12 : index
    %12 = memref.load %arg3[%c12] : memref<16xf32, #tpu.memory_space<smem>>
    %c13 = arith.constant 13 : index
    %13 = memref.load %arg3[%c13] : memref<16xf32, #tpu.memory_space<smem>>
    %c14 = arith.constant 14 : index
    %14 = memref.load %arg3[%c14] : memref<16xf32, #tpu.memory_space<smem>>
    %c15 = arith.constant 15 : index
    %15 = memref.load %arg3[%c15] : memref<16xf32, #tpu.memory_space<smem>>
    %c0_0 = arith.constant 0 : index
    %16 = memref.load %arg4[%c0_0] : memref<8xf32, #tpu.memory_space<smem>>
    %c1_1 = arith.constant 1 : index
    %17 = memref.load %arg4[%c1_1] : memref<8xf32, #tpu.memory_space<smem>>
    %c2_2 = arith.constant 2 : index
    %18 = memref.load %arg4[%c2_2] : memref<8xf32, #tpu.memory_space<smem>>
    %c3_3 = arith.constant 3 : index
    %19 = memref.load %arg4[%c3_3] : memref<8xf32, #tpu.memory_space<smem>>
    %c4_4 = arith.constant 4 : index
    %20 = memref.load %arg4[%c4_4] : memref<8xf32, #tpu.memory_space<smem>>
    %c5_5 = arith.constant 5 : index
    %21 = memref.load %arg4[%c5_5] : memref<8xf32, #tpu.memory_space<smem>>
    %c6_6 = arith.constant 6 : index
    %22 = memref.load %arg4[%c6_6] : memref<8xf32, #tpu.memory_space<smem>>
    %c7_7 = arith.constant 7 : index
    %23 = memref.load %arg4[%c7_7] : memref<8xf32, #tpu.memory_space<smem>>
    %c0_8 = arith.constant 0 : index
    %24 = memref.load %arg5[%c0_8] : memref<8xf32, #tpu.memory_space<smem>>
    %c1_9 = arith.constant 1 : index
    %25 = memref.load %arg5[%c1_9] : memref<8xf32, #tpu.memory_space<smem>>
    %c2_10 = arith.constant 2 : index
    %26 = memref.load %arg5[%c2_10] : memref<8xf32, #tpu.memory_space<smem>>
    %c3_11 = arith.constant 3 : index
    %27 = memref.load %arg5[%c3_11] : memref<8xf32, #tpu.memory_space<smem>>
    %c4_12 = arith.constant 4 : index
    %28 = memref.load %arg5[%c4_12] : memref<8xf32, #tpu.memory_space<smem>>
    %c5_13 = arith.constant 5 : index
    %29 = memref.load %arg5[%c5_13] : memref<8xf32, #tpu.memory_space<smem>>
    %c6_14 = arith.constant 6 : index
    %30 = memref.load %arg5[%c6_14] : memref<8xf32, #tpu.memory_space<smem>>
    %c7_15 = arith.constant 7 : index
    %31 = memref.load %arg5[%c7_15] : memref<8xf32, #tpu.memory_space<smem>>
    %c0_16 = arith.constant 0 : index
    %32 = memref.load %arg6[%c0_16] : memref<8xf32, #tpu.memory_space<smem>>
    %c1_17 = arith.constant 1 : index
    %33 = memref.load %arg6[%c1_17] : memref<8xf32, #tpu.memory_space<smem>>
    %c2_18 = arith.constant 2 : index
    %34 = memref.load %arg6[%c2_18] : memref<8xf32, #tpu.memory_space<smem>>
    %c3_19 = arith.constant 3 : index
    %35 = memref.load %arg6[%c3_19] : memref<8xf32, #tpu.memory_space<smem>>
    %c4_20 = arith.constant 4 : index
    %36 = memref.load %arg6[%c4_20] : memref<8xf32, #tpu.memory_space<smem>>
    %c5_21 = arith.constant 5 : index
    %37 = memref.load %arg6[%c5_21] : memref<8xf32, #tpu.memory_space<smem>>
    %c6_22 = arith.constant 6 : index
    %38 = memref.load %arg6[%c6_22] : memref<8xf32, #tpu.memory_space<smem>>
    %c7_23 = arith.constant 7 : index
    %39 = memref.load %arg6[%c7_23] : memref<8xf32, #tpu.memory_space<smem>>
    %c0_24 = arith.constant 0 : index
    %40 = memref.load %arg7[%c0_24] : memref<16xf32, #tpu.memory_space<smem>>
    %c1_25 = arith.constant 1 : index
    %41 = memref.load %arg7[%c1_25] : memref<16xf32, #tpu.memory_space<smem>>
    %c2_26 = arith.constant 2 : index
    %42 = memref.load %arg7[%c2_26] : memref<16xf32, #tpu.memory_space<smem>>
    %c3_27 = arith.constant 3 : index
    %43 = memref.load %arg7[%c3_27] : memref<16xf32, #tpu.memory_space<smem>>
    %c4_28 = arith.constant 4 : index
    %44 = memref.load %arg7[%c4_28] : memref<16xf32, #tpu.memory_space<smem>>
    %c5_29 = arith.constant 5 : index
    %45 = memref.load %arg7[%c5_29] : memref<16xf32, #tpu.memory_space<smem>>
    %c6_30 = arith.constant 6 : index
    %46 = memref.load %arg7[%c6_30] : memref<16xf32, #tpu.memory_space<smem>>
    %c7_31 = arith.constant 7 : index
    %47 = memref.load %arg7[%c7_31] : memref<16xf32, #tpu.memory_space<smem>>
    %c8_32 = arith.constant 8 : index
    %48 = memref.load %arg7[%c8_32] : memref<16xf32, #tpu.memory_space<smem>>
    %c9_33 = arith.constant 9 : index
    %49 = memref.load %arg7[%c9_33] : memref<16xf32, #tpu.memory_space<smem>>
    %c10_34 = arith.constant 10 : index
    %50 = memref.load %arg7[%c10_34] : memref<16xf32, #tpu.memory_space<smem>>
    %c11_35 = arith.constant 11 : index
    %51 = memref.load %arg7[%c11_35] : memref<16xf32, #tpu.memory_space<smem>>
    %c12_36 = arith.constant 12 : index
    %52 = memref.load %arg7[%c12_36] : memref<16xf32, #tpu.memory_space<smem>>
    %c13_37 = arith.constant 13 : index
    %53 = memref.load %arg7[%c13_37] : memref<16xf32, #tpu.memory_space<smem>>
    %c14_38 = arith.constant 14 : index
    %54 = memref.load %arg7[%c14_38] : memref<16xf32, #tpu.memory_space<smem>>
    %c15_39 = arith.constant 15 : index
    %55 = memref.load %arg7[%c15_39] : memref<16xf32, #tpu.memory_space<smem>>
    %c0_40 = arith.constant 0 : index
    %56 = memref.load %arg8[%c0_40] : memref<16xf32, #tpu.memory_space<smem>>
    %c1_41 = arith.constant 1 : index
    %57 = memref.load %arg8[%c1_41] : memref<16xf32, #tpu.memory_space<smem>>
    %c2_42 = arith.constant 2 : index
    %58 = memref.load %arg8[%c2_42] : memref<16xf32, #tpu.memory_space<smem>>
    %c3_43 = arith.constant 3 : index
    %59 = memref.load %arg8[%c3_43] : memref<16xf32, #tpu.memory_space<smem>>
    %c4_44 = arith.constant 4 : index
    %60 = memref.load %arg8[%c4_44] : memref<16xf32, #tpu.memory_space<smem>>
    %c5_45 = arith.constant 5 : index
    %61 = memref.load %arg8[%c5_45] : memref<16xf32, #tpu.memory_space<smem>>
    %c6_46 = arith.constant 6 : index
    %62 = memref.load %arg8[%c6_46] : memref<16xf32, #tpu.memory_space<smem>>
    %c7_47 = arith.constant 7 : index
    %63 = memref.load %arg8[%c7_47] : memref<16xf32, #tpu.memory_space<smem>>
    %c8_48 = arith.constant 8 : index
    %64 = memref.load %arg8[%c8_48] : memref<16xf32, #tpu.memory_space<smem>>
    %c9_49 = arith.constant 9 : index
    %65 = memref.load %arg8[%c9_49] : memref<16xf32, #tpu.memory_space<smem>>
    %c10_50 = arith.constant 10 : index
    %66 = memref.load %arg8[%c10_50] : memref<16xf32, #tpu.memory_space<smem>>
    %c11_51 = arith.constant 11 : index
    %67 = memref.load %arg8[%c11_51] : memref<16xf32, #tpu.memory_space<smem>>
    %c12_52 = arith.constant 12 : index
    %68 = memref.load %arg8[%c12_52] : memref<16xf32, #tpu.memory_space<smem>>
    %c13_53 = arith.constant 13 : index
    %69 = memref.load %arg8[%c13_53] : memref<16xf32, #tpu.memory_space<smem>>
    %c14_54 = arith.constant 14 : index
    %70 = memref.load %arg8[%c14_54] : memref<16xf32, #tpu.memory_space<smem>>
    %c15_55 = arith.constant 15 : index
    %71 = memref.load %arg8[%c15_55] : memref<16xf32, #tpu.memory_space<smem>>
    %c0_56 = arith.constant 0 : index
    %c0_57 = arith.constant 0 : index
    %c0_58 = arith.constant 0 : index
    %72 = vector.load %arg1[%c0_56, %c0_57, %c0_58] : memref<2x8x2xf32, #tpu.memory_space<vmem>>, vector<1x8x2xf32>
    %73 = vector.shape_cast %72 : vector<1x8x2xf32> to vector<8x2xf32>
    %c1_59 = arith.constant 1 : index
    %c0_60 = arith.constant 0 : index
    %c0_61 = arith.constant 0 : index
    %74 = vector.load %arg1[%c1_59, %c0_60, %c0_61] : memref<2x8x2xf32, #tpu.memory_space<vmem>>, vector<1x8x2xf32>
    %75 = vector.shape_cast %74 : vector<1x8x2xf32> to vector<8x2xf32>
    %76 = vector.broadcast %16 : f32 to vector<8x2xf32>
    %77 = arith.mulf %76, %73 : vector<8x2xf32>
    %78 = vector.broadcast %17 : f32 to vector<8x2xf32>
    %79 = arith.mulf %78, %75 : vector<8x2xf32>
    %80 = arith.addf %77, %79 : vector<8x2xf32>
    %81 = vector.broadcast %18 : f32 to vector<8x2xf32>
    %82 = arith.mulf %81, %73 : vector<8x2xf32>
    %83 = vector.broadcast %19 : f32 to vector<8x2xf32>
    %84 = arith.mulf %83, %75 : vector<8x2xf32>
    %85 = arith.addf %82, %84 : vector<8x2xf32>
    %86 = vector.broadcast %20 : f32 to vector<8x2xf32>
    %87 = arith.mulf %86, %73 : vector<8x2xf32>
    %88 = vector.broadcast %21 : f32 to vector<8x2xf32>
    %89 = arith.mulf %88, %75 : vector<8x2xf32>
    %90 = arith.addf %87, %89 : vector<8x2xf32>
    %91 = vector.broadcast %22 : f32 to vector<8x2xf32>
    %92 = arith.mulf %91, %73 : vector<8x2xf32>
    %93 = vector.broadcast %23 : f32 to vector<8x2xf32>
    %94 = arith.mulf %93, %75 : vector<8x2xf32>
    %95 = arith.addf %92, %94 : vector<8x2xf32>
    %c0_62 = arith.constant 0 : index
    %c0_63 = arith.constant 0 : index
    %c0_64 = arith.constant 0 : index
    %96 = vector.load %arg11[%c0_62, %c0_63, %c0_64] : memref<4x8x2xf32, #tpu.memory_space<vmem>>, vector<1x8x2xf32>
    %97 = vector.shape_cast %96 : vector<1x8x2xf32> to vector<8x2xf32>
    %98 = vector.shape_cast %80 : vector<8x2xf32> to vector<1x8x2xf32>
    tpu.vector_store %arg11[%c0_62, %c0_63, %c0_64], %98 {strides = array<i32>} : memref<4x8x2xf32, #tpu.memory_space<vmem>>, vector<1x8x2xf32>,
    %c1_65 = arith.constant 1 : index
    %c0_66 = arith.constant 0 : index
    %c0_67 = arith.constant 0 : index
    %99 = vector.load %arg11[%c1_65, %c0_66, %c0_67] : memref<4x8x2xf32, #tpu.memory_space<vmem>>, vector<1x8x2xf32>
    %100 = vector.shape_cast %99 : vector<1x8x2xf32> to vector<8x2xf32>
    %101 = vector.shape_cast %85 : vector<8x2xf32> to vector<1x8x2xf32>
    tpu.vector_store %arg11[%c1_65, %c0_66, %c0_67], %101 {strides = array<i32>} : memref<4x8x2xf32, #tpu.memory_space<vmem>>, vector<1x8x2xf32>,
    %c2_68 = arith.constant 2 : index
    %c0_69 = arith.constant 0 : index
    %c0_70 = arith.constant 0 : index
    %102 = vector.load %arg11[%c2_68, %c0_69, %c0_70] : memref<4x8x2xf32, #tpu.memory_space<vmem>>, vector<1x8x2xf32>
    %103 = vector.shape_cast %102 : vector<1x8x2xf32> to vector<8x2xf32>
    %104 = vector.shape_cast %90 : vector<8x2xf32> to vector<1x8x2xf32>
    tpu.vector_store %arg11[%c2_68, %c0_69, %c0_70], %104 {strides = array<i32>} : memref<4x8x2xf32, #tpu.memory_space<vmem>>, vector<1x8x2xf32>,
    %c3_71 = arith.constant 3 : index
    %c0_72 = arith.constant 0 : index
    %c0_73 = arith.constant 0 : index
    %105 = vector.load %arg11[%c3_71, %c0_72, %c0_73] : memref<4x8x2xf32, #tpu.memory_space<vmem>>, vector<1x8x2xf32>
    %106 = vector.shape_cast %105 : vector<1x8x2xf32> to vector<8x2xf32>
    %107 = vector.shape_cast %95 : vector<8x2xf32> to vector<1x8x2xf32>
    tpu.vector_store %arg11[%c3_71, %c0_72, %c0_73], %107 {strides = array<i32>} : memref<4x8x2xf32, #tpu.memory_space<vmem>>, vector<1x8x2xf32>,
    %c0_74 = arith.constant 0 : index
    %c0_75 = arith.constant 0 : index
    %108 = vector.load %arg2[%c0_74, %c0_75] : memref<4x2xf32, #tpu.memory_space<vmem>>, vector<1x2xf32>
    %109 = vector.shape_cast %108 : vector<1x2xf32> to vector<2xf32>
    %c1_76 = arith.constant 1 : index
    %c0_77 = arith.constant 0 : index
    %110 = vector.load %arg2[%c1_76, %c0_77] : memref<4x2xf32, #tpu.memory_space<vmem>>, vector<1x2xf32>
    %111 = vector.shape_cast %110 : vector<1x2xf32> to vector<2xf32>
    %c2_78 = arith.constant 2 : index
    %c0_79 = arith.constant 0 : index
    %112 = vector.load %arg2[%c2_78, %c0_79] : memref<4x2xf32, #tpu.memory_space<vmem>>, vector<1x2xf32>
    %113 = vector.shape_cast %112 : vector<1x2xf32> to vector<2xf32>
    %c3_80 = arith.constant 3 : index
    %c0_81 = arith.constant 0 : index
    %114 = vector.load %arg2[%c3_80, %c0_81] : memref<4x2xf32, #tpu.memory_space<vmem>>, vector<1x2xf32>
    %115 = vector.shape_cast %114 : vector<1x2xf32> to vector<2xf32>
    %c0_82 = arith.constant 0 : index
    %c0_83 = arith.constant 0 : index
    %c0_84 = arith.constant 0 : index
    %116 = vector.load %arg9[%c0_82, %c0_83, %c0_84] : memref<4x8x2xf32, #tpu.memory_space<vmem>>, vector<1x1x2xf32>
    %117 = vector.shape_cast %116 : vector<1x1x2xf32> to vector<2xf32>
    %118 = vector.shape_cast %109 : vector<2xf32> to vector<1x1x2xf32>
    tpu.vector_store %arg9[%c0_82, %c0_83, %c0_84], %118 {strides = array<i32>} : memref<4x8x2xf32, #tpu.memory_space<vmem>>, vector<1x1x2xf32>,
    %c1_85 = arith.constant 1 : index
    %c0_86 = arith.constant 0 : index
    %c0_87 = arith.constant 0 : index
    %119 = vector.load %arg9[%c1_85, %c0_86, %c0_87] : memref<4x8x2xf32, #tpu.memory_space<vmem>>, vector<1x1x2xf32>
    %120 = vector.shape_cast %119 : vector<1x1x2xf32> to vector<2xf32>
    %121 = vector.shape_cast %111 : vector<2xf32> to vector<1x1x2xf32>
    tpu.vector_store %arg9[%c1_85, %c0_86, %c0_87], %121 {strides = array<i32>} : memref<4x8x2xf32, #tpu.memory_space<vmem>>, vector<1x1x2xf32>,
    %c2_88 = arith.constant 2 : index
    %c0_89 = arith.constant 0 : index
    %c0_90 = arith.constant 0 : index
    %122 = vector.load %arg9[%c2_88, %c0_89, %c0_90] : memref<4x8x2xf32, #tpu.memory_space<vmem>>, vector<1x1x2xf32>
    %123 = vector.shape_cast %122 : vector<1x1x2xf32> to vector<2xf32>
    %124 = vector.shape_cast %113 : vector<2xf32> to vector<1x1x2xf32>
    tpu.vector_store %arg9[%c2_88, %c0_89, %c0_90], %124 {strides = array<i32>} : memref<4x8x2xf32, #tpu.memory_space<vmem>>, vector<1x1x2xf32>,
    %c3_91 = arith.constant 3 : index
    %c0_92 = arith.constant 0 : index
    %c0_93 = arith.constant 0 : index
    %125 = vector.load %arg9[%c3_91, %c0_92, %c0_93] : memref<4x8x2xf32, #tpu.memory_space<vmem>>, vector<1x1x2xf32>
    %126 = vector.shape_cast %125 : vector<1x1x2xf32> to vector<2xf32>
    %127 = vector.shape_cast %115 : vector<2xf32> to vector<1x1x2xf32>
    tpu.vector_store %arg9[%c3_91, %c0_92, %c0_93], %127 {strides = array<i32>} : memref<4x8x2xf32, #tpu.memory_space<vmem>>, vector<1x1x2xf32>,
    %128 = vector.broadcast %0 : f32 to vector<2xf32>
    %129 = arith.mulf %128, %109 : vector<2xf32>
    %130 = vector.broadcast %1 : f32 to vector<2xf32>
    %131 = arith.mulf %130, %111 : vector<2xf32>
    %132 = arith.addf %129, %131 : vector<2xf32>
    %133 = vector.broadcast %2 : f32 to vector<2xf32>
    %134 = arith.mulf %133, %113 : vector<2xf32>
    %135 = arith.addf %132, %134 : vector<2xf32>
    %136 = vector.broadcast %3 : f32 to vector<2xf32>
    %137 = arith.mulf %136, %115 : vector<2xf32>
    %138 = arith.addf %135, %137 : vector<2xf32>
    %139 = vector.broadcast %4 : f32 to vector<2xf32>
    %140 = arith.mulf %139, %109 : vector<2xf32>
    %141 = vector.broadcast %5 : f32 to vector<2xf32>
    %142 = arith.mulf %141, %111 : vector<2xf32>
    %143 = arith.addf %140, %142 : vector<2xf32>
    %144 = vector.broadcast %6 : f32 to vector<2xf32>
    %145 = arith.mulf %144, %113 : vector<2xf32>
    %146 = arith.addf %143, %145 : vector<2xf32>
    %147 = vector.broadcast %7 : f32 to vector<2xf32>
    %148 = arith.mulf %147, %115 : vector<2xf32>
    %149 = arith.addf %146, %148 : vector<2xf32>
    %150 = vector.broadcast %8 : f32 to vector<2xf32>
    %151 = arith.mulf %150, %109 : vector<2xf32>
    %152 = vector.broadcast %9 : f32 to vector<2xf32>
    %153 = arith.mulf %152, %111 : vector<2xf32>
    %154 = arith.addf %151, %153 : vector<2xf32>
    %155 = vector.broadcast %10 : f32 to vector<2xf32>
    %156 = arith.mulf %155, %113 : vector<2xf32>
    %157 = arith.addf %154, %156 : vector<2xf32>
    %158 = vector.broadcast %11 : f32 to vector<2xf32>
    %159 = arith.mulf %158, %115 : vector<2xf32>
    %160 = arith.addf %157, %159 : vector<2xf32>
    %161 = vector.broadcast %12 : f32 to vector<2xf32>
    %162 = arith.mulf %161, %109 : vector<2xf32>
    %163 = vector.broadcast %13 : f32 to vector<2xf32>
    %164 = arith.mulf %163, %111 : vector<2xf32>
    %165 = arith.addf %162, %164 : vector<2xf32>
    %166 = vector.broadcast %14 : f32 to vector<2xf32>
    %167 = arith.mulf %166, %113 : vector<2xf32>
    %168 = arith.addf %165, %167 : vector<2xf32>
    %169 = vector.broadcast %15 : f32 to vector<2xf32>
    %170 = arith.mulf %169, %115 : vector<2xf32>
    %171 = arith.addf %168, %170 : vector<2xf32>
    %c0_94 = arith.constant 0 : index
    %c0_95 = arith.constant 0 : index
    %c0_96 = arith.constant 0 : index
    %172 = vector.load %arg11[%c0_94, %c0_95, %c0_96] : memref<4x8x2xf32, #tpu.memory_space<vmem>>, vector<1x1x2xf32>
    %173 = vector.shape_cast %172 : vector<1x1x2xf32> to vector<2xf32>
    %174 = arith.addf %138, %173 : vector<2xf32>
    %c1_97 = arith.constant 1 : index
    %c0_98 = arith.constant 0 : index
    %c0_99 = arith.constant 0 : index
    %175 = vector.load %arg11[%c1_97, %c0_98, %c0_99] : memref<4x8x2xf32, #tpu.memory_space<vmem>>, vector<1x1x2xf32>
    %176 = vector.shape_cast %175 : vector<1x1x2xf32> to vector<2xf32>
    %177 = arith.addf %149, %176 : vector<2xf32>
    %c2_100 = arith.constant 2 : index
    %c0_101 = arith.constant 0 : index
    %c0_102 = arith.constant 0 : index
    %178 = vector.load %arg11[%c2_100, %c0_101, %c0_102] : memref<4x8x2xf32, #tpu.memory_space<vmem>>, vector<1x1x2xf32>
    %179 = vector.shape_cast %178 : vector<1x1x2xf32> to vector<2xf32>
    %180 = arith.addf %160, %179 : vector<2xf32>
    %c3_103 = arith.constant 3 : index
    %c0_104 = arith.constant 0 : index
    %c0_105 = arith.constant 0 : index
    %181 = vector.load %arg11[%c3_103, %c0_104, %c0_105] : memref<4x8x2xf32, #tpu.memory_space<vmem>>, vector<1x1x2xf32>
    %182 = vector.shape_cast %181 : vector<1x1x2xf32> to vector<2xf32>
    %183 = arith.addf %171, %182 : vector<2xf32>
    %c0_106 = arith.constant 0 : index
    %c1_107 = arith.constant 1 : index
    %c0_108 = arith.constant 0 : index
    %184 = vector.load %arg9[%c0_106, %c1_107, %c0_108] : memref<4x8x2xf32, #tpu.memory_space<vmem>>, vector<1x1x2xf32>
    %185 = vector.shape_cast %184 : vector<1x1x2xf32> to vector<2xf32>
    %186 = vector.shape_cast %174 : vector<2xf32> to vector<1x1x2xf32>
    tpu.vector_store %arg9[%c0_106, %c1_107, %c0_108], %186 {strides = array<i32>} : memref<4x8x2xf32, #tpu.memory_space<vmem>>, vector<1x1x2xf32>,
    %c1_109 = arith.constant 1 : index
    %c1_110 = arith.constant 1 : index
    %c0_111 = arith.constant 0 : index
    %187 = vector.load %arg9[%c1_109, %c1_110, %c0_111] : memref<4x8x2xf32, #tpu.memory_space<vmem>>, vector<1x1x2xf32>
    %188 = vector.shape_cast %187 : vector<1x1x2xf32> to vector<2xf32>
    %189 = vector.shape_cast %177 : vector<2xf32> to vector<1x1x2xf32>
    tpu.vector_store %arg9[%c1_109, %c1_110, %c0_111], %189 {strides = array<i32>} : memref<4x8x2xf32, #tpu.memory_space<vmem>>, vector<1x1x2xf32>,
    %c2_112 = arith.constant 2 : index
    %c1_113 = arith.constant 1 : index
    %c0_114 = arith.constant 0 : index
    %190 = vector.load %arg9[%c2_112, %c1_113, %c0_114] : memref<4x8x2xf32, #tpu.memory_space<vmem>>, vector<1x1x2xf32>
    %191 = vector.shape_cast %190 : vector<1x1x2xf32> to vector<2xf32>
    %192 = vector.shape_cast %180 : vector<2xf32> to vector<1x1x2xf32>
    tpu.vector_store %arg9[%c2_112, %c1_113, %c0_114], %192 {strides = array<i32>} : memref<4x8x2xf32, #tpu.memory_space<vmem>>, vector<1x1x2xf32>,
    %c3_115 = arith.constant 3 : index
    %c1_116 = arith.constant 1 : index
    %c0_117 = arith.constant 0 : index
    %193 = vector.load %arg9[%c3_115, %c1_116, %c0_117] : memref<4x8x2xf32, #tpu.memory_space<vmem>>, vector<1x1x2xf32>
    %194 = vector.shape_cast %193 : vector<1x1x2xf32> to vector<2xf32>
    %195 = vector.shape_cast %183 : vector<2xf32> to vector<1x1x2xf32>
    tpu.vector_store %arg9[%c3_115, %c1_116, %c0_117], %195 {strides = array<i32>} : memref<4x8x2xf32, #tpu.memory_space<vmem>>, vector<1x1x2xf32>,
    %196 = vector.broadcast %0 : f32 to vector<2xf32>
    %197 = arith.mulf %196, %174 : vector<2xf32>
    %198 = vector.broadcast %1 : f32 to vector<2xf32>
    %199 = arith.mulf %198, %177 : vector<2xf32>
    %200 = arith.addf %197, %199 : vector<2xf32>
    %201 = vector.broadcast %2 : f32 to vector<2xf32>
    %202 = arith.mulf %201, %180 : vector<2xf32>
    %203 = arith.addf %200, %202 : vector<2xf32>
    %204 = vector.broadcast %3 : f32 to vector<2xf32>
    %205 = arith.mulf %204, %183 : vector<2xf32>
    %206 = arith.addf %203, %205 : vector<2xf32>
    %207 = vector.broadcast %4 : f32 to vector<2xf32>
    %208 = arith.mulf %207, %174 : vector<2xf32>
    %209 = vector.broadcast %5 : f32 to vector<2xf32>
    %210 = arith.mulf %209, %177 : vector<2xf32>
    %211 = arith.addf %208, %210 : vector<2xf32>
    %212 = vector.broadcast %6 : f32 to vector<2xf32>
    %213 = arith.mulf %212, %180 : vector<2xf32>
    %214 = arith.addf %211, %213 : vector<2xf32>
    %215 = vector.broadcast %7 : f32 to vector<2xf32>
    %216 = arith.mulf %215, %183 : vector<2xf32>
    %217 = arith.addf %214, %216 : vector<2xf32>
    %218 = vector.broadcast %8 : f32 to vector<2xf32>
    %219 = arith.mulf %218, %174 : vector<2xf32>
    %220 = vector.broadcast %9 : f32 to vector<2xf32>
    %221 = arith.mulf %220, %177 : vector<2xf32>
    %222 = arith.addf %219, %221 : vector<2xf32>
    %223 = vector.broadcast %10 : f32 to vector<2xf32>
    %224 = arith.mulf %223, %180 : vector<2xf32>
    %225 = arith.addf %222, %224 : vector<2xf32>
    %226 = vector.broadcast %11 : f32 to vector<2xf32>
    %227 = arith.mulf %226, %183 : vector<2xf32>
    %228 = arith.addf %225, %227 : vector<2xf32>
    %229 = vector.broadcast %12 : f32 to vector<2xf32>
    %230 = arith.mulf %229, %174 : vector<2xf32>
    %231 = vector.broadcast %13 : f32 to vector<2xf32>
    %232 = arith.mulf %231, %177 : vector<2xf32>
    %233 = arith.addf %230, %232 : vector<2xf32>
    %234 = vector.broadcast %14 : f32 to vector<2xf32>
    %235 = arith.mulf %234, %180 : vector<2xf32>
    %236 = arith.addf %233, %235 : vector<2xf32>
    %237 = vector.broadcast %15 : f32 to vector<2xf32>
    %238 = arith.mulf %237, %183 : vector<2xf32>
    %239 = arith.addf %236, %238 : vector<2xf32>
    %c0_118 = arith.constant 0 : index
    %c1_119 = arith.constant 1 : index
    %c0_120 = arith.constant 0 : index
    %240 = vector.load %arg11[%c0_118, %c1_119, %c0_120] : memref<4x8x2xf32, #tpu.memory_space<vmem>>, vector<1x1x2xf32>
    %241 = vector.shape_cast %240 : vector<1x1x2xf32> to vector<2xf32>
    %242 = arith.addf %206, %241 : vector<2xf32>
    %c1_121 = arith.constant 1 : index
    %c1_122 = arith.constant 1 : index
    %c0_123 = arith.constant 0 : index
    %243 = vector.load %arg11[%c1_121, %c1_122, %c0_123] : memref<4x8x2xf32, #tpu.memory_space<vmem>>, vector<1x1x2xf32>
    %244 = vector.shape_cast %243 : vector<1x1x2xf32> to vector<2xf32>
    %245 = arith.addf %217, %244 : vector<2xf32>
    %c2_124 = arith.constant 2 : index
    %c1_125 = arith.constant 1 : index
    %c0_126 = arith.constant 0 : index
    %246 = vector.load %arg11[%c2_124, %c1_125, %c0_126] : memref<4x8x2xf32, #tpu.memory_space<vmem>>, vector<1x1x2xf32>
    %247 = vector.shape_cast %246 : vector<1x1x2xf32> to vector<2xf32>
    %248 = arith.addf %228, %247 : vector<2xf32>
    %c3_127 = arith.constant 3 : index
    %c1_128 = arith.constant 1 : index
    %c0_129 = arith.constant 0 : index
    %249 = vector.load %arg11[%c3_127, %c1_128, %c0_129] : memref<4x8x2xf32, #tpu.memory_space<vmem>>, vector<1x1x2xf32>
    %250 = vector.shape_cast %249 : vector<1x1x2xf32> to vector<2xf32>
    %251 = arith.addf %239, %250 : vector<2xf32>
    %c0_130 = arith.constant 0 : index
    %c2_131 = arith.constant 2 : index
    %c0_132 = arith.constant 0 : index
    %252 = vector.load %arg9[%c0_130, %c2_131, %c0_132] : memref<4x8x2xf32, #tpu.memory_space<vmem>>, vector<1x1x2xf32>
    %253 = vector.shape_cast %252 : vector<1x1x2xf32> to vector<2xf32>
    %254 = vector.shape_cast %242 : vector<2xf32> to vector<1x1x2xf32>
    tpu.vector_store %arg9[%c0_130, %c2_131, %c0_132], %254 {strides = array<i32>} : memref<4x8x2xf32, #tpu.memory_space<vmem>>, vector<1x1x2xf32>,
    %c1_133 = arith.constant 1 : index
    %c2_134 = arith.constant 2 : index
    %c0_135 = arith.constant 0 : index
    %255 = vector.load %arg9[%c1_133, %c2_134, %c0_135] : memref<4x8x2xf32, #tpu.memory_space<vmem>>, vector<1x1x2xf32>
    %256 = vector.shape_cast %255 : vector<1x1x2xf32> to vector<2xf32>
    %257 = vector.shape_cast %245 : vector<2xf32> to vector<1x1x2xf32>
    tpu.vector_store %arg9[%c1_133, %c2_134, %c0_135], %257 {strides = array<i32>} : memref<4x8x2xf32, #tpu.memory_space<vmem>>, vector<1x1x2xf32>,
    %c2_136 = arith.constant 2 : index
    %c2_137 = arith.constant 2 : index
    %c0_138 = arith.constant 0 : index
    %258 = vector.load %arg9[%c2_136, %c2_137, %c0_138] : memref<4x8x2xf32, #tpu.memory_space<vmem>>, vector<1x1x2xf32>
    %259 = vector.shape_cast %258 : vector<1x1x2xf32> to vector<2xf32>
    %260 = vector.shape_cast %248 : vector<2xf32> to vector<1x1x2xf32>
    tpu.vector_store %arg9[%c2_136, %c2_137, %c0_138], %260 {strides = array<i32>} : memref<4x8x2xf32, #tpu.memory_space<vmem>>, vector<1x1x2xf32>,
    %c3_139 = arith.constant 3 : index
    %c2_140 = arith.constant 2 : index
    %c0_141 = arith.constant 0 : index
    %261 = vector.load %arg9[%c3_139, %c2_140, %c0_141] : memref<4x8x2xf32, #tpu.memory_space<vmem>>, vector<1x1x2xf32>
    %262 = vector.shape_cast %261 : vector<1x1x2xf32> to vector<2xf32>
    %263 = vector.shape_cast %251 : vector<2xf32> to vector<1x1x2xf32>
    tpu.vector_store %arg9[%c3_139, %c2_140, %c0_141], %263 {strides = array<i32>} : memref<4x8x2xf32, #tpu.memory_space<vmem>>, vector<1x1x2xf32>,
    %264 = vector.broadcast %0 : f32 to vector<2xf32>
    %265 = arith.mulf %264, %242 : vector<2xf32>
    %266 = vector.broadcast %1 : f32 to vector<2xf32>
    %267 = arith.mulf %266, %245 : vector<2xf32>
    %268 = arith.addf %265, %267 : vector<2xf32>
    %269 = vector.broadcast %2 : f32 to vector<2xf32>
    %270 = arith.mulf %269, %248 : vector<2xf32>
    %271 = arith.addf %268, %270 : vector<2xf32>
    %272 = vector.broadcast %3 : f32 to vector<2xf32>
    %273 = arith.mulf %272, %251 : vector<2xf32>
    %274 = arith.addf %271, %273 : vector<2xf32>
    %275 = vector.broadcast %4 : f32 to vector<2xf32>
    %276 = arith.mulf %275, %242 : vector<2xf32>
    %277 = vector.broadcast %5 : f32 to vector<2xf32>
    %278 = arith.mulf %277, %245 : vector<2xf32>
    %279 = arith.addf %276, %278 : vector<2xf32>
    %280 = vector.broadcast %6 : f32 to vector<2xf32>
    %281 = arith.mulf %280, %248 : vector<2xf32>
    %282 = arith.addf %279, %281 : vector<2xf32>
    %283 = vector.broadcast %7 : f32 to vector<2xf32>
    %284 = arith.mulf %283, %251 : vector<2xf32>
    %285 = arith.addf %282, %284 : vector<2xf32>
    %286 = vector.broadcast %8 : f32 to vector<2xf32>
    %287 = arith.mulf %286, %242 : vector<2xf32>
    %288 = vector.broadcast %9 : f32 to vector<2xf32>
    %289 = arith.mulf %288, %245 : vector<2xf32>
    %290 = arith.addf %287, %289 : vector<2xf32>
    %291 = vector.broadcast %10 : f32 to vector<2xf32>
    %292 = arith.mulf %291, %248 : vector<2xf32>
    %293 = arith.addf %290, %292 : vector<2xf32>
    %294 = vector.broadcast %11 : f32 to vector<2xf32>
    %295 = arith.mulf %294, %251 : vector<2xf32>
    %296 = arith.addf %293, %295 : vector<2xf32>
    %297 = vector.broadcast %12 : f32 to vector<2xf32>
    %298 = arith.mulf %297, %242 : vector<2xf32>
    %299 = vector.broadcast %13 : f32 to vector<2xf32>
    %300 = arith.mulf %299, %245 : vector<2xf32>
    %301 = arith.addf %298, %300 : vector<2xf32>
    %302 = vector.broadcast %14 : f32 to vector<2xf32>
    %303 = arith.mulf %302, %248 : vector<2xf32>
    %304 = arith.addf %301, %303 : vector<2xf32>
    %305 = vector.broadcast %15 : f32 to vector<2xf32>
    %306 = arith.mulf %305, %251 : vector<2xf32>
    %307 = arith.addf %304, %306 : vector<2xf32>
    %c0_142 = arith.constant 0 : index
    %c2_143 = arith.constant 2 : index
    %c0_144 = arith.constant 0 : index
    %308 = vector.load %arg11[%c0_142, %c2_143, %c0_144] : memref<4x8x2xf32, #tpu.memory_space<vmem>>, vector<1x1x2xf32>
    %309 = vector.shape_cast %308 : vector<1x1x2xf32> to vector<2xf32>
    %310 = arith.addf %274, %309 : vector<2xf32>
    %c1_145 = arith.constant 1 : index
    %c2_146 = arith.constant 2 : index
    %c0_147 = arith.constant 0 : index
    %311 = vector.load %arg11[%c1_145, %c2_146, %c0_147] : memref<4x8x2xf32, #tpu.memory_space<vmem>>, vector<1x1x2xf32>
    %312 = vector.shape_cast %311 : vector<1x1x2xf32> to vector<2xf32>
    %313 = arith.addf %285, %312 : vector<2xf32>
    %c2_148 = arith.constant 2 : index
    %c2_149 = arith.constant 2 : index
    %c0_150 = arith.constant 0 : index
    %314 = vector.load %arg11[%c2_148, %c2_149, %c0_150] : memref<4x8x2xf32, #tpu.memory_space<vmem>>, vector<1x1x2xf32>
    %315 = vector.shape_cast %314 : vector<1x1x2xf32> to vector<2xf32>
    %316 = arith.addf %296, %315 : vector<2xf32>
    %c3_151 = arith.constant 3 : index
    %c2_152 = arith.constant 2 : index
    %c0_153 = arith.constant 0 : index
    %317 = vector.load %arg11[%c3_151, %c2_152, %c0_153] : memref<4x8x2xf32, #tpu.memory_space<vmem>>, vector<1x1x2xf32>
    %318 = vector.shape_cast %317 : vector<1x1x2xf32> to vector<2xf32>
    %319 = arith.addf %307, %318 : vector<2xf32>
    %c0_154 = arith.constant 0 : index
    %c3_155 = arith.constant 3 : index
    %c0_156 = arith.constant 0 : index
    %320 = vector.load %arg9[%c0_154, %c3_155, %c0_156] : memref<4x8x2xf32, #tpu.memory_space<vmem>>, vector<1x1x2xf32>
    %321 = vector.shape_cast %320 : vector<1x1x2xf32> to vector<2xf32>
    %322 = vector.shape_cast %310 : vector<2xf32> to vector<1x1x2xf32>
    tpu.vector_store %arg9[%c0_154, %c3_155, %c0_156], %322 {strides = array<i32>} : memref<4x8x2xf32, #tpu.memory_space<vmem>>, vector<1x1x2xf32>,
    %c1_157 = arith.constant 1 : index
    %c3_158 = arith.constant 3 : index
    %c0_159 = arith.constant 0 : index
    %323 = vector.load %arg9[%c1_157, %c3_158, %c0_159] : memref<4x8x2xf32, #tpu.memory_space<vmem>>, vector<1x1x2xf32>
    %324 = vector.shape_cast %323 : vector<1x1x2xf32> to vector<2xf32>
    %325 = vector.shape_cast %313 : vector<2xf32> to vector<1x1x2xf32>
    tpu.vector_store %arg9[%c1_157, %c3_158, %c0_159], %325 {strides = array<i32>} : memref<4x8x2xf32, #tpu.memory_space<vmem>>, vector<1x1x2xf32>,
    %c2_160 = arith.constant 2 : index
    %c3_161 = arith.constant 3 : index
    %c0_162 = arith.constant 0 : index
    %326 = vector.load %arg9[%c2_160, %c3_161, %c0_162] : memref<4x8x2xf32, #tpu.memory_space<vmem>>, vector<1x1x2xf32>
    %327 = vector.shape_cast %326 : vector<1x1x2xf32> to vector<2xf32>
    %328 = vector.shape_cast %316 : vector<2xf32> to vector<1x1x2xf32>
    tpu.vector_store %arg9[%c2_160, %c3_161, %c0_162], %328 {strides = array<i32>} : memref<4x8x2xf32, #tpu.memory_space<vmem>>, vector<1x1x2xf32>,
    %c3_163 = arith.constant 3 : index
    %c3_164 = arith.constant 3 : index
    %c0_165 = arith.constant 0 : index
    %329 = vector.load %arg9[%c3_163, %c3_164, %c0_165] : memref<4x8x2xf32, #tpu.memory_space<vmem>>, vector<1x1x2xf32>
    %330 = vector.shape_cast %329 : vector<1x1x2xf32> to vector<2xf32>
    %331 = vector.shape_cast %319 : vector<2xf32> to vector<1x1x2xf32>
    tpu.vector_store %arg9[%c3_163, %c3_164, %c0_165], %331 {strides = array<i32>} : memref<4x8x2xf32, #tpu.memory_space<vmem>>, vector<1x1x2xf32>,
    %332 = vector.broadcast %0 : f32 to vector<2xf32>
    %333 = arith.mulf %332, %310 : vector<2xf32>
    %334 = vector.broadcast %1 : f32 to vector<2xf32>
    %335 = arith.mulf %334, %313 : vector<2xf32>
    %336 = arith.addf %333, %335 : vector<2xf32>
    %337 = vector.broadcast %2 : f32 to vector<2xf32>
    %338 = arith.mulf %337, %316 : vector<2xf32>
    %339 = arith.addf %336, %338 : vector<2xf32>
    %340 = vector.broadcast %3 : f32 to vector<2xf32>
    %341 = arith.mulf %340, %319 : vector<2xf32>
    %342 = arith.addf %339, %341 : vector<2xf32>
    %343 = vector.broadcast %4 : f32 to vector<2xf32>
    %344 = arith.mulf %343, %310 : vector<2xf32>
    %345 = vector.broadcast %5 : f32 to vector<2xf32>
    %346 = arith.mulf %345, %313 : vector<2xf32>
    %347 = arith.addf %344, %346 : vector<2xf32>
    %348 = vector.broadcast %6 : f32 to vector<2xf32>
    %349 = arith.mulf %348, %316 : vector<2xf32>
    %350 = arith.addf %347, %349 : vector<2xf32>
    %351 = vector.broadcast %7 : f32 to vector<2xf32>
    %352 = arith.mulf %351, %319 : vector<2xf32>
    %353 = arith.addf %350, %352 : vector<2xf32>
    %354 = vector.broadcast %8 : f32 to vector<2xf32>
    %355 = arith.mulf %354, %310 : vector<2xf32>
    %356 = vector.broadcast %9 : f32 to vector<2xf32>
    %357 = arith.mulf %356, %313 : vector<2xf32>
    %358 = arith.addf %355, %357 : vector<2xf32>
    %359 = vector.broadcast %10 : f32 to vector<2xf32>
    %360 = arith.mulf %359, %316 : vector<2xf32>
    %361 = arith.addf %358, %360 : vector<2xf32>
    %362 = vector.broadcast %11 : f32 to vector<2xf32>
    %363 = arith.mulf %362, %319 : vector<2xf32>
    %364 = arith.addf %361, %363 : vector<2xf32>
    %365 = vector.broadcast %12 : f32 to vector<2xf32>
    %366 = arith.mulf %365, %310 : vector<2xf32>
    %367 = vector.broadcast %13 : f32 to vector<2xf32>
    %368 = arith.mulf %367, %313 : vector<2xf32>
    %369 = arith.addf %366, %368 : vector<2xf32>
    %370 = vector.broadcast %14 : f32 to vector<2xf32>
    %371 = arith.mulf %370, %316 : vector<2xf32>
    %372 = arith.addf %369, %371 : vector<2xf32>
    %373 = vector.broadcast %15 : f32 to vector<2xf32>
    %374 = arith.mulf %373, %319 : vector<2xf32>
    %375 = arith.addf %372, %374 : vector<2xf32>
    %c0_166 = arith.constant 0 : index
    %c3_167 = arith.constant 3 : index
    %c0_168 = arith.constant 0 : index
    %376 = vector.load %arg11[%c0_166, %c3_167, %c0_168] : memref<4x8x2xf32, #tpu.memory_space<vmem>>, vector<1x1x2xf32>
    %377 = vector.shape_cast %376 : vector<1x1x2xf32> to vector<2xf32>
    %378 = arith.addf %342, %377 : vector<2xf32>
    %c1_169 = arith.constant 1 : index
    %c3_170 = arith.constant 3 : index
    %c0_171 = arith.constant 0 : index
    %379 = vector.load %arg11[%c1_169, %c3_170, %c0_171] : memref<4x8x2xf32, #tpu.memory_space<vmem>>, vector<1x1x2xf32>
    %380 = vector.shape_cast %379 : vector<1x1x2xf32> to vector<2xf32>
    %381 = arith.addf %353, %380 : vector<2xf32>
    %c2_172 = arith.constant 2 : index
    %c3_173 = arith.constant 3 : index
    %c0_174 = arith.constant 0 : index
    %382 = vector.load %arg11[%c2_172, %c3_173, %c0_174] : memref<4x8x2xf32, #tpu.memory_space<vmem>>, vector<1x1x2xf32>
    %383 = vector.shape_cast %382 : vector<1x1x2xf32> to vector<2xf32>
    %384 = arith.addf %364, %383 : vector<2xf32>
    %c3_175 = arith.constant 3 : index
    %c3_176 = arith.constant 3 : index
    %c0_177 = arith.constant 0 : index
    %385 = vector.load %arg11[%c3_175, %c3_176, %c0_177] : memref<4x8x2xf32, #tpu.memory_space<vmem>>, vector<1x1x2xf32>
    %386 = vector.shape_cast %385 : vector<1x1x2xf32> to vector<2xf32>
    %387 = arith.addf %375, %386 : vector<2xf32>
    %c0_178 = arith.constant 0 : index
    %c4_179 = arith.constant 4 : index
    %c0_180 = arith.constant 0 : index
    %388 = vector.load %arg9[%c0_178, %c4_179, %c0_180] : memref<4x8x2xf32, #tpu.memory_space<vmem>>, vector<1x1x2xf32>
    %389 = vector.shape_cast %388 : vector<1x1x2xf32> to vector<2xf32>
    %390 = vector.shape_cast %378 : vector<2xf32> to vector<1x1x2xf32>
    tpu.vector_store %arg9[%c0_178, %c4_179, %c0_180], %390 {strides = array<i32>} : memref<4x8x2xf32, #tpu.memory_space<vmem>>, vector<1x1x2xf32>,
    %c1_181 = arith.constant 1 : index
    %c4_182 = arith.constant 4 : index
    %c0_183 = arith.constant 0 : index
    %391 = vector.load %arg9[%c1_181, %c4_182, %c0_183] : memref<4x8x2xf32, #tpu.memory_space<vmem>>, vector<1x1x2xf32>
    %392 = vector.shape_cast %391 : vector<1x1x2xf32> to vector<2xf32>
    %393 = vector.shape_cast %381 : vector<2xf32> to vector<1x1x2xf32>
    tpu.vector_store %arg9[%c1_181, %c4_182, %c0_183], %393 {strides = array<i32>} : memref<4x8x2xf32, #tpu.memory_space<vmem>>, vector<1x1x2xf32>,
    %c2_184 = arith.constant 2 : index
    %c4_185 = arith.constant 4 : index
    %c0_186 = arith.constant 0 : index
    %394 = vector.load %arg9[%c2_184, %c4_185, %c0_186] : memref<4x8x2xf32, #tpu.memory_space<vmem>>, vector<1x1x2xf32>
    %395 = vector.shape_cast %394 : vector<1x1x2xf32> to vector<2xf32>
    %396 = vector.shape_cast %384 : vector<2xf32> to vector<1x1x2xf32>
    tpu.vector_store %arg9[%c2_184, %c4_185, %c0_186], %396 {strides = array<i32>} : memref<4x8x2xf32, #tpu.memory_space<vmem>>, vector<1x1x2xf32>,
    %c3_187 = arith.constant 3 : index
    %c4_188 = arith.constant 4 : index
    %c0_189 = arith.constant 0 : index
    %397 = vector.load %arg9[%c3_187, %c4_188, %c0_189] : memref<4x8x2xf32, #tpu.memory_space<vmem>>, vector<1x1x2xf32>
    %398 = vector.shape_cast %397 : vector<1x1x2xf32> to vector<2xf32>
    %399 = vector.shape_cast %387 : vector<2xf32> to vector<1x1x2xf32>
    tpu.vector_store %arg9[%c3_187, %c4_188, %c0_189], %399 {strides = array<i32>} : memref<4x8x2xf32, #tpu.memory_space<vmem>>, vector<1x1x2xf32>,
    %400 = vector.broadcast %0 : f32 to vector<2xf32>
    %401 = arith.mulf %400, %378 : vector<2xf32>
    %402 = vector.broadcast %1 : f32 to vector<2xf32>
    %403 = arith.mulf %402, %381 : vector<2xf32>
    %404 = arith.addf %401, %403 : vector<2xf32>
    %405 = vector.broadcast %2 : f32 to vector<2xf32>
    %406 = arith.mulf %405, %384 : vector<2xf32>
    %407 = arith.addf %404, %406 : vector<2xf32>
    %408 = vector.broadcast %3 : f32 to vector<2xf32>
    %409 = arith.mulf %408, %387 : vector<2xf32>
    %410 = arith.addf %407, %409 : vector<2xf32>
    %411 = vector.broadcast %4 : f32 to vector<2xf32>
    %412 = arith.mulf %411, %378 : vector<2xf32>
    %413 = vector.broadcast %5 : f32 to vector<2xf32>
    %414 = arith.mulf %413, %381 : vector<2xf32>
    %415 = arith.addf %412, %414 : vector<2xf32>
    %416 = vector.broadcast %6 : f32 to vector<2xf32>
    %417 = arith.mulf %416, %384 : vector<2xf32>
    %418 = arith.addf %415, %417 : vector<2xf32>
    %419 = vector.broadcast %7 : f32 to vector<2xf32>
    %420 = arith.mulf %419, %387 : vector<2xf32>
    %421 = arith.addf %418, %420 : vector<2xf32>
    %422 = vector.broadcast %8 : f32 to vector<2xf32>
    %423 = arith.mulf %422, %378 : vector<2xf32>
    %424 = vector.broadcast %9 : f32 to vector<2xf32>
    %425 = arith.mulf %424, %381 : vector<2xf32>
    %426 = arith.addf %423, %425 : vector<2xf32>
    %427 = vector.broadcast %10 : f32 to vector<2xf32>
    %428 = arith.mulf %427, %384 : vector<2xf32>
    %429 = arith.addf %426, %428 : vector<2xf32>
    %430 = vector.broadcast %11 : f32 to vector<2xf32>
    %431 = arith.mulf %430, %387 : vector<2xf32>
    %432 = arith.addf %429, %431 : vector<2xf32>
    %433 = vector.broadcast %12 : f32 to vector<2xf32>
    %434 = arith.mulf %433, %378 : vector<2xf32>
    %435 = vector.broadcast %13 : f32 to vector<2xf32>
    %436 = arith.mulf %435, %381 : vector<2xf32>
    %437 = arith.addf %434, %436 : vector<2xf32>
    %438 = vector.broadcast %14 : f32 to vector<2xf32>
    %439 = arith.mulf %438, %384 : vector<2xf32>
    %440 = arith.addf %437, %439 : vector<2xf32>
    %441 = vector.broadcast %15 : f32 to vector<2xf32>
    %442 = arith.mulf %441, %387 : vector<2xf32>
    %443 = arith.addf %440, %442 : vector<2xf32>
    %c0_190 = arith.constant 0 : index
    %c4_191 = arith.constant 4 : index
    %c0_192 = arith.constant 0 : index
    %444 = vector.load %arg11[%c0_190, %c4_191, %c0_192] : memref<4x8x2xf32, #tpu.memory_space<vmem>>, vector<1x1x2xf32>
    %445 = vector.shape_cast %444 : vector<1x1x2xf32> to vector<2xf32>
    %446 = arith.addf %410, %445 : vector<2xf32>
    %c1_193 = arith.constant 1 : index
    %c4_194 = arith.constant 4 : index
    %c0_195 = arith.constant 0 : index
    %447 = vector.load %arg11[%c1_193, %c4_194, %c0_195] : memref<4x8x2xf32, #tpu.memory_space<vmem>>, vector<1x1x2xf32>
    %448 = vector.shape_cast %447 : vector<1x1x2xf32> to vector<2xf32>
    %449 = arith.addf %421, %448 : vector<2xf32>
    %c2_196 = arith.constant 2 : index
    %c4_197 = arith.constant 4 : index
    %c0_198 = arith.constant 0 : index
    %450 = vector.load %arg11[%c2_196, %c4_197, %c0_198] : memref<4x8x2xf32, #tpu.memory_space<vmem>>, vector<1x1x2xf32>
    %451 = vector.shape_cast %450 : vector<1x1x2xf32> to vector<2xf32>
    %452 = arith.addf %432, %451 : vector<2xf32>
    %c3_199 = arith.constant 3 : index
    %c4_200 = arith.constant 4 : index
    %c0_201 = arith.constant 0 : index
    %453 = vector.load %arg11[%c3_199, %c4_200, %c0_201] : memref<4x8x2xf32, #tpu.memory_space<vmem>>, vector<1x1x2xf32>
    %454 = vector.shape_cast %453 : vector<1x1x2xf32> to vector<2xf32>
    %455 = arith.addf %443, %454 : vector<2xf32>
    %c0_202 = arith.constant 0 : index
    %c5_203 = arith.constant 5 : index
    %c0_204 = arith.constant 0 : index
    %456 = vector.load %arg9[%c0_202, %c5_203, %c0_204] : memref<4x8x2xf32, #tpu.memory_space<vmem>>, vector<1x1x2xf32>
    %457 = vector.shape_cast %456 : vector<1x1x2xf32> to vector<2xf32>
    %458 = vector.shape_cast %446 : vector<2xf32> to vector<1x1x2xf32>
    tpu.vector_store %arg9[%c0_202, %c5_203, %c0_204], %458 {strides = array<i32>} : memref<4x8x2xf32, #tpu.memory_space<vmem>>, vector<1x1x2xf32>,
    %c1_205 = arith.constant 1 : index
    %c5_206 = arith.constant 5 : index
    %c0_207 = arith.constant 0 : index
    %459 = vector.load %arg9[%c1_205, %c5_206, %c0_207] : memref<4x8x2xf32, #tpu.memory_space<vmem>>, vector<1x1x2xf32>
    %460 = vector.shape_cast %459 : vector<1x1x2xf32> to vector<2xf32>
    %461 = vector.shape_cast %449 : vector<2xf32> to vector<1x1x2xf32>
    tpu.vector_store %arg9[%c1_205, %c5_206, %c0_207], %461 {strides = array<i32>} : memref<4x8x2xf32, #tpu.memory_space<vmem>>, vector<1x1x2xf32>,
    %c2_208 = arith.constant 2 : index
    %c5_209 = arith.constant 5 : index
    %c0_210 = arith.constant 0 : index
    %462 = vector.load %arg9[%c2_208, %c5_209, %c0_210] : memref<4x8x2xf32, #tpu.memory_space<vmem>>, vector<1x1x2xf32>
    %463 = vector.shape_cast %462 : vector<1x1x2xf32> to vector<2xf32>
    %464 = vector.shape_cast %452 : vector<2xf32> to vector<1x1x2xf32>
    tpu.vector_store %arg9[%c2_208, %c5_209, %c0_210], %464 {strides = array<i32>} : memref<4x8x2xf32, #tpu.memory_space<vmem>>, vector<1x1x2xf32>,
    %c3_211 = arith.constant 3 : index
    %c5_212 = arith.constant 5 : index
    %c0_213 = arith.constant 0 : index
    %465 = vector.load %arg9[%c3_211, %c5_212, %c0_213] : memref<4x8x2xf32, #tpu.memory_space<vmem>>, vector<1x1x2xf32>
    %466 = vector.shape_cast %465 : vector<1x1x2xf32> to vector<2xf32>
    %467 = vector.shape_cast %455 : vector<2xf32> to vector<1x1x2xf32>
    tpu.vector_store %arg9[%c3_211, %c5_212, %c0_213], %467 {strides = array<i32>} : memref<4x8x2xf32, #tpu.memory_space<vmem>>, vector<1x1x2xf32>,
    %468 = vector.broadcast %0 : f32 to vector<2xf32>
    %469 = arith.mulf %468, %446 : vector<2xf32>
    %470 = vector.broadcast %1 : f32 to vector<2xf32>
    %471 = arith.mulf %470, %449 : vector<2xf32>
    %472 = arith.addf %469, %471 : vector<2xf32>
    %473 = vector.broadcast %2 : f32 to vector<2xf32>
    %474 = arith.mulf %473, %452 : vector<2xf32>
    %475 = arith.addf %472, %474 : vector<2xf32>
    %476 = vector.broadcast %3 : f32 to vector<2xf32>
    %477 = arith.mulf %476, %455 : vector<2xf32>
    %478 = arith.addf %475, %477 : vector<2xf32>
    %479 = vector.broadcast %4 : f32 to vector<2xf32>
    %480 = arith.mulf %479, %446 : vector<2xf32>
    %481 = vector.broadcast %5 : f32 to vector<2xf32>
    %482 = arith.mulf %481, %449 : vector<2xf32>
    %483 = arith.addf %480, %482 : vector<2xf32>
    %484 = vector.broadcast %6 : f32 to vector<2xf32>
    %485 = arith.mulf %484, %452 : vector<2xf32>
    %486 = arith.addf %483, %485 : vector<2xf32>
    %487 = vector.broadcast %7 : f32 to vector<2xf32>
    %488 = arith.mulf %487, %455 : vector<2xf32>
    %489 = arith.addf %486, %488 : vector<2xf32>
    %490 = vector.broadcast %8 : f32 to vector<2xf32>
    %491 = arith.mulf %490, %446 : vector<2xf32>
    %492 = vector.broadcast %9 : f32 to vector<2xf32>
    %493 = arith.mulf %492, %449 : vector<2xf32>
    %494 = arith.addf %491, %493 : vector<2xf32>
    %495 = vector.broadcast %10 : f32 to vector<2xf32>
    %496 = arith.mulf %495, %452 : vector<2xf32>
    %497 = arith.addf %494, %496 : vector<2xf32>
    %498 = vector.broadcast %11 : f32 to vector<2xf32>
    %499 = arith.mulf %498, %455 : vector<2xf32>
    %500 = arith.addf %497, %499 : vector<2xf32>
    %501 = vector.broadcast %12 : f32 to vector<2xf32>
    %502 = arith.mulf %501, %446 : vector<2xf32>
    %503 = vector.broadcast %13 : f32 to vector<2xf32>
    %504 = arith.mulf %503, %449 : vector<2xf32>
    %505 = arith.addf %502, %504 : vector<2xf32>
    %506 = vector.broadcast %14 : f32 to vector<2xf32>
    %507 = arith.mulf %506, %452 : vector<2xf32>
    %508 = arith.addf %505, %507 : vector<2xf32>
    %509 = vector.broadcast %15 : f32 to vector<2xf32>
    %510 = arith.mulf %509, %455 : vector<2xf32>
    %511 = arith.addf %508, %510 : vector<2xf32>
    %c0_214 = arith.constant 0 : index
    %c5_215 = arith.constant 5 : index
    %c0_216 = arith.constant 0 : index
    %512 = vector.load %arg11[%c0_214, %c5_215, %c0_216] : memref<4x8x2xf32, #tpu.memory_space<vmem>>, vector<1x1x2xf32>
    %513 = vector.shape_cast %512 : vector<1x1x2xf32> to vector<2xf32>
    %514 = arith.addf %478, %513 : vector<2xf32>
    %c1_217 = arith.constant 1 : index
    %c5_218 = arith.constant 5 : index
    %c0_219 = arith.constant 0 : index
    %515 = vector.load %arg11[%c1_217, %c5_218, %c0_219] : memref<4x8x2xf32, #tpu.memory_space<vmem>>, vector<1x1x2xf32>
    %516 = vector.shape_cast %515 : vector<1x1x2xf32> to vector<2xf32>
    %517 = arith.addf %489, %516 : vector<2xf32>
    %c2_220 = arith.constant 2 : index
    %c5_221 = arith.constant 5 : index
    %c0_222 = arith.constant 0 : index
    %518 = vector.load %arg11[%c2_220, %c5_221, %c0_222] : memref<4x8x2xf32, #tpu.memory_space<vmem>>, vector<1x1x2xf32>
    %519 = vector.shape_cast %518 : vector<1x1x2xf32> to vector<2xf32>
    %520 = arith.addf %500, %519 : vector<2xf32>
    %c3_223 = arith.constant 3 : index
    %c5_224 = arith.constant 5 : index
    %c0_225 = arith.constant 0 : index
    %521 = vector.load %arg11[%c3_223, %c5_224, %c0_225] : memref<4x8x2xf32, #tpu.memory_space<vmem>>, vector<1x1x2xf32>
    %522 = vector.shape_cast %521 : vector<1x1x2xf32> to vector<2xf32>
    %523 = arith.addf %511, %522 : vector<2xf32>
    %c0_226 = arith.constant 0 : index
    %c6_227 = arith.constant 6 : index
    %c0_228 = arith.constant 0 : index
    %524 = vector.load %arg9[%c0_226, %c6_227, %c0_228] : memref<4x8x2xf32, #tpu.memory_space<vmem>>, vector<1x1x2xf32>
    %525 = vector.shape_cast %524 : vector<1x1x2xf32> to vector<2xf32>
    %526 = vector.shape_cast %514 : vector<2xf32> to vector<1x1x2xf32>
    tpu.vector_store %arg9[%c0_226, %c6_227, %c0_228], %526 {strides = array<i32>} : memref<4x8x2xf32, #tpu.memory_space<vmem>>, vector<1x1x2xf32>,
    %c1_229 = arith.constant 1 : index
    %c6_230 = arith.constant 6 : index
    %c0_231 = arith.constant 0 : index
    %527 = vector.load %arg9[%c1_229, %c6_230, %c0_231] : memref<4x8x2xf32, #tpu.memory_space<vmem>>, vector<1x1x2xf32>
    %528 = vector.shape_cast %527 : vector<1x1x2xf32> to vector<2xf32>
    %529 = vector.shape_cast %517 : vector<2xf32> to vector<1x1x2xf32>
    tpu.vector_store %arg9[%c1_229, %c6_230, %c0_231], %529 {strides = array<i32>} : memref<4x8x2xf32, #tpu.memory_space<vmem>>, vector<1x1x2xf32>,
    %c2_232 = arith.constant 2 : index
    %c6_233 = arith.constant 6 : index
    %c0_234 = arith.constant 0 : index
    %530 = vector.load %arg9[%c2_232, %c6_233, %c0_234] : memref<4x8x2xf32, #tpu.memory_space<vmem>>, vector<1x1x2xf32>
    %531 = vector.shape_cast %530 : vector<1x1x2xf32> to vector<2xf32>
    %532 = vector.shape_cast %520 : vector<2xf32> to vector<1x1x2xf32>
    tpu.vector_store %arg9[%c2_232, %c6_233, %c0_234], %532 {strides = array<i32>} : memref<4x8x2xf32, #tpu.memory_space<vmem>>, vector<1x1x2xf32>,
    %c3_235 = arith.constant 3 : index
    %c6_236 = arith.constant 6 : index
    %c0_237 = arith.constant 0 : index
    %533 = vector.load %arg9[%c3_235, %c6_236, %c0_237] : memref<4x8x2xf32, #tpu.memory_space<vmem>>, vector<1x1x2xf32>
    %534 = vector.shape_cast %533 : vector<1x1x2xf32> to vector<2xf32>
    %535 = vector.shape_cast %523 : vector<2xf32> to vector<1x1x2xf32>
    tpu.vector_store %arg9[%c3_235, %c6_236, %c0_237], %535 {strides = array<i32>} : memref<4x8x2xf32, #tpu.memory_space<vmem>>, vector<1x1x2xf32>,
    %536 = vector.broadcast %0 : f32 to vector<2xf32>
    %537 = arith.mulf %536, %514 : vector<2xf32>
    %538 = vector.broadcast %1 : f32 to vector<2xf32>
    %539 = arith.mulf %538, %517 : vector<2xf32>
    %540 = arith.addf %537, %539 : vector<2xf32>
    %541 = vector.broadcast %2 : f32 to vector<2xf32>
    %542 = arith.mulf %541, %520 : vector<2xf32>
    %543 = arith.addf %540, %542 : vector<2xf32>
    %544 = vector.broadcast %3 : f32 to vector<2xf32>
    %545 = arith.mulf %544, %523 : vector<2xf32>
    %546 = arith.addf %543, %545 : vector<2xf32>
    %547 = vector.broadcast %4 : f32 to vector<2xf32>
    %548 = arith.mulf %547, %514 : vector<2xf32>
    %549 = vector.broadcast %5 : f32 to vector<2xf32>
    %550 = arith.mulf %549, %517 : vector<2xf32>
    %551 = arith.addf %548, %550 : vector<2xf32>
    %552 = vector.broadcast %6 : f32 to vector<2xf32>
    %553 = arith.mulf %552, %520 : vector<2xf32>
    %554 = arith.addf %551, %553 : vector<2xf32>
    %555 = vector.broadcast %7 : f32 to vector<2xf32>
    %556 = arith.mulf %555, %523 : vector<2xf32>
    %557 = arith.addf %554, %556 : vector<2xf32>
    %558 = vector.broadcast %8 : f32 to vector<2xf32>
    %559 = arith.mulf %558, %514 : vector<2xf32>
    %560 = vector.broadcast %9 : f32 to vector<2xf32>
    %561 = arith.mulf %560, %517 : vector<2xf32>
    %562 = arith.addf %559, %561 : vector<2xf32>
    %563 = vector.broadcast %10 : f32 to vector<2xf32>
    %564 = arith.mulf %563, %520 : vector<2xf32>
    %565 = arith.addf %562, %564 : vector<2xf32>
    %566 = vector.broadcast %11 : f32 to vector<2xf32>
    %567 = arith.mulf %566, %523 : vector<2xf32>
    %568 = arith.addf %565, %567 : vector<2xf32>
    %569 = vector.broadcast %12 : f32 to vector<2xf32>
    %570 = arith.mulf %569, %514 : vector<2xf32>
    %571 = vector.broadcast %13 : f32 to vector<2xf32>
    %572 = arith.mulf %571, %517 : vector<2xf32>
    %573 = arith.addf %570, %572 : vector<2xf32>
    %574 = vector.broadcast %14 : f32 to vector<2xf32>
    %575 = arith.mulf %574, %520 : vector<2xf32>
    %576 = arith.addf %573, %575 : vector<2xf32>
    %577 = vector.broadcast %15 : f32 to vector<2xf32>
    %578 = arith.mulf %577, %523 : vector<2xf32>
    %579 = arith.addf %576, %578 : vector<2xf32>
    %c0_238 = arith.constant 0 : index
    %c6_239 = arith.constant 6 : index
    %c0_240 = arith.constant 0 : index
    %580 = vector.load %arg11[%c0_238, %c6_239, %c0_240] : memref<4x8x2xf32, #tpu.memory_space<vmem>>, vector<1x1x2xf32>
    %581 = vector.shape_cast %580 : vector<1x1x2xf32> to vector<2xf32>
    %582 = arith.addf %546, %581 : vector<2xf32>
    %c1_241 = arith.constant 1 : index
    %c6_242 = arith.constant 6 : index
    %c0_243 = arith.constant 0 : index
    %583 = vector.load %arg11[%c1_241, %c6_242, %c0_243] : memref<4x8x2xf32, #tpu.memory_space<vmem>>, vector<1x1x2xf32>
    %584 = vector.shape_cast %583 : vector<1x1x2xf32> to vector<2xf32>
    %585 = arith.addf %557, %584 : vector<2xf32>
    %c2_244 = arith.constant 2 : index
    %c6_245 = arith.constant 6 : index
    %c0_246 = arith.constant 0 : index
    %586 = vector.load %arg11[%c2_244, %c6_245, %c0_246] : memref<4x8x2xf32, #tpu.memory_space<vmem>>, vector<1x1x2xf32>
    %587 = vector.shape_cast %586 : vector<1x1x2xf32> to vector<2xf32>
    %588 = arith.addf %568, %587 : vector<2xf32>
    %c3_247 = arith.constant 3 : index
    %c6_248 = arith.constant 6 : index
    %c0_249 = arith.constant 0 : index
    %589 = vector.load %arg11[%c3_247, %c6_248, %c0_249] : memref<4x8x2xf32, #tpu.memory_space<vmem>>, vector<1x1x2xf32>
    %590 = vector.shape_cast %589 : vector<1x1x2xf32> to vector<2xf32>
    %591 = arith.addf %579, %590 : vector<2xf32>
    %c0_250 = arith.constant 0 : index
    %c7_251 = arith.constant 7 : index
    %c0_252 = arith.constant 0 : index
    %592 = vector.load %arg9[%c0_250, %c7_251, %c0_252] : memref<4x8x2xf32, #tpu.memory_space<vmem>>, vector<1x1x2xf32>
    %593 = vector.shape_cast %592 : vector<1x1x2xf32> to vector<2xf32>
    %594 = vector.shape_cast %582 : vector<2xf32> to vector<1x1x2xf32>
    tpu.vector_store %arg9[%c0_250, %c7_251, %c0_252], %594 {strides = array<i32>} : memref<4x8x2xf32, #tpu.memory_space<vmem>>, vector<1x1x2xf32>,
    %c1_253 = arith.constant 1 : index
    %c7_254 = arith.constant 7 : index
    %c0_255 = arith.constant 0 : index
    %595 = vector.load %arg9[%c1_253, %c7_254, %c0_255] : memref<4x8x2xf32, #tpu.memory_space<vmem>>, vector<1x1x2xf32>
    %596 = vector.shape_cast %595 : vector<1x1x2xf32> to vector<2xf32>
    %597 = vector.shape_cast %585 : vector<2xf32> to vector<1x1x2xf32>
    tpu.vector_store %arg9[%c1_253, %c7_254, %c0_255], %597 {strides = array<i32>} : memref<4x8x2xf32, #tpu.memory_space<vmem>>, vector<1x1x2xf32>,
    %c2_256 = arith.constant 2 : index
    %c7_257 = arith.constant 7 : index
    %c0_258 = arith.constant 0 : index
    %598 = vector.load %arg9[%c2_256, %c7_257, %c0_258] : memref<4x8x2xf32, #tpu.memory_space<vmem>>, vector<1x1x2xf32>
    %599 = vector.shape_cast %598 : vector<1x1x2xf32> to vector<2xf32>
    %600 = vector.shape_cast %588 : vector<2xf32> to vector<1x1x2xf32>
    tpu.vector_store %arg9[%c2_256, %c7_257, %c0_258], %600 {strides = array<i32>} : memref<4x8x2xf32, #tpu.memory_space<vmem>>, vector<1x1x2xf32>,
    %c3_259 = arith.constant 3 : index
    %c7_260 = arith.constant 7 : index
    %c0_261 = arith.constant 0 : index
    %601 = vector.load %arg9[%c3_259, %c7_260, %c0_261] : memref<4x8x2xf32, #tpu.memory_space<vmem>>, vector<1x1x2xf32>
    %602 = vector.shape_cast %601 : vector<1x1x2xf32> to vector<2xf32>
    %603 = vector.shape_cast %591 : vector<2xf32> to vector<1x1x2xf32>
    tpu.vector_store %arg9[%c3_259, %c7_260, %c0_261], %603 {strides = array<i32>} : memref<4x8x2xf32, #tpu.memory_space<vmem>>, vector<1x1x2xf32>,
    %c0_262 = arith.constant 0 : index
    %c0_263 = arith.constant 0 : index
    %c0_264 = arith.constant 0 : index
    %604 = vector.load %arg9[%c0_262, %c0_263, %c0_264] : memref<4x8x2xf32, #tpu.memory_space<vmem>>, vector<1x8x2xf32>
    %605 = vector.shape_cast %604 : vector<1x8x2xf32> to vector<8x2xf32>
    %c1_265 = arith.constant 1 : index
    %c0_266 = arith.constant 0 : index
    %c0_267 = arith.constant 0 : index
    %606 = vector.load %arg9[%c1_265, %c0_266, %c0_267] : memref<4x8x2xf32, #tpu.memory_space<vmem>>, vector<1x8x2xf32>
    %607 = vector.shape_cast %606 : vector<1x8x2xf32> to vector<8x2xf32>
    %c2_268 = arith.constant 2 : index
    %c0_269 = arith.constant 0 : index
    %c0_270 = arith.constant 0 : index
    %608 = vector.load %arg9[%c2_268, %c0_269, %c0_270] : memref<4x8x2xf32, #tpu.memory_space<vmem>>, vector<1x8x2xf32>
    %609 = vector.shape_cast %608 : vector<1x8x2xf32> to vector<8x2xf32>
    %c3_271 = arith.constant 3 : index
    %c0_272 = arith.constant 0 : index
    %c0_273 = arith.constant 0 : index
    %610 = vector.load %arg9[%c3_271, %c0_272, %c0_273] : memref<4x8x2xf32, #tpu.memory_space<vmem>>, vector<1x8x2xf32>
    %611 = vector.shape_cast %610 : vector<1x8x2xf32> to vector<8x2xf32>
    %612 = vector.broadcast %40 : f32 to vector<8x2xf32>
    %613 = arith.mulf %612, %605 : vector<8x2xf32>
    %614 = vector.broadcast %41 : f32 to vector<8x2xf32>
    %615 = arith.mulf %614, %607 : vector<8x2xf32>
    %616 = arith.addf %613, %615 : vector<8x2xf32>
    %617 = vector.broadcast %42 : f32 to vector<8x2xf32>
    %618 = arith.mulf %617, %609 : vector<8x2xf32>
    %619 = arith.addf %616, %618 : vector<8x2xf32>
    %620 = vector.broadcast %43 : f32 to vector<8x2xf32>
    %621 = arith.mulf %620, %611 : vector<8x2xf32>
    %622 = arith.addf %619, %621 : vector<8x2xf32>
    %623 = vector.broadcast %44 : f32 to vector<8x2xf32>
    %624 = arith.mulf %623, %605 : vector<8x2xf32>
    %625 = vector.broadcast %45 : f32 to vector<8x2xf32>
    %626 = arith.mulf %625, %607 : vector<8x2xf32>
    %627 = arith.addf %624, %626 : vector<8x2xf32>
    %628 = vector.broadcast %46 : f32 to vector<8x2xf32>
    %629 = arith.mulf %628, %609 : vector<8x2xf32>
    %630 = arith.addf %627, %629 : vector<8x2xf32>
    %631 = vector.broadcast %47 : f32 to vector<8x2xf32>
    %632 = arith.mulf %631, %611 : vector<8x2xf32>
    %633 = arith.addf %630, %632 : vector<8x2xf32>
    %634 = vector.broadcast %48 : f32 to vector<8x2xf32>
    %635 = arith.mulf %634, %605 : vector<8x2xf32>
    %636 = vector.broadcast %49 : f32 to vector<8x2xf32>
    %637 = arith.mulf %636, %607 : vector<8x2xf32>
    %638 = arith.addf %635, %637 : vector<8x2xf32>
    %639 = vector.broadcast %50 : f32 to vector<8x2xf32>
    %640 = arith.mulf %639, %609 : vector<8x2xf32>
    %641 = arith.addf %638, %640 : vector<8x2xf32>
    %642 = vector.broadcast %51 : f32 to vector<8x2xf32>
    %643 = arith.mulf %642, %611 : vector<8x2xf32>
    %644 = arith.addf %641, %643 : vector<8x2xf32>
    %645 = vector.broadcast %52 : f32 to vector<8x2xf32>
    %646 = arith.mulf %645, %605 : vector<8x2xf32>
    %647 = vector.broadcast %53 : f32 to vector<8x2xf32>
    %648 = arith.mulf %647, %607 : vector<8x2xf32>
    %649 = arith.addf %646, %648 : vector<8x2xf32>
    %650 = vector.broadcast %54 : f32 to vector<8x2xf32>
    %651 = arith.mulf %650, %609 : vector<8x2xf32>
    %652 = arith.addf %649, %651 : vector<8x2xf32>
    %653 = vector.broadcast %55 : f32 to vector<8x2xf32>
    %654 = arith.mulf %653, %611 : vector<8x2xf32>
    %655 = arith.addf %652, %654 : vector<8x2xf32>
    %c0_274 = arith.constant 0 : index
    %c0_275 = arith.constant 0 : index
    %c0_276 = arith.constant 0 : index
    %656 = vector.load %arg12[%c0_274, %c0_275, %c0_276] : memref<4x8x2xf32, #tpu.memory_space<vmem>>, vector<1x8x2xf32>
    %657 = vector.shape_cast %656 : vector<1x8x2xf32> to vector<8x2xf32>
    %658 = vector.shape_cast %622 : vector<8x2xf32> to vector<1x8x2xf32>
    tpu.vector_store %arg12[%c0_274, %c0_275, %c0_276], %658 {strides = array<i32>} : memref<4x8x2xf32, #tpu.memory_space<vmem>>, vector<1x8x2xf32>,
    %c1_277 = arith.constant 1 : index
    %c0_278 = arith.constant 0 : index
    %c0_279 = arith.constant 0 : index
    %659 = vector.load %arg12[%c1_277, %c0_278, %c0_279] : memref<4x8x2xf32, #tpu.memory_space<vmem>>, vector<1x8x2xf32>
    %660 = vector.shape_cast %659 : vector<1x8x2xf32> to vector<8x2xf32>
    %661 = vector.shape_cast %633 : vector<8x2xf32> to vector<1x8x2xf32>
    tpu.vector_store %arg12[%c1_277, %c0_278, %c0_279], %661 {strides = array<i32>} : memref<4x8x2xf32, #tpu.memory_space<vmem>>, vector<1x8x2xf32>,
    %c2_280 = arith.constant 2 : index
    %c0_281 = arith.constant 0 : index
    %c0_282 = arith.constant 0 : index
    %662 = vector.load %arg12[%c2_280, %c0_281, %c0_282] : memref<4x8x2xf32, #tpu.memory_space<vmem>>, vector<1x8x2xf32>
    %663 = vector.shape_cast %662 : vector<1x8x2xf32> to vector<8x2xf32>
    %664 = vector.shape_cast %644 : vector<8x2xf32> to vector<1x8x2xf32>
    tpu.vector_store %arg12[%c2_280, %c0_281, %c0_282], %664 {strides = array<i32>} : memref<4x8x2xf32, #tpu.memory_space<vmem>>, vector<1x8x2xf32>,
    %c3_283 = arith.constant 3 : index
    %c0_284 = arith.constant 0 : index
    %c0_285 = arith.constant 0 : index
    %665 = vector.load %arg12[%c3_283, %c0_284, %c0_285] : memref<4x8x2xf32, #tpu.memory_space<vmem>>, vector<1x8x2xf32>
    %666 = vector.shape_cast %665 : vector<1x8x2xf32> to vector<8x2xf32>
    %667 = vector.shape_cast %655 : vector<8x2xf32> to vector<1x8x2xf32>
    tpu.vector_store %arg12[%c3_283, %c0_284, %c0_285], %667 {strides = array<i32>} : memref<4x8x2xf32, #tpu.memory_space<vmem>>, vector<1x8x2xf32>,
    %c0_286 = arith.constant 0 : index
    %c7_287 = arith.constant 7 : index
    %c0_288 = arith.constant 0 : index
    %668 = vector.load %arg1[%c0_286, %c7_287, %c0_288] : memref<2x8x2xf32, #tpu.memory_space<vmem>>, vector<1x1x2xf32>
    %669 = vector.shape_cast %668 : vector<1x1x2xf32> to vector<2xf32>
    %c1_289 = arith.constant 1 : index
    %c7_290 = arith.constant 7 : index
    %c0_291 = arith.constant 0 : index
    %670 = vector.load %arg1[%c1_289, %c7_290, %c0_291] : memref<2x8x2xf32, #tpu.memory_space<vmem>>, vector<1x1x2xf32>
    %671 = vector.shape_cast %670 : vector<1x1x2xf32> to vector<2xf32>
    %672 = vector.broadcast %24 : f32 to vector<2xf32>
    %673 = arith.mulf %672, %582 : vector<2xf32>
    %674 = vector.broadcast %25 : f32 to vector<2xf32>
    %675 = arith.mulf %674, %585 : vector<2xf32>
    %676 = arith.addf %673, %675 : vector<2xf32>
    %677 = vector.broadcast %26 : f32 to vector<2xf32>
    %678 = arith.mulf %677, %588 : vector<2xf32>
    %679 = arith.addf %676, %678 : vector<2xf32>
    %680 = vector.broadcast %27 : f32 to vector<2xf32>
    %681 = arith.mulf %680, %591 : vector<2xf32>
    %682 = arith.addf %679, %681 : vector<2xf32>
    %683 = vector.broadcast %28 : f32 to vector<2xf32>
    %684 = arith.mulf %683, %582 : vector<2xf32>
    %685 = vector.broadcast %29 : f32 to vector<2xf32>
    %686 = arith.mulf %685, %585 : vector<2xf32>
    %687 = arith.addf %684, %686 : vector<2xf32>
    %688 = vector.broadcast %30 : f32 to vector<2xf32>
    %689 = arith.mulf %688, %588 : vector<2xf32>
    %690 = arith.addf %687, %689 : vector<2xf32>
    %691 = vector.broadcast %31 : f32 to vector<2xf32>
    %692 = arith.mulf %691, %591 : vector<2xf32>
    %693 = arith.addf %690, %692 : vector<2xf32>
    %694 = arith.subf %669, %682 : vector<2xf32>
    %695 = arith.subf %671, %693 : vector<2xf32>
    %696 = vector.broadcast %32 : f32 to vector<2xf32>
    %697 = arith.mulf %696, %694 : vector<2xf32>
    %698 = vector.broadcast %33 : f32 to vector<2xf32>
    %699 = arith.mulf %698, %695 : vector<2xf32>
    %700 = arith.addf %697, %699 : vector<2xf32>
    %701 = vector.broadcast %34 : f32 to vector<2xf32>
    %702 = arith.mulf %701, %694 : vector<2xf32>
    %703 = vector.broadcast %35 : f32 to vector<2xf32>
    %704 = arith.mulf %703, %695 : vector<2xf32>
    %705 = arith.addf %702, %704 : vector<2xf32>
    %706 = vector.broadcast %36 : f32 to vector<2xf32>
    %707 = arith.mulf %706, %694 : vector<2xf32>
    %708 = vector.broadcast %37 : f32 to vector<2xf32>
    %709 = arith.mulf %708, %695 : vector<2xf32>
    %710 = arith.addf %707, %709 : vector<2xf32>
    %711 = vector.broadcast %38 : f32 to vector<2xf32>
    %712 = arith.mulf %711, %694 : vector<2xf32>
    %713 = vector.broadcast %39 : f32 to vector<2xf32>
    %714 = arith.mulf %713, %695 : vector<2xf32>
    %715 = arith.addf %712, %714 : vector<2xf32>
    %716 = arith.addf %582, %700 : vector<2xf32>
    %717 = arith.addf %585, %705 : vector<2xf32>
    %718 = arith.addf %588, %710 : vector<2xf32>
    %719 = arith.addf %591, %715 : vector<2xf32>
    %c0_292 = arith.constant 0 : index
    %c7_293 = arith.constant 7 : index
    %c0_294 = arith.constant 0 : index
    %720 = vector.load %arg10[%c0_292, %c7_293, %c0_294] : memref<4x8x2xf32, #tpu.memory_space<vmem>>, vector<1x1x2xf32>
    %721 = vector.shape_cast %720 : vector<1x1x2xf32> to vector<2xf32>
    %722 = vector.shape_cast %716 : vector<2xf32> to vector<1x1x2xf32>
    tpu.vector_store %arg10[%c0_292, %c7_293, %c0_294], %722 {strides = array<i32>} : memref<4x8x2xf32, #tpu.memory_space<vmem>>, vector<1x1x2xf32>,
    %c1_295 = arith.constant 1 : index
    %c7_296 = arith.constant 7 : index
    %c0_297 = arith.constant 0 : index
    %723 = vector.load %arg10[%c1_295, %c7_296, %c0_297] : memref<4x8x2xf32, #tpu.memory_space<vmem>>, vector<1x1x2xf32>
    %724 = vector.shape_cast %723 : vector<1x1x2xf32> to vector<2xf32>
    %725 = vector.shape_cast %717 : vector<2xf32> to vector<1x1x2xf32>
    tpu.vector_store %arg10[%c1_295, %c7_296, %c0_297], %725 {strides = array<i32>} : memref<4x8x2xf32, #tpu.memory_space<vmem>>, vector<1x1x2xf32>,
    %c2_298 = arith.constant 2 : index
    %c7_299 = arith.constant 7 : index
    %c0_300 = arith.constant 0 : index
    %726 = vector.load %arg10[%c2_298, %c7_299, %c0_300] : memref<4x8x2xf32, #tpu.memory_space<vmem>>, vector<1x1x2xf32>
    %727 = vector.shape_cast %726 : vector<1x1x2xf32> to vector<2xf32>
    %728 = vector.shape_cast %718 : vector<2xf32> to vector<1x1x2xf32>
    tpu.vector_store %arg10[%c2_298, %c7_299, %c0_300], %728 {strides = array<i32>} : memref<4x8x2xf32, #tpu.memory_space<vmem>>, vector<1x1x2xf32>,
    %c3_301 = arith.constant 3 : index
    %c7_302 = arith.constant 7 : index
    %c0_303 = arith.constant 0 : index
    %729 = vector.load %arg10[%c3_301, %c7_302, %c0_303] : memref<4x8x2xf32, #tpu.memory_space<vmem>>, vector<1x1x2xf32>
    %730 = vector.shape_cast %729 : vector<1x1x2xf32> to vector<2xf32>
    %731 = vector.shape_cast %719 : vector<2xf32> to vector<1x1x2xf32>
    tpu.vector_store %arg10[%c3_301, %c7_302, %c0_303], %731 {strides = array<i32>} : memref<4x8x2xf32, #tpu.memory_space<vmem>>, vector<1x1x2xf32>,
    %732 = vector.broadcast %56 : f32 to vector<2xf32>
    %733 = arith.mulf %732, %716 : vector<2xf32>
    %734 = vector.broadcast %57 : f32 to vector<2xf32>
    %735 = arith.mulf %734, %717 : vector<2xf32>
    %736 = arith.addf %733, %735 : vector<2xf32>
    %737 = vector.broadcast %58 : f32 to vector<2xf32>
    %738 = arith.mulf %737, %718 : vector<2xf32>
    %739 = arith.addf %736, %738 : vector<2xf32>
    %740 = vector.broadcast %59 : f32 to vector<2xf32>
    %741 = arith.mulf %740, %719 : vector<2xf32>
    %742 = arith.addf %739, %741 : vector<2xf32>
    %743 = vector.broadcast %60 : f32 to vector<2xf32>
    %744 = arith.mulf %743, %716 : vector<2xf32>
    %745 = vector.broadcast %61 : f32 to vector<2xf32>
    %746 = arith.mulf %745, %717 : vector<2xf32>
    %747 = arith.addf %744, %746 : vector<2xf32>
    %748 = vector.broadcast %62 : f32 to vector<2xf32>
    %749 = arith.mulf %748, %718 : vector<2xf32>
    %750 = arith.addf %747, %749 : vector<2xf32>
    %751 = vector.broadcast %63 : f32 to vector<2xf32>
    %752 = arith.mulf %751, %719 : vector<2xf32>
    %753 = arith.addf %750, %752 : vector<2xf32>
    %754 = vector.broadcast %64 : f32 to vector<2xf32>
    %755 = arith.mulf %754, %716 : vector<2xf32>
    %756 = vector.broadcast %65 : f32 to vector<2xf32>
    %757 = arith.mulf %756, %717 : vector<2xf32>
    %758 = arith.addf %755, %757 : vector<2xf32>
    %759 = vector.broadcast %66 : f32 to vector<2xf32>
    %760 = arith.mulf %759, %718 : vector<2xf32>
    %761 = arith.addf %758, %760 : vector<2xf32>
    %762 = vector.broadcast %67 : f32 to vector<2xf32>
    %763 = arith.mulf %762, %719 : vector<2xf32>
    %764 = arith.addf %761, %763 : vector<2xf32>
    %765 = vector.broadcast %68 : f32 to vector<2xf32>
    %766 = arith.mulf %765, %716 : vector<2xf32>
    %767 = vector.broadcast %69 : f32 to vector<2xf32>
    %768 = arith.mulf %767, %717 : vector<2xf32>
    %769 = arith.addf %766, %768 : vector<2xf32>
    %770 = vector.broadcast %70 : f32 to vector<2xf32>
    %771 = arith.mulf %770, %718 : vector<2xf32>
    %772 = arith.addf %769, %771 : vector<2xf32>
    %773 = vector.broadcast %71 : f32 to vector<2xf32>
    %774 = arith.mulf %773, %719 : vector<2xf32>
    %775 = arith.addf %772, %774 : vector<2xf32>
    %c0_304 = arith.constant 0 : index
    %c7_305 = arith.constant 7 : index
    %c0_306 = arith.constant 0 : index
    %776 = vector.load %arg12[%c0_304, %c7_305, %c0_306] : memref<4x8x2xf32, #tpu.memory_space<vmem>>, vector<1x1x2xf32>
    %777 = vector.shape_cast %776 : vector<1x1x2xf32> to vector<2xf32>
    %778 = arith.addf %742, %777 : vector<2xf32>
    %c1_307 = arith.constant 1 : index
    %c7_308 = arith.constant 7 : index
    %c0_309 = arith.constant 0 : index
    %779 = vector.load %arg12[%c1_307, %c7_308, %c0_309] : memref<4x8x2xf32, #tpu.memory_space<vmem>>, vector<1x1x2xf32>
    %780 = vector.shape_cast %779 : vector<1x1x2xf32> to vector<2xf32>
    %781 = arith.addf %753, %780 : vector<2xf32>
    %c2_310 = arith.constant 2 : index
    %c7_311 = arith.constant 7 : index
    %c0_312 = arith.constant 0 : index
    %782 = vector.load %arg12[%c2_310, %c7_311, %c0_312] : memref<4x8x2xf32, #tpu.memory_space<vmem>>, vector<1x1x2xf32>
    %783 = vector.shape_cast %782 : vector<1x1x2xf32> to vector<2xf32>
    %784 = arith.addf %764, %783 : vector<2xf32>
    %c3_313 = arith.constant 3 : index
    %c7_314 = arith.constant 7 : index
    %c0_315 = arith.constant 0 : index
    %785 = vector.load %arg12[%c3_313, %c7_314, %c0_315] : memref<4x8x2xf32, #tpu.memory_space<vmem>>, vector<1x1x2xf32>
    %786 = vector.shape_cast %785 : vector<1x1x2xf32> to vector<2xf32>
    %787 = arith.addf %775, %786 : vector<2xf32>
    %c0_316 = arith.constant 0 : index
    %c6_317 = arith.constant 6 : index
    %c0_318 = arith.constant 0 : index
    %788 = vector.load %arg10[%c0_316, %c6_317, %c0_318] : memref<4x8x2xf32, #tpu.memory_space<vmem>>, vector<1x1x2xf32>
    %789 = vector.shape_cast %788 : vector<1x1x2xf32> to vector<2xf32>
    %790 = vector.shape_cast %778 : vector<2xf32> to vector<1x1x2xf32>
    tpu.vector_store %arg10[%c0_316, %c6_317, %c0_318], %790 {strides = array<i32>} : memref<4x8x2xf32, #tpu.memory_space<vmem>>, vector<1x1x2xf32>,
    %c1_319 = arith.constant 1 : index
    %c6_320 = arith.constant 6 : index
    %c0_321 = arith.constant 0 : index
    %791 = vector.load %arg10[%c1_319, %c6_320, %c0_321] : memref<4x8x2xf32, #tpu.memory_space<vmem>>, vector<1x1x2xf32>
    %792 = vector.shape_cast %791 : vector<1x1x2xf32> to vector<2xf32>
    %793 = vector.shape_cast %781 : vector<2xf32> to vector<1x1x2xf32>
    tpu.vector_store %arg10[%c1_319, %c6_320, %c0_321], %793 {strides = array<i32>} : memref<4x8x2xf32, #tpu.memory_space<vmem>>, vector<1x1x2xf32>,
    %c2_322 = arith.constant 2 : index
    %c6_323 = arith.constant 6 : index
    %c0_324 = arith.constant 0 : index
    %794 = vector.load %arg10[%c2_322, %c6_323, %c0_324] : memref<4x8x2xf32, #tpu.memory_space<vmem>>, vector<1x1x2xf32>
    %795 = vector.shape_cast %794 : vector<1x1x2xf32> to vector<2xf32>
    %796 = vector.shape_cast %784 : vector<2xf32> to vector<1x1x2xf32>
    tpu.vector_store %arg10[%c2_322, %c6_323, %c0_324], %796 {strides = array<i32>} : memref<4x8x2xf32, #tpu.memory_space<vmem>>, vector<1x1x2xf32>,
    %c3_325 = arith.constant 3 : index
    %c6_326 = arith.constant 6 : index
    %c0_327 = arith.constant 0 : index
    %797 = vector.load %arg10[%c3_325, %c6_326, %c0_327] : memref<4x8x2xf32, #tpu.memory_space<vmem>>, vector<1x1x2xf32>
    %798 = vector.shape_cast %797 : vector<1x1x2xf32> to vector<2xf32>
    %799 = vector.shape_cast %787 : vector<2xf32> to vector<1x1x2xf32>
    tpu.vector_store %arg10[%c3_325, %c6_326, %c0_327], %799 {strides = array<i32>} : memref<4x8x2xf32, #tpu.memory_space<vmem>>, vector<1x1x2xf32>,
    %800 = vector.broadcast %56 : f32 to vector<2xf32>
    %801 = arith.mulf %800, %778 : vector<2xf32>
    %802 = vector.broadcast %57 : f32 to vector<2xf32>
    %803 = arith.mulf %802, %781 : vector<2xf32>
    %804 = arith.addf %801, %803 : vector<2xf32>
    %805 = vector.broadcast %58 : f32 to vector<2xf32>
    %806 = arith.mulf %805, %784 : vector<2xf32>
    %807 = arith.addf %804, %806 : vector<2xf32>
    %808 = vector.broadcast %59 : f32 to vector<2xf32>
    %809 = arith.mulf %808, %787 : vector<2xf32>
    %810 = arith.addf %807, %809 : vector<2xf32>
    %811 = vector.broadcast %60 : f32 to vector<2xf32>
    %812 = arith.mulf %811, %778 : vector<2xf32>
    %813 = vector.broadcast %61 : f32 to vector<2xf32>
    %814 = arith.mulf %813, %781 : vector<2xf32>
    %815 = arith.addf %812, %814 : vector<2xf32>
    %816 = vector.broadcast %62 : f32 to vector<2xf32>
    %817 = arith.mulf %816, %784 : vector<2xf32>
    %818 = arith.addf %815, %817 : vector<2xf32>
    %819 = vector.broadcast %63 : f32 to vector<2xf32>
    %820 = arith.mulf %819, %787 : vector<2xf32>
    %821 = arith.addf %818, %820 : vector<2xf32>
    %822 = vector.broadcast %64 : f32 to vector<2xf32>
    %823 = arith.mulf %822, %778 : vector<2xf32>
    %824 = vector.broadcast %65 : f32 to vector<2xf32>
    %825 = arith.mulf %824, %781 : vector<2xf32>
    %826 = arith.addf %823, %825 : vector<2xf32>
    %827 = vector.broadcast %66 : f32 to vector<2xf32>
    %828 = arith.mulf %827, %784 : vector<2xf32>
    %829 = arith.addf %826, %828 : vector<2xf32>
    %830 = vector.broadcast %67 : f32 to vector<2xf32>
    %831 = arith.mulf %830, %787 : vector<2xf32>
    %832 = arith.addf %829, %831 : vector<2xf32>
    %833 = vector.broadcast %68 : f32 to vector<2xf32>
    %834 = arith.mulf %833, %778 : vector<2xf32>
    %835 = vector.broadcast %69 : f32 to vector<2xf32>
    %836 = arith.mulf %835, %781 : vector<2xf32>
    %837 = arith.addf %834, %836 : vector<2xf32>
    %838 = vector.broadcast %70 : f32 to vector<2xf32>
    %839 = arith.mulf %838, %784 : vector<2xf32>
    %840 = arith.addf %837, %839 : vector<2xf32>
    %841 = vector.broadcast %71 : f32 to vector<2xf32>
    %842 = arith.mulf %841, %787 : vector<2xf32>
    %843 = arith.addf %840, %842 : vector<2xf32>
    %c0_328 = arith.constant 0 : index
    %c6_329 = arith.constant 6 : index
    %c0_330 = arith.constant 0 : index
    %844 = vector.load %arg12[%c0_328, %c6_329, %c0_330] : memref<4x8x2xf32, #tpu.memory_space<vmem>>, vector<1x1x2xf32>
    %845 = vector.shape_cast %844 : vector<1x1x2xf32> to vector<2xf32>
    %846 = arith.addf %810, %845 : vector<2xf32>
    %c1_331 = arith.constant 1 : index
    %c6_332 = arith.constant 6 : index
    %c0_333 = arith.constant 0 : index
    %847 = vector.load %arg12[%c1_331, %c6_332, %c0_333] : memref<4x8x2xf32, #tpu.memory_space<vmem>>, vector<1x1x2xf32>
    %848 = vector.shape_cast %847 : vector<1x1x2xf32> to vector<2xf32>
    %849 = arith.addf %821, %848 : vector<2xf32>
    %c2_334 = arith.constant 2 : index
    %c6_335 = arith.constant 6 : index
    %c0_336 = arith.constant 0 : index
    %850 = vector.load %arg12[%c2_334, %c6_335, %c0_336] : memref<4x8x2xf32, #tpu.memory_space<vmem>>, vector<1x1x2xf32>
    %851 = vector.shape_cast %850 : vector<1x1x2xf32> to vector<2xf32>
    %852 = arith.addf %832, %851 : vector<2xf32>
    %c3_337 = arith.constant 3 : index
    %c6_338 = arith.constant 6 : index
    %c0_339 = arith.constant 0 : index
    %853 = vector.load %arg12[%c3_337, %c6_338, %c0_339] : memref<4x8x2xf32, #tpu.memory_space<vmem>>, vector<1x1x2xf32>
    %854 = vector.shape_cast %853 : vector<1x1x2xf32> to vector<2xf32>
    %855 = arith.addf %843, %854 : vector<2xf32>
    %c0_340 = arith.constant 0 : index
    %c5_341 = arith.constant 5 : index
    %c0_342 = arith.constant 0 : index
    %856 = vector.load %arg10[%c0_340, %c5_341, %c0_342] : memref<4x8x2xf32, #tpu.memory_space<vmem>>, vector<1x1x2xf32>
    %857 = vector.shape_cast %856 : vector<1x1x2xf32> to vector<2xf32>
    %858 = vector.shape_cast %846 : vector<2xf32> to vector<1x1x2xf32>
    tpu.vector_store %arg10[%c0_340, %c5_341, %c0_342], %858 {strides = array<i32>} : memref<4x8x2xf32, #tpu.memory_space<vmem>>, vector<1x1x2xf32>,
    %c1_343 = arith.constant 1 : index
    %c5_344 = arith.constant 5 : index
    %c0_345 = arith.constant 0 : index
    %859 = vector.load %arg10[%c1_343, %c5_344, %c0_345] : memref<4x8x2xf32, #tpu.memory_space<vmem>>, vector<1x1x2xf32>
    %860 = vector.shape_cast %859 : vector<1x1x2xf32> to vector<2xf32>
    %861 = vector.shape_cast %849 : vector<2xf32> to vector<1x1x2xf32>
    tpu.vector_store %arg10[%c1_343, %c5_344, %c0_345], %861 {strides = array<i32>} : memref<4x8x2xf32, #tpu.memory_space<vmem>>, vector<1x1x2xf32>,
    %c2_346 = arith.constant 2 : index
    %c5_347 = arith.constant 5 : index
    %c0_348 = arith.constant 0 : index
    %862 = vector.load %arg10[%c2_346, %c5_347, %c0_348] : memref<4x8x2xf32, #tpu.memory_space<vmem>>, vector<1x1x2xf32>
    %863 = vector.shape_cast %862 : vector<1x1x2xf32> to vector<2xf32>
    %864 = vector.shape_cast %852 : vector<2xf32> to vector<1x1x2xf32>
    tpu.vector_store %arg10[%c2_346, %c5_347, %c0_348], %864 {strides = array<i32>} : memref<4x8x2xf32, #tpu.memory_space<vmem>>, vector<1x1x2xf32>,
    %c3_349 = arith.constant 3 : index
    %c5_350 = arith.constant 5 : index
    %c0_351 = arith.constant 0 : index
    %865 = vector.load %arg10[%c3_349, %c5_350, %c0_351] : memref<4x8x2xf32, #tpu.memory_space<vmem>>, vector<1x1x2xf32>
    %866 = vector.shape_cast %865 : vector<1x1x2xf32> to vector<2xf32>
    %867 = vector.shape_cast %855 : vector<2xf32> to vector<1x1x2xf32>
    tpu.vector_store %arg10[%c3_349, %c5_350, %c0_351], %867 {strides = array<i32>} : memref<4x8x2xf32, #tpu.memory_space<vmem>>, vector<1x1x2xf32>,
    %868 = vector.broadcast %56 : f32 to vector<2xf32>
    %869 = arith.mulf %868, %846 : vector<2xf32>
    %870 = vector.broadcast %57 : f32 to vector<2xf32>
    %871 = arith.mulf %870, %849 : vector<2xf32>
    %872 = arith.addf %869, %871 : vector<2xf32>
    %873 = vector.broadcast %58 : f32 to vector<2xf32>
    %874 = arith.mulf %873, %852 : vector<2xf32>
    %875 = arith.addf %872, %874 : vector<2xf32>
    %876 = vector.broadcast %59 : f32 to vector<2xf32>
    %877 = arith.mulf %876, %855 : vector<2xf32>
    %878 = arith.addf %875, %877 : vector<2xf32>
    %879 = vector.broadcast %60 : f32 to vector<2xf32>
    %880 = arith.mulf %879, %846 : vector<2xf32>
    %881 = vector.broadcast %61 : f32 to vector<2xf32>
    %882 = arith.mulf %881, %849 : vector<2xf32>
    %883 = arith.addf %880, %882 : vector<2xf32>
    %884 = vector.broadcast %62 : f32 to vector<2xf32>
    %885 = arith.mulf %884, %852 : vector<2xf32>
    %886 = arith.addf %883, %885 : vector<2xf32>
    %887 = vector.broadcast %63 : f32 to vector<2xf32>
    %888 = arith.mulf %887, %855 : vector<2xf32>
    %889 = arith.addf %886, %888 : vector<2xf32>
    %890 = vector.broadcast %64 : f32 to vector<2xf32>
    %891 = arith.mulf %890, %846 : vector<2xf32>
    %892 = vector.broadcast %65 : f32 to vector<2xf32>
    %893 = arith.mulf %892, %849 : vector<2xf32>
    %894 = arith.addf %891, %893 : vector<2xf32>
    %895 = vector.broadcast %66 : f32 to vector<2xf32>
    %896 = arith.mulf %895, %852 : vector<2xf32>
    %897 = arith.addf %894, %896 : vector<2xf32>
    %898 = vector.broadcast %67 : f32 to vector<2xf32>
    %899 = arith.mulf %898, %855 : vector<2xf32>
    %900 = arith.addf %897, %899 : vector<2xf32>
    %901 = vector.broadcast %68 : f32 to vector<2xf32>
    %902 = arith.mulf %901, %846 : vector<2xf32>
    %903 = vector.broadcast %69 : f32 to vector<2xf32>
    %904 = arith.mulf %903, %849 : vector<2xf32>
    %905 = arith.addf %902, %904 : vector<2xf32>
    %906 = vector.broadcast %70 : f32 to vector<2xf32>
    %907 = arith.mulf %906, %852 : vector<2xf32>
    %908 = arith.addf %905, %907 : vector<2xf32>
    %909 = vector.broadcast %71 : f32 to vector<2xf32>
    %910 = arith.mulf %909, %855 : vector<2xf32>
    %911 = arith.addf %908, %910 : vector<2xf32>
    %c0_352 = arith.constant 0 : index
    %c5_353 = arith.constant 5 : index
    %c0_354 = arith.constant 0 : index
    %912 = vector.load %arg12[%c0_352, %c5_353, %c0_354] : memref<4x8x2xf32, #tpu.memory_space<vmem>>, vector<1x1x2xf32>
    %913 = vector.shape_cast %912 : vector<1x1x2xf32> to vector<2xf32>
    %914 = arith.addf %878, %913 : vector<2xf32>
    %c1_355 = arith.constant 1 : index
    %c5_356 = arith.constant 5 : index
    %c0_357 = arith.constant 0 : index
    %915 = vector.load %arg12[%c1_355, %c5_356, %c0_357] : memref<4x8x2xf32, #tpu.memory_space<vmem>>, vector<1x1x2xf32>
    %916 = vector.shape_cast %915 : vector<1x1x2xf32> to vector<2xf32>
    %917 = arith.addf %889, %916 : vector<2xf32>
    %c2_358 = arith.constant 2 : index
    %c5_359 = arith.constant 5 : index
    %c0_360 = arith.constant 0 : index
    %918 = vector.load %arg12[%c2_358, %c5_359, %c0_360] : memref<4x8x2xf32, #tpu.memory_space<vmem>>, vector<1x1x2xf32>
    %919 = vector.shape_cast %918 : vector<1x1x2xf32> to vector<2xf32>
    %920 = arith.addf %900, %919 : vector<2xf32>
    %c3_361 = arith.constant 3 : index
    %c5_362 = arith.constant 5 : index
    %c0_363 = arith.constant 0 : index
    %921 = vector.load %arg12[%c3_361, %c5_362, %c0_363] : memref<4x8x2xf32, #tpu.memory_space<vmem>>, vector<1x1x2xf32>
    %922 = vector.shape_cast %921 : vector<1x1x2xf32> to vector<2xf32>
    %923 = arith.addf %911, %922 : vector<2xf32>
    %c0_364 = arith.constant 0 : index
    %c4_365 = arith.constant 4 : index
    %c0_366 = arith.constant 0 : index
    %924 = vector.load %arg10[%c0_364, %c4_365, %c0_366] : memref<4x8x2xf32, #tpu.memory_space<vmem>>, vector<1x1x2xf32>
    %925 = vector.shape_cast %924 : vector<1x1x2xf32> to vector<2xf32>
    %926 = vector.shape_cast %914 : vector<2xf32> to vector<1x1x2xf32>
    tpu.vector_store %arg10[%c0_364, %c4_365, %c0_366], %926 {strides = array<i32>} : memref<4x8x2xf32, #tpu.memory_space<vmem>>, vector<1x1x2xf32>,
    %c1_367 = arith.constant 1 : index
    %c4_368 = arith.constant 4 : index
    %c0_369 = arith.constant 0 : index
    %927 = vector.load %arg10[%c1_367, %c4_368, %c0_369] : memref<4x8x2xf32, #tpu.memory_space<vmem>>, vector<1x1x2xf32>
    %928 = vector.shape_cast %927 : vector<1x1x2xf32> to vector<2xf32>
    %929 = vector.shape_cast %917 : vector<2xf32> to vector<1x1x2xf32>
    tpu.vector_store %arg10[%c1_367, %c4_368, %c0_369], %929 {strides = array<i32>} : memref<4x8x2xf32, #tpu.memory_space<vmem>>, vector<1x1x2xf32>,
    %c2_370 = arith.constant 2 : index
    %c4_371 = arith.constant 4 : index
    %c0_372 = arith.constant 0 : index
    %930 = vector.load %arg10[%c2_370, %c4_371, %c0_372] : memref<4x8x2xf32, #tpu.memory_space<vmem>>, vector<1x1x2xf32>
    %931 = vector.shape_cast %930 : vector<1x1x2xf32> to vector<2xf32>
    %932 = vector.shape_cast %920 : vector<2xf32> to vector<1x1x2xf32>
    tpu.vector_store %arg10[%c2_370, %c4_371, %c0_372], %932 {strides = array<i32>} : memref<4x8x2xf32, #tpu.memory_space<vmem>>, vector<1x1x2xf32>,
    %c3_373 = arith.constant 3 : index
    %c4_374 = arith.constant 4 : index
    %c0_375 = arith.constant 0 : index
    %933 = vector.load %arg10[%c3_373, %c4_374, %c0_375] : memref<4x8x2xf32, #tpu.memory_space<vmem>>, vector<1x1x2xf32>
    %934 = vector.shape_cast %933 : vector<1x1x2xf32> to vector<2xf32>
    %935 = vector.shape_cast %923 : vector<2xf32> to vector<1x1x2xf32>
    tpu.vector_store %arg10[%c3_373, %c4_374, %c0_375], %935 {strides = array<i32>} : memref<4x8x2xf32, #tpu.memory_space<vmem>>, vector<1x1x2xf32>,
    %936 = vector.broadcast %56 : f32 to vector<2xf32>
    %937 = arith.mulf %936, %914 : vector<2xf32>
    %938 = vector.broadcast %57 : f32 to vector<2xf32>
    %939 = arith.mulf %938, %917 : vector<2xf32>
    %940 = arith.addf %937, %939 : vector<2xf32>
    %941 = vector.broadcast %58 : f32 to vector<2xf32>
    %942 = arith.mulf %941, %920 : vector<2xf32>
    %943 = arith.addf %940, %942 : vector<2xf32>
    %944 = vector.broadcast %59 : f32 to vector<2xf32>
    %945 = arith.mulf %944, %923 : vector<2xf32>
    %946 = arith.addf %943, %945 : vector<2xf32>
    %947 = vector.broadcast %60 : f32 to vector<2xf32>
    %948 = arith.mulf %947, %914 : vector<2xf32>
    %949 = vector.broadcast %61 : f32 to vector<2xf32>
    %950 = arith.mulf %949, %917 : vector<2xf32>
    %951 = arith.addf %948, %950 : vector<2xf32>
    %952 = vector.broadcast %62 : f32 to vector<2xf32>
    %953 = arith.mulf %952, %920 : vector<2xf32>
    %954 = arith.addf %951, %953 : vector<2xf32>
    %955 = vector.broadcast %63 : f32 to vector<2xf32>
    %956 = arith.mulf %955, %923 : vector<2xf32>
    %957 = arith.addf %954, %956 : vector<2xf32>
    %958 = vector.broadcast %64 : f32 to vector<2xf32>
    %959 = arith.mulf %958, %914 : vector<2xf32>
    %960 = vector.broadcast %65 : f32 to vector<2xf32>
    %961 = arith.mulf %960, %917 : vector<2xf32>
    %962 = arith.addf %959, %961 : vector<2xf32>
    %963 = vector.broadcast %66 : f32 to vector<2xf32>
    %964 = arith.mulf %963, %920 : vector<2xf32>
    %965 = arith.addf %962, %964 : vector<2xf32>
    %966 = vector.broadcast %67 : f32 to vector<2xf32>
    %967 = arith.mulf %966, %923 : vector<2xf32>
    %968 = arith.addf %965, %967 : vector<2xf32>
    %969 = vector.broadcast %68 : f32 to vector<2xf32>
    %970 = arith.mulf %969, %914 : vector<2xf32>
    %971 = vector.broadcast %69 : f32 to vector<2xf32>
    %972 = arith.mulf %971, %917 : vector<2xf32>
    %973 = arith.addf %970, %972 : vector<2xf32>
    %974 = vector.broadcast %70 : f32 to vector<2xf32>
    %975 = arith.mulf %974, %920 : vector<2xf32>
    %976 = arith.addf %973, %975 : vector<2xf32>
    %977 = vector.broadcast %71 : f32 to vector<2xf32>
    %978 = arith.mulf %977, %923 : vector<2xf32>
    %979 = arith.addf %976, %978 : vector<2xf32>
    %c0_376 = arith.constant 0 : index
    %c4_377 = arith.constant 4 : index
    %c0_378 = arith.constant 0 : index
    %980 = vector.load %arg12[%c0_376, %c4_377, %c0_378] : memref<4x8x2xf32, #tpu.memory_space<vmem>>, vector<1x1x2xf32>
    %981 = vector.shape_cast %980 : vector<1x1x2xf32> to vector<2xf32>
    %982 = arith.addf %946, %981 : vector<2xf32>
    %c1_379 = arith.constant 1 : index
    %c4_380 = arith.constant 4 : index
    %c0_381 = arith.constant 0 : index
    %983 = vector.load %arg12[%c1_379, %c4_380, %c0_381] : memref<4x8x2xf32, #tpu.memory_space<vmem>>, vector<1x1x2xf32>
    %984 = vector.shape_cast %983 : vector<1x1x2xf32> to vector<2xf32>
    %985 = arith.addf %957, %984 : vector<2xf32>
    %c2_382 = arith.constant 2 : index
    %c4_383 = arith.constant 4 : index
    %c0_384 = arith.constant 0 : index
    %986 = vector.load %arg12[%c2_382, %c4_383, %c0_384] : memref<4x8x2xf32, #tpu.memory_space<vmem>>, vector<1x1x2xf32>
    %987 = vector.shape_cast %986 : vector<1x1x2xf32> to vector<2xf32>
    %988 = arith.addf %968, %987 : vector<2xf32>
    %c3_385 = arith.constant 3 : index
    %c4_386 = arith.constant 4 : index
    %c0_387 = arith.constant 0 : index
    %989 = vector.load %arg12[%c3_385, %c4_386, %c0_387] : memref<4x8x2xf32, #tpu.memory_space<vmem>>, vector<1x1x2xf32>
    %990 = vector.shape_cast %989 : vector<1x1x2xf32> to vector<2xf32>
    %991 = arith.addf %979, %990 : vector<2xf32>
    %c0_388 = arith.constant 0 : index
    %c3_389 = arith.constant 3 : index
    %c0_390 = arith.constant 0 : index
    %992 = vector.load %arg10[%c0_388, %c3_389, %c0_390] : memref<4x8x2xf32, #tpu.memory_space<vmem>>, vector<1x1x2xf32>
    %993 = vector.shape_cast %992 : vector<1x1x2xf32> to vector<2xf32>
    %994 = vector.shape_cast %982 : vector<2xf32> to vector<1x1x2xf32>
    tpu.vector_store %arg10[%c0_388, %c3_389, %c0_390], %994 {strides = array<i32>} : memref<4x8x2xf32, #tpu.memory_space<vmem>>, vector<1x1x2xf32>,
    %c1_391 = arith.constant 1 : index
    %c3_392 = arith.constant 3 : index
    %c0_393 = arith.constant 0 : index
    %995 = vector.load %arg10[%c1_391, %c3_392, %c0_393] : memref<4x8x2xf32, #tpu.memory_space<vmem>>, vector<1x1x2xf32>
    %996 = vector.shape_cast %995 : vector<1x1x2xf32> to vector<2xf32>
    %997 = vector.shape_cast %985 : vector<2xf32> to vector<1x1x2xf32>
    tpu.vector_store %arg10[%c1_391, %c3_392, %c0_393], %997 {strides = array<i32>} : memref<4x8x2xf32, #tpu.memory_space<vmem>>, vector<1x1x2xf32>,
    %c2_394 = arith.constant 2 : index
    %c3_395 = arith.constant 3 : index
    %c0_396 = arith.constant 0 : index
    %998 = vector.load %arg10[%c2_394, %c3_395, %c0_396] : memref<4x8x2xf32, #tpu.memory_space<vmem>>, vector<1x1x2xf32>
    %999 = vector.shape_cast %998 : vector<1x1x2xf32> to vector<2xf32>
    %1000 = vector.shape_cast %988 : vector<2xf32> to vector<1x1x2xf32>
    tpu.vector_store %arg10[%c2_394, %c3_395, %c0_396], %1000 {strides = array<i32>} : memref<4x8x2xf32, #tpu.memory_space<vmem>>, vector<1x1x2xf32>,
    %c3_397 = arith.constant 3 : index
    %c3_398 = arith.constant 3 : index
    %c0_399 = arith.constant 0 : index
    %1001 = vector.load %arg10[%c3_397, %c3_398, %c0_399] : memref<4x8x2xf32, #tpu.memory_space<vmem>>, vector<1x1x2xf32>
    %1002 = vector.shape_cast %1001 : vector<1x1x2xf32> to vector<2xf32>
    %1003 = vector.shape_cast %991 : vector<2xf32> to vector<1x1x2xf32>
    tpu.vector_store %arg10[%c3_397, %c3_398, %c0_399], %1003 {strides = array<i32>} : memref<4x8x2xf32, #tpu.memory_space<vmem>>, vector<1x1x2xf32>,
    %1004 = vector.broadcast %56 : f32 to vector<2xf32>
    %1005 = arith.mulf %1004, %982 : vector<2xf32>
    %1006 = vector.broadcast %57 : f32 to vector<2xf32>
    %1007 = arith.mulf %1006, %985 : vector<2xf32>
    %1008 = arith.addf %1005, %1007 : vector<2xf32>
    %1009 = vector.broadcast %58 : f32 to vector<2xf32>
    %1010 = arith.mulf %1009, %988 : vector<2xf32>
    %1011 = arith.addf %1008, %1010 : vector<2xf32>
    %1012 = vector.broadcast %59 : f32 to vector<2xf32>
    %1013 = arith.mulf %1012, %991 : vector<2xf32>
    %1014 = arith.addf %1011, %1013 : vector<2xf32>
    %1015 = vector.broadcast %60 : f32 to vector<2xf32>
    %1016 = arith.mulf %1015, %982 : vector<2xf32>
    %1017 = vector.broadcast %61 : f32 to vector<2xf32>
    %1018 = arith.mulf %1017, %985 : vector<2xf32>
    %1019 = arith.addf %1016, %1018 : vector<2xf32>
    %1020 = vector.broadcast %62 : f32 to vector<2xf32>
    %1021 = arith.mulf %1020, %988 : vector<2xf32>
    %1022 = arith.addf %1019, %1021 : vector<2xf32>
    %1023 = vector.broadcast %63 : f32 to vector<2xf32>
    %1024 = arith.mulf %1023, %991 : vector<2xf32>
    %1025 = arith.addf %1022, %1024 : vector<2xf32>
    %1026 = vector.broadcast %64 : f32 to vector<2xf32>
    %1027 = arith.mulf %1026, %982 : vector<2xf32>
    %1028 = vector.broadcast %65 : f32 to vector<2xf32>
    %1029 = arith.mulf %1028, %985 : vector<2xf32>
    %1030 = arith.addf %1027, %1029 : vector<2xf32>
    %1031 = vector.broadcast %66 : f32 to vector<2xf32>
    %1032 = arith.mulf %1031, %988 : vector<2xf32>
    %1033 = arith.addf %1030, %1032 : vector<2xf32>
    %1034 = vector.broadcast %67 : f32 to vector<2xf32>
    %1035 = arith.mulf %1034, %991 : vector<2xf32>
    %1036 = arith.addf %1033, %1035 : vector<2xf32>
    %1037 = vector.broadcast %68 : f32 to vector<2xf32>
    %1038 = arith.mulf %1037, %982 : vector<2xf32>
    %1039 = vector.broadcast %69 : f32 to vector<2xf32>
    %1040 = arith.mulf %1039, %985 : vector<2xf32>
    %1041 = arith.addf %1038, %1040 : vector<2xf32>
    %1042 = vector.broadcast %70 : f32 to vector<2xf32>
    %1043 = arith.mulf %1042, %988 : vector<2xf32>
    %1044 = arith.addf %1041, %1043 : vector<2xf32>
    %1045 = vector.broadcast %71 : f32 to vector<2xf32>
    %1046 = arith.mulf %1045, %991 : vector<2xf32>
    %1047 = arith.addf %1044, %1046 : vector<2xf32>
    %c0_400 = arith.constant 0 : index
    %c3_401 = arith.constant 3 : index
    %c0_402 = arith.constant 0 : index
    %1048 = vector.load %arg12[%c0_400, %c3_401, %c0_402] : memref<4x8x2xf32, #tpu.memory_space<vmem>>, vector<1x1x2xf32>
    %1049 = vector.shape_cast %1048 : vector<1x1x2xf32> to vector<2xf32>
    %1050 = arith.addf %1014, %1049 : vector<2xf32>
    %c1_403 = arith.constant 1 : index
    %c3_404 = arith.constant 3 : index
    %c0_405 = arith.constant 0 : index
    %1051 = vector.load %arg12[%c1_403, %c3_404, %c0_405] : memref<4x8x2xf32, #tpu.memory_space<vmem>>, vector<1x1x2xf32>
    %1052 = vector.shape_cast %1051 : vector<1x1x2xf32> to vector<2xf32>
    %1053 = arith.addf %1025, %1052 : vector<2xf32>
    %c2_406 = arith.constant 2 : index
    %c3_407 = arith.constant 3 : index
    %c0_408 = arith.constant 0 : index
    %1054 = vector.load %arg12[%c2_406, %c3_407, %c0_408] : memref<4x8x2xf32, #tpu.memory_space<vmem>>, vector<1x1x2xf32>
    %1055 = vector.shape_cast %1054 : vector<1x1x2xf32> to vector<2xf32>
    %1056 = arith.addf %1036, %1055 : vector<2xf32>
    %c3_409 = arith.constant 3 : index
    %c3_410 = arith.constant 3 : index
    %c0_411 = arith.constant 0 : index
    %1057 = vector.load %arg12[%c3_409, %c3_410, %c0_411] : memref<4x8x2xf32, #tpu.memory_space<vmem>>, vector<1x1x2xf32>
    %1058 = vector.shape_cast %1057 : vector<1x1x2xf32> to vector<2xf32>
    %1059 = arith.addf %1047, %1058 : vector<2xf32>
    %c0_412 = arith.constant 0 : index
    %c2_413 = arith.constant 2 : index
    %c0_414 = arith.constant 0 : index
    %1060 = vector.load %arg10[%c0_412, %c2_413, %c0_414] : memref<4x8x2xf32, #tpu.memory_space<vmem>>, vector<1x1x2xf32>
    %1061 = vector.shape_cast %1060 : vector<1x1x2xf32> to vector<2xf32>
    %1062 = vector.shape_cast %1050 : vector<2xf32> to vector<1x1x2xf32>
    tpu.vector_store %arg10[%c0_412, %c2_413, %c0_414], %1062 {strides = array<i32>} : memref<4x8x2xf32, #tpu.memory_space<vmem>>, vector<1x1x2xf32>,
    %c1_415 = arith.constant 1 : index
    %c2_416 = arith.constant 2 : index
    %c0_417 = arith.constant 0 : index
    %1063 = vector.load %arg10[%c1_415, %c2_416, %c0_417] : memref<4x8x2xf32, #tpu.memory_space<vmem>>, vector<1x1x2xf32>
    %1064 = vector.shape_cast %1063 : vector<1x1x2xf32> to vector<2xf32>
    %1065 = vector.shape_cast %1053 : vector<2xf32> to vector<1x1x2xf32>
    tpu.vector_store %arg10[%c1_415, %c2_416, %c0_417], %1065 {strides = array<i32>} : memref<4x8x2xf32, #tpu.memory_space<vmem>>, vector<1x1x2xf32>,
    %c2_418 = arith.constant 2 : index
    %c2_419 = arith.constant 2 : index
    %c0_420 = arith.constant 0 : index
    %1066 = vector.load %arg10[%c2_418, %c2_419, %c0_420] : memref<4x8x2xf32, #tpu.memory_space<vmem>>, vector<1x1x2xf32>
    %1067 = vector.shape_cast %1066 : vector<1x1x2xf32> to vector<2xf32>
    %1068 = vector.shape_cast %1056 : vector<2xf32> to vector<1x1x2xf32>
    tpu.vector_store %arg10[%c2_418, %c2_419, %c0_420], %1068 {strides = array<i32>} : memref<4x8x2xf32, #tpu.memory_space<vmem>>, vector<1x1x2xf32>,
    %c3_421 = arith.constant 3 : index
    %c2_422 = arith.constant 2 : index
    %c0_423 = arith.constant 0 : index
    %1069 = vector.load %arg10[%c3_421, %c2_422, %c0_423] : memref<4x8x2xf32, #tpu.memory_space<vmem>>, vector<1x1x2xf32>
    %1070 = vector.shape_cast %1069 : vector<1x1x2xf32> to vector<2xf32>
    %1071 = vector.shape_cast %1059 : vector<2xf32> to vector<1x1x2xf32>
    tpu.vector_store %arg10[%c3_421, %c2_422, %c0_423], %1071 {strides = array<i32>} : memref<4x8x2xf32, #tpu.memory_space<vmem>>, vector<1x1x2xf32>,
    %1072 = vector.broadcast %56 : f32 to vector<2xf32>
    %1073 = arith.mulf %1072, %1050 : vector<2xf32>
    %1074 = vector.broadcast %57 : f32 to vector<2xf32>
    %1075 = arith.mulf %1074, %1053 : vector<2xf32>
    %1076 = arith.addf %1073, %1075 : vector<2xf32>
    %1077 = vector.broadcast %58 : f32 to vector<2xf32>
    %1078 = arith.mulf %1077, %1056 : vector<2xf32>
    %1079 = arith.addf %1076, %1078 : vector<2xf32>
    %1080 = vector.broadcast %59 : f32 to vector<2xf32>
    %1081 = arith.mulf %1080, %1059 : vector<2xf32>
    %1082 = arith.addf %1079, %1081 : vector<2xf32>
    %1083 = vector.broadcast %60 : f32 to vector<2xf32>
    %1084 = arith.mulf %1083, %1050 : vector<2xf32>
    %1085 = vector.broadcast %61 : f32 to vector<2xf32>
    %1086 = arith.mulf %1085, %1053 : vector<2xf32>
    %1087 = arith.addf %1084, %1086 : vector<2xf32>
    %1088 = vector.broadcast %62 : f32 to vector<2xf32>
    %1089 = arith.mulf %1088, %1056 : vector<2xf32>
    %1090 = arith.addf %1087, %1089 : vector<2xf32>
    %1091 = vector.broadcast %63 : f32 to vector<2xf32>
    %1092 = arith.mulf %1091, %1059 : vector<2xf32>
    %1093 = arith.addf %1090, %1092 : vector<2xf32>
    %1094 = vector.broadcast %64 : f32 to vector<2xf32>
    %1095 = arith.mulf %1094, %1050 : vector<2xf32>
    %1096 = vector.broadcast %65 : f32 to vector<2xf32>
    %1097 = arith.mulf %1096, %1053 : vector<2xf32>
    %1098 = arith.addf %1095, %1097 : vector<2xf32>
    %1099 = vector.broadcast %66 : f32 to vector<2xf32>
    %1100 = arith.mulf %1099, %1056 : vector<2xf32>
    %1101 = arith.addf %1098, %1100 : vector<2xf32>
    %1102 = vector.broadcast %67 : f32 to vector<2xf32>
    %1103 = arith.mulf %1102, %1059 : vector<2xf32>
    %1104 = arith.addf %1101, %1103 : vector<2xf32>
    %1105 = vector.broadcast %68 : f32 to vector<2xf32>
    %1106 = arith.mulf %1105, %1050 : vector<2xf32>
    %1107 = vector.broadcast %69 : f32 to vector<2xf32>
    %1108 = arith.mulf %1107, %1053 : vector<2xf32>
    %1109 = arith.addf %1106, %1108 : vector<2xf32>
    %1110 = vector.broadcast %70 : f32 to vector<2xf32>
    %1111 = arith.mulf %1110, %1056 : vector<2xf32>
    %1112 = arith.addf %1109, %1111 : vector<2xf32>
    %1113 = vector.broadcast %71 : f32 to vector<2xf32>
    %1114 = arith.mulf %1113, %1059 : vector<2xf32>
    %1115 = arith.addf %1112, %1114 : vector<2xf32>
    %c0_424 = arith.constant 0 : index
    %c2_425 = arith.constant 2 : index
    %c0_426 = arith.constant 0 : index
    %1116 = vector.load %arg12[%c0_424, %c2_425, %c0_426] : memref<4x8x2xf32, #tpu.memory_space<vmem>>, vector<1x1x2xf32>
    %1117 = vector.shape_cast %1116 : vector<1x1x2xf32> to vector<2xf32>
    %1118 = arith.addf %1082, %1117 : vector<2xf32>
    %c1_427 = arith.constant 1 : index
    %c2_428 = arith.constant 2 : index
    %c0_429 = arith.constant 0 : index
    %1119 = vector.load %arg12[%c1_427, %c2_428, %c0_429] : memref<4x8x2xf32, #tpu.memory_space<vmem>>, vector<1x1x2xf32>
    %1120 = vector.shape_cast %1119 : vector<1x1x2xf32> to vector<2xf32>
    %1121 = arith.addf %1093, %1120 : vector<2xf32>
    %c2_430 = arith.constant 2 : index
    %c2_431 = arith.constant 2 : index
    %c0_432 = arith.constant 0 : index
    %1122 = vector.load %arg12[%c2_430, %c2_431, %c0_432] : memref<4x8x2xf32, #tpu.memory_space<vmem>>, vector<1x1x2xf32>
    %1123 = vector.shape_cast %1122 : vector<1x1x2xf32> to vector<2xf32>
    %1124 = arith.addf %1104, %1123 : vector<2xf32>
    %c3_433 = arith.constant 3 : index
    %c2_434 = arith.constant 2 : index
    %c0_435 = arith.constant 0 : index
    %1125 = vector.load %arg12[%c3_433, %c2_434, %c0_435] : memref<4x8x2xf32, #tpu.memory_space<vmem>>, vector<1x1x2xf32>
    %1126 = vector.shape_cast %1125 : vector<1x1x2xf32> to vector<2xf32>
    %1127 = arith.addf %1115, %1126 : vector<2xf32>
    %c0_436 = arith.constant 0 : index
    %c1_437 = arith.constant 1 : index
    %c0_438 = arith.constant 0 : index
    %1128 = vector.load %arg10[%c0_436, %c1_437, %c0_438] : memref<4x8x2xf32, #tpu.memory_space<vmem>>, vector<1x1x2xf32>
    %1129 = vector.shape_cast %1128 : vector<1x1x2xf32> to vector<2xf32>
    %1130 = vector.shape_cast %1118 : vector<2xf32> to vector<1x1x2xf32>
    tpu.vector_store %arg10[%c0_436, %c1_437, %c0_438], %1130 {strides = array<i32>} : memref<4x8x2xf32, #tpu.memory_space<vmem>>, vector<1x1x2xf32>,
    %c1_439 = arith.constant 1 : index
    %c1_440 = arith.constant 1 : index
    %c0_441 = arith.constant 0 : index
    %1131 = vector.load %arg10[%c1_439, %c1_440, %c0_441] : memref<4x8x2xf32, #tpu.memory_space<vmem>>, vector<1x1x2xf32>
    %1132 = vector.shape_cast %1131 : vector<1x1x2xf32> to vector<2xf32>
    %1133 = vector.shape_cast %1121 : vector<2xf32> to vector<1x1x2xf32>
    tpu.vector_store %arg10[%c1_439, %c1_440, %c0_441], %1133 {strides = array<i32>} : memref<4x8x2xf32, #tpu.memory_space<vmem>>, vector<1x1x2xf32>,
    %c2_442 = arith.constant 2 : index
    %c1_443 = arith.constant 1 : index
    %c0_444 = arith.constant 0 : index
    %1134 = vector.load %arg10[%c2_442, %c1_443, %c0_444] : memref<4x8x2xf32, #tpu.memory_space<vmem>>, vector<1x1x2xf32>
    %1135 = vector.shape_cast %1134 : vector<1x1x2xf32> to vector<2xf32>
    %1136 = vector.shape_cast %1124 : vector<2xf32> to vector<1x1x2xf32>
    tpu.vector_store %arg10[%c2_442, %c1_443, %c0_444], %1136 {strides = array<i32>} : memref<4x8x2xf32, #tpu.memory_space<vmem>>, vector<1x1x2xf32>,
    %c3_445 = arith.constant 3 : index
    %c1_446 = arith.constant 1 : index
    %c0_447 = arith.constant 0 : index
    %1137 = vector.load %arg10[%c3_445, %c1_446, %c0_447] : memref<4x8x2xf32, #tpu.memory_space<vmem>>, vector<1x1x2xf32>
    %1138 = vector.shape_cast %1137 : vector<1x1x2xf32> to vector<2xf32>
    %1139 = vector.shape_cast %1127 : vector<2xf32> to vector<1x1x2xf32>
    tpu.vector_store %arg10[%c3_445, %c1_446, %c0_447], %1139 {strides = array<i32>} : memref<4x8x2xf32, #tpu.memory_space<vmem>>, vector<1x1x2xf32>,
    %1140 = vector.broadcast %56 : f32 to vector<2xf32>
    %1141 = arith.mulf %1140, %1118 : vector<2xf32>
    %1142 = vector.broadcast %57 : f32 to vector<2xf32>
    %1143 = arith.mulf %1142, %1121 : vector<2xf32>
    %1144 = arith.addf %1141, %1143 : vector<2xf32>
    %1145 = vector.broadcast %58 : f32 to vector<2xf32>
    %1146 = arith.mulf %1145, %1124 : vector<2xf32>
    %1147 = arith.addf %1144, %1146 : vector<2xf32>
    %1148 = vector.broadcast %59 : f32 to vector<2xf32>
    %1149 = arith.mulf %1148, %1127 : vector<2xf32>
    %1150 = arith.addf %1147, %1149 : vector<2xf32>
    %1151 = vector.broadcast %60 : f32 to vector<2xf32>
    %1152 = arith.mulf %1151, %1118 : vector<2xf32>
    %1153 = vector.broadcast %61 : f32 to vector<2xf32>
    %1154 = arith.mulf %1153, %1121 : vector<2xf32>
    %1155 = arith.addf %1152, %1154 : vector<2xf32>
    %1156 = vector.broadcast %62 : f32 to vector<2xf32>
    %1157 = arith.mulf %1156, %1124 : vector<2xf32>
    %1158 = arith.addf %1155, %1157 : vector<2xf32>
    %1159 = vector.broadcast %63 : f32 to vector<2xf32>
    %1160 = arith.mulf %1159, %1127 : vector<2xf32>
    %1161 = arith.addf %1158, %1160 : vector<2xf32>
    %1162 = vector.broadcast %64 : f32 to vector<2xf32>
    %1163 = arith.mulf %1162, %1118 : vector<2xf32>
    %1164 = vector.broadcast %65 : f32 to vector<2xf32>
    %1165 = arith.mulf %1164, %1121 : vector<2xf32>
    %1166 = arith.addf %1163, %1165 : vector<2xf32>
    %1167 = vector.broadcast %66 : f32 to vector<2xf32>
    %1168 = arith.mulf %1167, %1124 : vector<2xf32>
    %1169 = arith.addf %1166, %1168 : vector<2xf32>
    %1170 = vector.broadcast %67 : f32 to vector<2xf32>
    %1171 = arith.mulf %1170, %1127 : vector<2xf32>
    %1172 = arith.addf %1169, %1171 : vector<2xf32>
    %1173 = vector.broadcast %68 : f32 to vector<2xf32>
    %1174 = arith.mulf %1173, %1118 : vector<2xf32>
    %1175 = vector.broadcast %69 : f32 to vector<2xf32>
    %1176 = arith.mulf %1175, %1121 : vector<2xf32>
    %1177 = arith.addf %1174, %1176 : vector<2xf32>
    %1178 = vector.broadcast %70 : f32 to vector<2xf32>
    %1179 = arith.mulf %1178, %1124 : vector<2xf32>
    %1180 = arith.addf %1177, %1179 : vector<2xf32>
    %1181 = vector.broadcast %71 : f32 to vector<2xf32>
    %1182 = arith.mulf %1181, %1127 : vector<2xf32>
    %1183 = arith.addf %1180, %1182 : vector<2xf32>
    %c0_448 = arith.constant 0 : index
    %c1_449 = arith.constant 1 : index
    %c0_450 = arith.constant 0 : index
    %1184 = vector.load %arg12[%c0_448, %c1_449, %c0_450] : memref<4x8x2xf32, #tpu.memory_space<vmem>>, vector<1x1x2xf32>
    %1185 = vector.shape_cast %1184 : vector<1x1x2xf32> to vector<2xf32>
    %1186 = arith.addf %1150, %1185 : vector<2xf32>
    %c1_451 = arith.constant 1 : index
    %c1_452 = arith.constant 1 : index
    %c0_453 = arith.constant 0 : index
    %1187 = vector.load %arg12[%c1_451, %c1_452, %c0_453] : memref<4x8x2xf32, #tpu.memory_space<vmem>>, vector<1x1x2xf32>
    %1188 = vector.shape_cast %1187 : vector<1x1x2xf32> to vector<2xf32>
    %1189 = arith.addf %1161, %1188 : vector<2xf32>
    %c2_454 = arith.constant 2 : index
    %c1_455 = arith.constant 1 : index
    %c0_456 = arith.constant 0 : index
    %1190 = vector.load %arg12[%c2_454, %c1_455, %c0_456] : memref<4x8x2xf32, #tpu.memory_space<vmem>>, vector<1x1x2xf32>
    %1191 = vector.shape_cast %1190 : vector<1x1x2xf32> to vector<2xf32>
    %1192 = arith.addf %1172, %1191 : vector<2xf32>
    %c3_457 = arith.constant 3 : index
    %c1_458 = arith.constant 1 : index
    %c0_459 = arith.constant 0 : index
    %1193 = vector.load %arg12[%c3_457, %c1_458, %c0_459] : memref<4x8x2xf32, #tpu.memory_space<vmem>>, vector<1x1x2xf32>
    %1194 = vector.shape_cast %1193 : vector<1x1x2xf32> to vector<2xf32>
    %1195 = arith.addf %1183, %1194 : vector<2xf32>
    %c0_460 = arith.constant 0 : index
    %c0_461 = arith.constant 0 : index
    %c0_462 = arith.constant 0 : index
    %1196 = vector.load %arg10[%c0_460, %c0_461, %c0_462] : memref<4x8x2xf32, #tpu.memory_space<vmem>>, vector<1x1x2xf32>
    %1197 = vector.shape_cast %1196 : vector<1x1x2xf32> to vector<2xf32>
    %1198 = vector.shape_cast %1186 : vector<2xf32> to vector<1x1x2xf32>
    tpu.vector_store %arg10[%c0_460, %c0_461, %c0_462], %1198 {strides = array<i32>} : memref<4x8x2xf32, #tpu.memory_space<vmem>>, vector<1x1x2xf32>,
    %c1_463 = arith.constant 1 : index
    %c0_464 = arith.constant 0 : index
    %c0_465 = arith.constant 0 : index
    %1199 = vector.load %arg10[%c1_463, %c0_464, %c0_465] : memref<4x8x2xf32, #tpu.memory_space<vmem>>, vector<1x1x2xf32>
    %1200 = vector.shape_cast %1199 : vector<1x1x2xf32> to vector<2xf32>
    %1201 = vector.shape_cast %1189 : vector<2xf32> to vector<1x1x2xf32>
    tpu.vector_store %arg10[%c1_463, %c0_464, %c0_465], %1201 {strides = array<i32>} : memref<4x8x2xf32, #tpu.memory_space<vmem>>, vector<1x1x2xf32>,
    %c2_466 = arith.constant 2 : index
    %c0_467 = arith.constant 0 : index
    %c0_468 = arith.constant 0 : index
    %1202 = vector.load %arg10[%c2_466, %c0_467, %c0_468] : memref<4x8x2xf32, #tpu.memory_space<vmem>>, vector<1x1x2xf32>
    %1203 = vector.shape_cast %1202 : vector<1x1x2xf32> to vector<2xf32>
    %1204 = vector.shape_cast %1192 : vector<2xf32> to vector<1x1x2xf32>
    tpu.vector_store %arg10[%c2_466, %c0_467, %c0_468], %1204 {strides = array<i32>} : memref<4x8x2xf32, #tpu.memory_space<vmem>>, vector<1x1x2xf32>,
    %c3_469 = arith.constant 3 : index
    %c0_470 = arith.constant 0 : index
    %c0_471 = arith.constant 0 : index
    %1205 = vector.load %arg10[%c3_469, %c0_470, %c0_471] : memref<4x8x2xf32, #tpu.memory_space<vmem>>, vector<1x1x2xf32>
    %1206 = vector.shape_cast %1205 : vector<1x1x2xf32> to vector<2xf32>
    %1207 = vector.shape_cast %1195 : vector<2xf32> to vector<1x1x2xf32>
    tpu.vector_store %arg10[%c3_469, %c0_470, %c0_471], %1207 {strides = array<i32>} : memref<4x8x2xf32, #tpu.memory_space<vmem>>, vector<1x1x2xf32>,
    return
  }
  func.func @transform_0(%arg0: i32) -> (i32, i32, i32) {
    %c0_i32 = arith.constant 0 : i32
    %c0_i32_0 = arith.constant 0 : i32
    %c0_i32_1 = arith.constant 0 : i32
    return %c0_i32, %c0_i32_0, %arg0 : i32, i32, i32
  }
  func.func @transform_1(%arg0: i32) -> (i32, i32) {
    %c0_i32 = arith.constant 0 : i32
    %c0_i32_0 = arith.constant 0 : i32
    return %c0_i32, %arg0 : i32, i32
  }
  func.func @transform_2(%arg0: i32) -> i32 {
    %c0_i32 = arith.constant 0 : i32
    %c0_i32_0 = arith.constant 0 : i32
    return %c0_i32 : i32
  }
  func.func @transform_3(%arg0: i32) -> i32 {
    %c0_i32 = arith.constant 0 : i32
    %c0_i32_0 = arith.constant 0 : i32
    return %c0_i32 : i32
  }
  func.func @transform_4(%arg0: i32) -> i32 {
    %c0_i32 = arith.constant 0 : i32
    %c0_i32_0 = arith.constant 0 : i32
    return %c0_i32 : i32
  }
  func.func @transform_5(%arg0: i32) -> i32 {
    %c0_i32 = arith.constant 0 : i32
    %c0_i32_0 = arith.constant 0 : i32
    return %c0_i32 : i32
  }
  func.func @transform_6(%arg0: i32) -> i32 {
    %c0_i32 = arith.constant 0 : i32
    %c0_i32_0 = arith.constant 0 : i32
    return %c0_i32 : i32
  }
  func.func @transform_7(%arg0: i32) -> i32 {
    %c0_i32 = arith.constant 0 : i32
    %c0_i32_0 = arith.constant 0 : i32
    return %c0_i32 : i32
  }
  func.func @transform_8(%arg0: i32) -> (i32, i32, i32) {
    %c0_i32 = arith.constant 0 : i32
    %c0_i32_0 = arith.constant 0 : i32
    %c0_i32_1 = arith.constant 0 : i32
    return %c0_i32, %c0_i32_0, %arg0 : i32, i32, i32
  }
  func.func @transform_9(%arg0: i32) -> (i32, i32, i32) {
    %c0_i32 = arith.constant 0 : i32
    %c0_i32_0 = arith.constant 0 : i32
    %c0_i32_1 = arith.constant 0 : i32
    return %c0_i32, %c0_i32_0, %arg0 : i32, i32, i32
  }
}

</mosaic_0001>

<llo_original>
// kernel: tpu_custom_call.1
$region0: #{tpu_custom_call.1}
  #allocation0 [shape = 'u32[]', space=smem, size = 0x4, offset = 0x4, fixed_abs, tag = 'smem constant byte address 0x4 - core index']
  #allocation1 [shape = 'u32[144,128]{1,0:T(1,128)}', space=vmem, size = 0x12000, scoped, tag = 'internal scratch']
  #allocation2 [shape = 'f32[4,8,2]{2,1,0:T(8,128)}', space=vmem, size = 0x4000, scoped, tag = 'scratch operand']
  #allocation3 [shape = 'f32[4,8,2]{2,1,0:T(8,128)}', space=vmem, size = 0x4000, scoped, tag = 'scratch operand']
  %s0 = inlined_call_operand.vmem [shape: f32[2,8,2], index: 0, kind: input, shape index: {}]
  %s1 = inlined_call_operand.vmem [shape: f32[4,2], index: 1, kind: input, shape index: {}]
  %s2 = inlined_call_operand.vmem [shape: f32[16], index: 2, kind: input, shape index: {}]
  %s3 = inlined_call_operand.vmem [shape: f32[8], index: 3, kind: input, shape index: {}]
  %s4 = inlined_call_operand.vmem [shape: f32[8], index: 4, kind: input, shape index: {}]
  %s5 = inlined_call_operand.vmem [shape: f32[8], index: 5, kind: input, shape index: {}]
  %s6 = inlined_call_operand.vmem [shape: f32[16], index: 6, kind: input, shape index: {}]
  %s7 = inlined_call_operand.vmem [shape: f32[16], index: 7, kind: input, shape index: {}]
  %s8 = inlined_call_operand.vmem [shape: f32[4,8,2], index: 8, kind: output, shape index: {0}]
  %s9 = inlined_call_operand.vmem [shape: f32[4,8,2], index: 9, kind: output, shape index: {1}]
  %10 = xla_tuple %s8, %s9
  %s11 = sld [smem:[#allocation0]]
  $region74: #{tpu_custom_call.1} parent=0
    _
  %s13 = ssub.s32 1, %s11
  %s14 = scalar_select 0, %s13, %s11
  $region1: #{tpu_custom_call.1} parent=0
    #allocation4 [shape = 'u8[512]{0}', space=smem, size = 0x200, scoped, tag = 'input window, operand 2, single buffered']
    #allocation5 [shape = 's32[1]{0}', space=sflag, size = 0x4, scoped, tag = 'scoped memory for tpu_custom_call.1']
    #allocation6 [shape = 'u8[512]{0}', space=smem, size = 0x200, scoped, tag = 'input window, operand 3, single buffered']
    #allocation7 [shape = 's32[1]{0}', space=sflag, size = 0x4, scoped, tag = 'scoped memory for tpu_custom_call.1']
    #allocation8 [shape = 'u8[512]{0}', space=smem, size = 0x200, scoped, tag = 'input window, operand 4, single buffered']
    #allocation9 [shape = 'u8[512]{0}', space=smem, size = 0x200, scoped, tag = 'input window, operand 5, single buffered']
    #allocation10 [shape = 's32[1]{0}', space=sflag, size = 0x4, scoped, tag = 'scoped memory for tpu_custom_call.1']
    #allocation11 [shape = 'u8[512]{0}', space=smem, size = 0x200, scoped, tag = 'input window, operand 6, single buffered']
    #allocation12 [shape = 'u8[512]{0}', space=smem, size = 0x200, scoped, tag = 'input window, operand 7, single buffered']
    #allocation13 [shape = 's32[1]{0}', space=sflag, size = 0x4, scoped, tag = 'scoped memory for tpu_custom_call.1']
    %15 = vsyncpa [#allocation5], 0
    %16 = vsyncpa [#allocation7], 0
    %17 = vsyncpa [#allocation10], 0
    %18 = vsyncpa [#allocation13], 0
    // Predicated region
    $region2: #{tpu_custom_call.1} parent=1 // pred_check
      _
    $region3: #{tpu_custom_call.1} parent=1 // pred_check_branch
      %20 = sbr.rel (0) target = $region5
    $region4: #{tpu_custom_call.1} parent=1 // pred_region
      _
    $region5: #{tpu_custom_call.1} parent=1 // pred_fallthru
      _
    // Predicated region
    $region6: #{tpu_custom_call.1} parent=1 // pred_check
      _
    $region7: #{tpu_custom_call.1} parent=1 // pred_check_branch
      %22 = sbr.rel (0) target = $region9
    $region8: #{tpu_custom_call.1} parent=1 // pred_region
      _
    $region9: #{tpu_custom_call.1} parent=1 // pred_fallthru
      _
    // Predicated region
    $region10: #{tpu_custom_call.1} parent=1 // pred_check
      _
    $region11: #{tpu_custom_call.1} parent=1 // pred_check_branch
      %24 = sbr.rel (0) target = $region13
    $region12: #{tpu_custom_call.1} parent=1 // pred_region
      %s26 = ssub.s32 16, 16
      %27 = vsyncadd [#allocation5], %s26
      %s29 = sshll.u32 %s2, 4
      %s30 = int_to_ptr.vmem [resolvable:$true] %s29
      %32 = dma.vmem_to_smem %s30, 16, [#allocation4], [#allocation5]
    $region13: #{tpu_custom_call.1} parent=1 // pred_fallthru
      _
    // Predicated region
    $region14: #{tpu_custom_call.1} parent=1 // pred_check
      _
    $region15: #{tpu_custom_call.1} parent=1 // pred_check_branch
      %34 = sbr.rel (0) target = $region17
    $region16: #{tpu_custom_call.1} parent=1 // pred_region
      %s36 = ssub.s32 16, 16
      %37 = vsyncadd [#allocation7], %s36
      %s39 = sshll.u32 %s3, 4
      %s40 = int_to_ptr.vmem [resolvable:$true] %s39
      %42 = dma.vmem_to_smem %s40, 16, [#allocation6], [#allocation7]
    $region17: #{tpu_custom_call.1} parent=1 // pred_fallthru
      _
    // Predicated region
    $region18: #{tpu_custom_call.1} parent=1 // pred_check
      _
    $region19: #{tpu_custom_call.1} parent=1 // pred_check_branch
      %44 = sbr.rel (0) target = $region21
    $region20: #{tpu_custom_call.1} parent=1 // pred_region
      %s46 = ssub.s32 16, 16
      %47 = vsyncadd [#allocation7], %s46
      %s49 = sshll.u32 %s4, 4
      %s50 = int_to_ptr.vmem [resolvable:$true] %s49
      %52 = dma.vmem_to_smem %s50, 16, [#allocation8], [#allocation7]
    $region21: #{tpu_custom_call.1} parent=1 // pred_fallthru
      _
    // Predicated region
    $region22: #{tpu_custom_call.1} parent=1 // pred_check
      _
    $region23: #{tpu_custom_call.1} parent=1 // pred_check_branch
      %54 = sbr.rel (0) target = $region25
    $region24: #{tpu_custom_call.1} parent=1 // pred_region
      %s56 = ssub.s32 16, 16
      %57 = vsyncadd [#allocation10], %s56
      %s59 = sshll.u32 %s5, 4
      %s60 = int_to_ptr.vmem [resolvable:$true] %s59
      %62 = dma.vmem_to_smem %s60, 16, [#allocation9], [#allocation10]
    $region25: #{tpu_custom_call.1} parent=1 // pred_fallthru
      _
    // Predicated region
    $region26: #{tpu_custom_call.1} parent=1 // pred_check
      _
    $region27: #{tpu_custom_call.1} parent=1 // pred_check_branch
      %64 = sbr.rel (0) target = $region29
    $region28: #{tpu_custom_call.1} parent=1 // pred_region
      %s66 = ssub.s32 16, 16
      %67 = vsyncadd [#allocation10], %s66
      %s69 = sshll.u32 %s6, 4
      %s70 = int_to_ptr.vmem [resolvable:$true] %s69
      %72 = dma.vmem_to_smem %s70, 16, [#allocation11], [#allocation10]
    $region29: #{tpu_custom_call.1} parent=1 // pred_fallthru
      _
    // Predicated region
    $region30: #{tpu_custom_call.1} parent=1 // pred_check
      _
    $region31: #{tpu_custom_call.1} parent=1 // pred_check_branch
      %74 = sbr.rel (0) target = $region33
    $region32: #{tpu_custom_call.1} parent=1 // pred_region
      %s76 = ssub.s32 16, 16
      %77 = vsyncadd [#allocation13], %s76
      %s79 = sshll.u32 %s7, 4
      %s80 = int_to_ptr.vmem [resolvable:$true] %s79
      %82 = dma.vmem_to_smem %s80, 16, [#allocation12], [#allocation13]
    $region33: #{tpu_custom_call.1} parent=1 // pred_fallthru
      _
    // Predicated region
    $region34: #{tpu_custom_call.1} parent=1 // pred_check
      _
    $region35: #{tpu_custom_call.1} parent=1 // pred_check_branch
      %84 = sbr.rel (0) target = $region37
    $region36: #{tpu_custom_call.1} parent=1 // pred_region
      %85 = dma.done [#allocation5], 16
    $region37: #{tpu_custom_call.1} parent=1 // pred_fallthru
      _
    // Predicated region
    $region38: #{tpu_custom_call.1} parent=1 // pred_check
      _
    $region39: #{tpu_custom_call.1} parent=1 // pred_check_branch
      %87 = sbr.rel (0) target = $region41
    $region40: #{tpu_custom_call.1} parent=1 // pred_region
      %88 = dma.done [#allocation7], 16
    $region41: #{tpu_custom_call.1} parent=1 // pred_fallthru
      _
    // Predicated region
    $region42: #{tpu_custom_call.1} parent=1 // pred_check
      _
    $region43: #{tpu_custom_call.1} parent=1 // pred_check_branch
      %90 = sbr.rel (0) target = $region45
    $region44: #{tpu_custom_call.1} parent=1 // pred_region
      %91 = dma.done [#allocation7], 16
    $region45: #{tpu_custom_call.1} parent=1 // pred_fallthru
      _
    // Predicated region
    $region46: #{tpu_custom_call.1} parent=1 // pred_check
      _
    $region47: #{tpu_custom_call.1} parent=1 // pred_check_branch
      %93 = sbr.rel (0) target = $region49
    $region48: #{tpu_custom_call.1} parent=1 // pred_region
      %94 = dma.done [#allocation10], 16
    $region49: #{tpu_custom_call.1} parent=1 // pred_fallthru
      _
    // Predicated region
    $region50: #{tpu_custom_call.1} parent=1 // pred_check
      _
    $region51: #{tpu_custom_call.1} parent=1 // pred_check_branch
      %96 = sbr.rel (0) target = $region53
    $region52: #{tpu_custom_call.1} parent=1 // pred_region
      %97 = dma.done [#allocation10], 16
    $region53: #{tpu_custom_call.1} parent=1 // pred_fallthru
      _
    // Predicated region
    $region54: #{tpu_custom_call.1} parent=1 // pred_check
      _
    $region55: #{tpu_custom_call.1} parent=1 // pred_check_branch
      %99 = sbr.rel (0) target = $region57
    $region56: #{tpu_custom_call.1} parent=1 // pred_region
      %100 = dma.done [#allocation13], 16
    $region57: #{tpu_custom_call.1} parent=1 // pred_fallthru
      _
    %101 = sfence
    %s102 = sld [smem:[#allocation4]]
    %s103 = sld [smem:[#allocation4 + $0x1]]
    %s104 = sld [smem:[#allocation4 + $0x2]]
    %s105 = sld [smem:[#allocation4 + $0x3]]
    %s106 = sld [smem:[#allocation4 + $0x4]]
    %s107 = sld [smem:[#allocation4 + $0x5]]
    %s108 = sld [smem:[#allocation4 + $0x6]]
    %s109 = sld [smem:[#allocation4 + $0x7]]
    %s110 = sld [smem:[#allocation4 + $0x8]]
    %s111 = sld [smem:[#allocation4 + $0x9]]
    %s112 = sld [smem:[#allocation4 + $0xa]]
    %s113 = sld [smem:[#allocation4 + $0xb]]
    %s114 = sld [smem:[#allocation4 + $0xc]]
    %s115 = sld [smem:[#allocation4 + $0xd]]
    %s116 = sld [smem:[#allocation4 + $0xe]]
    %s117 = sld [smem:[#allocation4 + $0xf]]
    %s118 = sld [smem:[#allocation6]]
    %s119 = sld [smem:[#allocation6 + $0x1]]
    %s120 = sld [smem:[#allocation6 + $0x2]]
    %s121 = sld [smem:[#allocation6 + $0x3]]
    %s122 = sld [smem:[#allocation6 + $0x4]]
    %s123 = sld [smem:[#allocation6 + $0x5]]
    %s124 = sld [smem:[#allocation6 + $0x6]]
    %s125 = sld [smem:[#allocation6 + $0x7]]
    %s126 = sld [smem:[#allocation8]]
    %s127 = sld [smem:[#allocation8 + $0x1]]
    %s128 = sld [smem:[#allocation8 + $0x2]]
    %s129 = sld [smem:[#allocation8 + $0x3]]
    %s130 = sld [smem:[#allocation8 + $0x4]]
    %s131 = sld [smem:[#allocation8 + $0x5]]
    %s132 = sld [smem:[#allocation8 + $0x6]]
    %s133 = sld [smem:[#allocation8 + $0x7]]
    %s134 = sld [smem:[#allocation9]]
    %s135 = sld [smem:[#allocation9 + $0x1]]
    %s136 = sld [smem:[#allocation9 + $0x2]]
    %s137 = sld [smem:[#allocation9 + $0x3]]
    %s138 = sld [smem:[#allocation9 + $0x4]]
    %s139 = sld [smem:[#allocation9 + $0x5]]
    %s140 = sld [smem:[#allocation9 + $0x6]]
    %s141 = sld [smem:[#allocation9 + $0x7]]
    %s142 = sld [smem:[#allocation11]]
    %s143 = sld [smem:[#allocation11 + $0x1]]
    %s144 = sld [smem:[#allocation11 + $0x2]]
    %s145 = sld [smem:[#allocation11 + $0x3]]
    %s146 = sld [smem:[#allocation11 + $0x4]]
    %s147 = sld [smem:[#allocation11 + $0x5]]
    %s148 = sld [smem:[#allocation11 + $0x6]]
    %s149 = sld [smem:[#allocation11 + $0x7]]
    %s150 = sld [smem:[#allocation11 + $0x8]]
    %s151 = sld [smem:[#allocation11 + $0x9]]
    %s152 = sld [smem:[#allocation11 + $0xa]]
    %s153 = sld [smem:[#allocation11 + $0xb]]
    %s154 = sld [smem:[#allocation11 + $0xc]]
    %s155 = sld [smem:[#allocation11 + $0xd]]
    %s156 = sld [smem:[#allocation11 + $0xe]]
    %s157 = sld [smem:[#allocation11 + $0xf]]
    %s158 = sld [smem:[#allocation12]]
    %s159 = sld [smem:[#allocation12 + $0x1]]
    %s160 = sld [smem:[#allocation12 + $0x2]]
    %s161 = sld [smem:[#allocation12 + $0x3]]
    %s162 = sld [smem:[#allocation12 + $0x4]]
    %s163 = sld [smem:[#allocation12 + $0x5]]
    %s164 = sld [smem:[#allocation12 + $0x6]]
    %s165 = sld [smem:[#allocation12 + $0x7]]
    %s166 = sld [smem:[#allocation12 + $0x8]]
    %s167 = sld [smem:[#allocation12 + $0x9]]
    %s168 = sld [smem:[#allocation12 + $0xa]]
    %s169 = sld [smem:[#allocation12 + $0xb]]
    %s170 = sld [smem:[#allocation12 + $0xc]]
    %s171 = sld [smem:[#allocation12 + $0xd]]
    %s172 = sld [smem:[#allocation12 + $0xe]]
    %s173 = sld [smem:[#allocation12 + $0xf]]
    %v174 = vld [vmem:[%s0] sm:$0xff]
    %s175 = scalar_lea.vmem %s0, 8
    %v176 = vld [vmem:[%s175] sm:$0xff]
    %v177 = vstv %s118
    %v178 = vmul.f32 %v177, %v174
    %v179 = vstv %s119
    %v180 = vmul.f32 %v179, %v176
    %v181 = vadd.f32 %v178, %v180
    %v182 = vstv %s120
    %v183 = vmul.f32 %v182, %v174
    %v184 = vstv %s121
    %v185 = vmul.f32 %v184, %v176
    %v186 = vadd.f32 %v183, %v185
    %v187 = vstv %s122
    %v188 = vmul.f32 %v187, %v174
    %v189 = vstv %s123
    %v190 = vmul.f32 %v189, %v176
    %v191 = vadd.f32 %v188, %v190
    %v192 = vstv %s124
    %v193 = vmul.f32 %v192, %v174
    %v194 = vstv %s125
    %v195 = vmul.f32 %v194, %v176
    %v196 = vadd.f32 %v193, %v195
    %vm197 = vcmask 15360
    %198 = vst.msk [vmem:[#allocation2] sm:$0xff] %vm197, %v181
    %s199 = scalar_lea.vmem [#allocation2], 8
    %200 = vst.msk [vmem:[%s199] sm:$0xff] %vm197, %v186
    %s201 = scalar_lea.vmem [#allocation2], 16
    %202 = vst.msk [vmem:[%s201] sm:$0xff] %vm197, %v191
    %s203 = scalar_lea.vmem [#allocation2], 24
    %204 = vst.msk [vmem:[%s203] sm:$0xff] %vm197, %v196
    %v205 = vld [vmem:[%s1] sm:$0x1]
    %v206 = vld [vmem:[%s1 + $0x1] sm:$0x1]
    %v207 = vld [vmem:[%s1 + $0x2] sm:$0x1]
    %v208 = vld [vmem:[%s1 + $0x3] sm:$0x1]
    %vm209 = vcmask 8192
    %210 = vst.msk [vmem:[%s8] sm:$0x1] %vm209, %v205
    %s211 = scalar_lea.vmem %s8, 8
    %212 = vst.msk [vmem:[%s211] sm:$0x1] %vm209, %v206
    %s213 = scalar_lea.vmem %s8, 16
    %214 = vst.msk [vmem:[%s213] sm:$0x1] %vm209, %v207
    %s215 = scalar_lea.vmem %s8, 24
    %216 = vst.msk [vmem:[%s215] sm:$0x1] %vm209, %v208
    %v217 = vstv %s102
    %v218 = vmul.f32 %v217, %v205
    %v219 = vstv %s103
    %v220 = vmul.f32 %v219, %v206
    %v221 = vadd.f32 %v218, %v220
    %v222 = vstv %s104
    %v223 = vmul.f32 %v222, %v207
    %v224 = vadd.f32 %v221, %v223
    %v225 = vstv %s105
    %v226 = vmul.f32 %v225, %v208
    %v227 = vadd.f32 %v224, %v226
    %v228 = vstv %s106
    %v229 = vmul.f32 %v228, %v205
    %v230 = vstv %s107
    %v231 = vmul.f32 %v230, %v206
    %v232 = vadd.f32 %v229, %v231
    %v233 = vstv %s108
    %v234 = vmul.f32 %v233, %v207
    %v235 = vadd.f32 %v232, %v234
    %v236 = vstv %s109
    %v237 = vmul.f32 %v236, %v208
    %v238 = vadd.f32 %v235, %v237
    %v239 = vstv %s110
    %v240 = vmul.f32 %v239, %v205
    %v241 = vstv %s111
    %v242 = vmul.f32 %v241, %v206
    %v243 = vadd.f32 %v240, %v242
    %v244 = vstv %s112
    %v245 = vmul.f32 %v244, %v207
    %v246 = vadd.f32 %v243, %v245
    %v247 = vstv %s113
    %v248 = vmul.f32 %v247, %v208
    %v249 = vadd.f32 %v246, %v248
    %v250 = vstv %s114
    %v251 = vmul.f32 %v250, %v205
    %v252 = vstv %s115
    %v253 = vmul.f32 %v252, %v206
    %v254 = vadd.f32 %v251, %v253
    %v255 = vstv %s116
    %v256 = vmul.f32 %v255, %v207
    %v257 = vadd.f32 %v254, %v256
    %v258 = vstv %s117
    %v259 = vmul.f32 %v258, %v208
    %v260 = vadd.f32 %v257, %v259
    %v261 = vld [vmem:[#allocation2] sm:$0x1]
    %v262 = vadd.f32 %v227, %v261
    %v263 = vld [vmem:[%s199] sm:$0x1]
    %v264 = vadd.f32 %v238, %v263
    %v265 = vld [vmem:[%s201] sm:$0x1]
    %v266 = vadd.f32 %v249, %v265
    %v267 = vld [vmem:[%s203] sm:$0x1]
    %v268 = vadd.f32 %v260, %v267
    %269 = vst.msk [vmem:[%s8 + $0x1] sm:$0x1] %vm209, %v262
    %270 = vst.msk [vmem:[%s211 + $0x1] sm:$0x1] %vm209, %v264
    %271 = vst.msk [vmem:[%s213 + $0x1] sm:$0x1] %vm209, %v266
    %272 = vst.msk [vmem:[%s215 + $0x1] sm:$0x1] %vm209, %v268
    %v273 = vmul.f32 %v217, %v262
    %v274 = vmul.f32 %v219, %v264
    %v275 = vadd.f32 %v273, %v274
    %v276 = vmul.f32 %v222, %v266
    %v277 = vadd.f32 %v275, %v276
    %v278 = vmul.f32 %v225, %v268
    %v279 = vadd.f32 %v277, %v278
    %v280 = vmul.f32 %v228, %v262
    %v281 = vmul.f32 %v230, %v264
    %v282 = vadd.f32 %v280, %v281
    %v283 = vmul.f32 %v233, %v266
    %v284 = vadd.f32 %v282, %v283
    %v285 = vmul.f32 %v236, %v268
    %v286 = vadd.f32 %v284, %v285
    %v287 = vmul.f32 %v239, %v262
    %v288 = vmul.f32 %v241, %v264
    %v289 = vadd.f32 %v287, %v288
    %v290 = vmul.f32 %v244, %v266
    %v291 = vadd.f32 %v289, %v290
    %v292 = vmul.f32 %v247, %v268
    %v293 = vadd.f32 %v291, %v292
    %v294 = vmul.f32 %v250, %v262
    %v295 = vmul.f32 %v252, %v264
    %v296 = vadd.f32 %v294, %v295
    %v297 = vmul.f32 %v255, %v266
    %v298 = vadd.f32 %v296, %v297
    %v299 = vmul.f32 %v258, %v268
    %v300 = vadd.f32 %v298, %v299
    %v301 = vld [vmem:[#allocation2 + $0x1] sm:$0x1]
    %v302 = vadd.f32 %v279, %v301
    %v303 = vld [vmem:[%s199 + $0x1] sm:$0x1]
    %v304 = vadd.f32 %v286, %v303
    %v305 = vld [vmem:[%s201 + $0x1] sm:$0x1]
    %v306 = vadd.f32 %v293, %v305
    %v307 = vld [vmem:[%s203 + $0x1] sm:$0x1]
    %v308 = vadd.f32 %v300, %v307
    %309 = vst.msk [vmem:[%s8 + $0x2] sm:$0x1] %vm209, %v302
    %310 = vst.msk [vmem:[%s211 + $0x2] sm:$0x1] %vm209, %v304
    %311 = vst.msk [vmem:[%s213 + $0x2] sm:$0x1] %vm209, %v306
    %312 = vst.msk [vmem:[%s215 + $0x2] sm:$0x1] %vm209, %v308
    %v313 = vmul.f32 %v217, %v302
    %v314 = vmul.f32 %v219, %v304
    %v315 = vadd.f32 %v313, %v314
    %v316 = vmul.f32 %v222, %v306
    %v317 = vadd.f32 %v315, %v316
    %v318 = vmul.f32 %v225, %v308
    %v319 = vadd.f32 %v317, %v318
    %v320 = vmul.f32 %v228, %v302
    %v321 = vmul.f32 %v230, %v304
    %v322 = vadd.f32 %v320, %v321
    %v323 = vmul.f32 %v233, %v306
    %v324 = vadd.f32 %v322, %v323
    %v325 = vmul.f32 %v236, %v308
    %v326 = vadd.f32 %v324, %v325
    %v327 = vmul.f32 %v239, %v302
    %v328 = vmul.f32 %v241, %v304
    %v329 = vadd.f32 %v327, %v328
    %v330 = vmul.f32 %v244, %v306
    %v331 = vadd.f32 %v329, %v330
    %v332 = vmul.f32 %v247, %v308
    %v333 = vadd.f32 %v331, %v332
    %v334 = vmul.f32 %v250, %v302
    %v335 = vmul.f32 %v252, %v304
    %v336 = vadd.f32 %v334, %v335
    %v337 = vmul.f32 %v255, %v306
    %v338 = vadd.f32 %v336, %v337
    %v339 = vmul.f32 %v258, %v308
    %v340 = vadd.f32 %v338, %v339
    %v341 = vld [vmem:[#allocation2 + $0x2] sm:$0x1]
    %v342 = vadd.f32 %v319, %v341
    %v343 = vld [vmem:[%s199 + $0x2] sm:$0x1]
    %v344 = vadd.f32 %v326, %v343
    %v345 = vld [vmem:[%s201 + $0x2] sm:$0x1]
    %v346 = vadd.f32 %v333, %v345
    %v347 = vld [vmem:[%s203 + $0x2] sm:$0x1]
    %v348 = vadd.f32 %v340, %v347
    %349 = vst.msk [vmem:[%s8 + $0x3] sm:$0x1] %vm209, %v342
    %350 = vst.msk [vmem:[%s211 + $0x3] sm:$0x1] %vm209, %v344
    %351 = vst.msk [vmem:[%s213 + $0x3] sm:$0x1] %vm209, %v346
    %352 = vst.msk [vmem:[%s215 + $0x3] sm:$0x1] %vm209, %v348
    %v353 = vmul.f32 %v217, %v342
    %v354 = vmul.f32 %v219, %v344
    %v355 = vadd.f32 %v353, %v354
    %v356 = vmul.f32 %v222, %v346
    %v357 = vadd.f32 %v355, %v356
    %v358 = vmul.f32 %v225, %v348
    %v359 = vadd.f32 %v357, %v358
    %v360 = vmul.f32 %v228, %v342
    %v361 = vmul.f32 %v230, %v344
    %v362 = vadd.f32 %v360, %v361
    %v363 = vmul.f32 %v233, %v346
    %v364 = vadd.f32 %v362, %v363
    %v365 = vmul.f32 %v236, %v348
    %v366 = vadd.f32 %v364, %v365
    %v367 = vmul.f32 %v239, %v342
    %v368 = vmul.f32 %v241, %v344
    %v369 = vadd.f32 %v367, %v368
    %v370 = vmul.f32 %v244, %v346
    %v371 = vadd.f32 %v369, %v370
    %v372 = vmul.f32 %v247, %v348
    %v373 = vadd.f32 %v371, %v372
    %v374 = vmul.f32 %v250, %v342
    %v375 = vmul.f32 %v252, %v344
    %v376 = vadd.f32 %v374, %v375
    %v377 = vmul.f32 %v255, %v346
    %v378 = vadd.f32 %v376, %v377
    %v379 = vmul.f32 %v258, %v348
    %v380 = vadd.f32 %v378, %v379
    %v381 = vld [vmem:[#allocation2 + $0x3] sm:$0x1]
    %v382 = vadd.f32 %v359, %v381
    %v383 = vld [vmem:[%s199 + $0x3] sm:$0x1]
    %v384 = vadd.f32 %v366, %v383
    %v385 = vld [vmem:[%s201 + $0x3] sm:$0x1]
    %v386 = vadd.f32 %v373, %v385
    %v387 = vld [vmem:[%s203 + $0x3] sm:$0x1]
    %v388 = vadd.f32 %v380, %v387
    %389 = vst.msk [vmem:[%s8 + $0x4] sm:$0x1] %vm209, %v382
    %390 = vst.msk [vmem:[%s211 + $0x4] sm:$0x1] %vm209, %v384
    %391 = vst.msk [vmem:[%s213 + $0x4] sm:$0x1] %vm209, %v386
    %392 = vst.msk [vmem:[%s215 + $0x4] sm:$0x1] %vm209, %v388
    %v393 = vmul.f32 %v217, %v382
    %v394 = vmul.f32 %v219, %v384
    %v395 = vadd.f32 %v393, %v394
    %v396 = vmul.f32 %v222, %v386
    %v397 = vadd.f32 %v395, %v396
    %v398 = vmul.f32 %v225, %v388
    %v399 = vadd.f32 %v397, %v398
    %v400 = vmul.f32 %v228, %v382
    %v401 = vmul.f32 %v230, %v384
    %v402 = vadd.f32 %v400, %v401
    %v403 = vmul.f32 %v233, %v386
    %v404 = vadd.f32 %v402, %v403
    %v405 = vmul.f32 %v236, %v388
    %v406 = vadd.f32 %v404, %v405
    %v407 = vmul.f32 %v239, %v382
    %v408 = vmul.f32 %v241, %v384
    %v409 = vadd.f32 %v407, %v408
    %v410 = vmul.f32 %v244, %v386
    %v411 = vadd.f32 %v409, %v410
    %v412 = vmul.f32 %v247, %v388
    %v413 = vadd.f32 %v411, %v412
    %v414 = vmul.f32 %v250, %v382
    %v415 = vmul.f32 %v252, %v384
    %v416 = vadd.f32 %v414, %v415
    %v417 = vmul.f32 %v255, %v386
    %v418 = vadd.f32 %v416, %v417
    %v419 = vmul.f32 %v258, %v388
    %v420 = vadd.f32 %v418, %v419
    %v421 = vld [vmem:[#allocation2 + $0x4] sm:$0x1]
    %v422 = vadd.f32 %v399, %v421
    %v423 = vld [vmem:[%s199 + $0x4] sm:$0x1]
    %v424 = vadd.f32 %v406, %v423
    %v425 = vld [vmem:[%s201 + $0x4] sm:$0x1]
    %v426 = vadd.f32 %v413, %v425
    %v427 = vld [vmem:[%s203 + $0x4] sm:$0x1]
    %v428 = vadd.f32 %v420, %v427
    %429 = vst.msk [vmem:[%s8 + $0x5] sm:$0x1] %vm209, %v422
    %430 = vst.msk [vmem:[%s211 + $0x5] sm:$0x1] %vm209, %v424
    %431 = vst.msk [vmem:[%s213 + $0x5] sm:$0x1] %vm209, %v426
    %432 = vst.msk [vmem:[%s215 + $0x5] sm:$0x1] %vm209, %v428
    %v433 = vmul.f32 %v217, %v422
    %v434 = vmul.f32 %v219, %v424
    %v435 = vadd.f32 %v433, %v434
    %v436 = vmul.f32 %v222, %v426
    %v437 = vadd.f32 %v435, %v436
    %v438 = vmul.f32 %v225, %v428
    %v439 = vadd.f32 %v437, %v438
    %v440 = vmul.f32 %v228, %v422
    %v441 = vmul.f32 %v230, %v424
    %v442 = vadd.f32 %v440, %v441
    %v443 = vmul.f32 %v233, %v426
    %v444 = vadd.f32 %v442, %v443
    %v445 = vmul.f32 %v236, %v428
    %v446 = vadd.f32 %v444, %v445
    %v447 = vmul.f32 %v239, %v422
    %v448 = vmul.f32 %v241, %v424
    %v449 = vadd.f32 %v447, %v448
    %v450 = vmul.f32 %v244, %v426
    %v451 = vadd.f32 %v449, %v450
    %v452 = vmul.f32 %v247, %v428
    %v453 = vadd.f32 %v451, %v452
    %v454 = vmul.f32 %v250, %v422
    %v455 = vmul.f32 %v252, %v424
    %v456 = vadd.f32 %v454, %v455
    %v457 = vmul.f32 %v255, %v426
    %v458 = vadd.f32 %v456, %v457
    %v459 = vmul.f32 %v258, %v428
    %v460 = vadd.f32 %v458, %v459
    %v461 = vld [vmem:[#allocation2 + $0x5] sm:$0x1]
    %v462 = vadd.f32 %v439, %v461
    %v463 = vld [vmem:[%s199 + $0x5] sm:$0x1]
    %v464 = vadd.f32 %v446, %v463
    %v465 = vld [vmem:[%s201 + $0x5] sm:$0x1]
    %v466 = vadd.f32 %v453, %v465
    %v467 = vld [vmem:[%s203 + $0x5] sm:$0x1]
    %v468 = vadd.f32 %v460, %v467
    %469 = vst.msk [vmem:[%s8 + $0x6] sm:$0x1] %vm209, %v462
    %470 = vst.msk [vmem:[%s211 + $0x6] sm:$0x1] %vm209, %v464
    %471 = vst.msk [vmem:[%s213 + $0x6] sm:$0x1] %vm209, %v466
    %472 = vst.msk [vmem:[%s215 + $0x6] sm:$0x1] %vm209, %v468
    %v473 = vmul.f32 %v217, %v462
    %v474 = vmul.f32 %v219, %v464
    %v475 = vadd.f32 %v473, %v474
    %v476 = vmul.f32 %v222, %v466
    %v477 = vadd.f32 %v475, %v476
    %v478 = vmul.f32 %v225, %v468
    %v479 = vadd.f32 %v477, %v478
    %v480 = vmul.f32 %v228, %v462
    %v481 = vmul.f32 %v230, %v464
    %v482 = vadd.f32 %v480, %v481
    %v483 = vmul.f32 %v233, %v466
    %v484 = vadd.f32 %v482, %v483
    %v485 = vmul.f32 %v236, %v468
    %v486 = vadd.f32 %v484, %v485
    %v487 = vmul.f32 %v239, %v462
    %v488 = vmul.f32 %v241, %v464
    %v489 = vadd.f32 %v487, %v488
    %v490 = vmul.f32 %v244, %v466
    %v491 = vadd.f32 %v489, %v490
    %v492 = vmul.f32 %v247, %v468
    %v493 = vadd.f32 %v491, %v492
    %v494 = vmul.f32 %v250, %v462
    %v495 = vmul.f32 %v252, %v464
    %v496 = vadd.f32 %v494, %v495
    %v497 = vmul.f32 %v255, %v466
    %v498 = vadd.f32 %v496, %v497
    %v499 = vmul.f32 %v258, %v468
    %v500 = vadd.f32 %v498, %v499
    %v501 = vld [vmem:[#allocation2 + $0x6] sm:$0x1]
    %v502 = vadd.f32 %v479, %v501
    %v503 = vld [vmem:[%s199 + $0x6] sm:$0x1]
    %v504 = vadd.f32 %v486, %v503
    %v505 = vld [vmem:[%s201 + $0x6] sm:$0x1]
    %v506 = vadd.f32 %v493, %v505
    %v507 = vld [vmem:[%s203 + $0x6] sm:$0x1]
    %v508 = vadd.f32 %v500, %v507
    %509 = vst.msk [vmem:[%s8 + $0x7] sm:$0x1] %vm209, %v502
    %510 = vst.msk [vmem:[%s211 + $0x7] sm:$0x1] %vm209, %v504
    %511 = vst.msk [vmem:[%s213 + $0x7] sm:$0x1] %vm209, %v506
    %512 = vst.msk [vmem:[%s215 + $0x7] sm:$0x1] %vm209, %v508
    %v513 = vld [vmem:[%s8] sm:$0xff]
    %v514 = vld [vmem:[%s211] sm:$0xff]
    %v515 = vld [vmem:[%s213] sm:$0xff]
    %v516 = vld [vmem:[%s215] sm:$0xff]
    %v517 = vstv %s142
    %v518 = vmul.f32 %v517, %v513
    %v519 = vstv %s143
    %v520 = vmul.f32 %v519, %v514
    %v521 = vadd.f32 %v518, %v520
    %v522 = vstv %s144
    %v523 = vmul.f32 %v522, %v515
    %v524 = vadd.f32 %v521, %v523
    %v525 = vstv %s145
    %v526 = vmul.f32 %v525, %v516
    %v527 = vadd.f32 %v524, %v526
    %v528 = vstv %s146
    %v529 = vmul.f32 %v528, %v513
    %v530 = vstv %s147
    %v531 = vmul.f32 %v530, %v514
    %v532 = vadd.f32 %v529, %v531
    %v533 = vstv %s148
    %v534 = vmul.f32 %v533, %v515
    %v535 = vadd.f32 %v532, %v534
    %v536 = vstv %s149
    %v537 = vmul.f32 %v536, %v516
    %v538 = vadd.f32 %v535, %v537
    %v539 = vstv %s150
    %v540 = vmul.f32 %v539, %v513
    %v541 = vstv %s151
    %v542 = vmul.f32 %v541, %v514
    %v543 = vadd.f32 %v540, %v542
    %v544 = vstv %s152
    %v545 = vmul.f32 %v544, %v515
    %v546 = vadd.f32 %v543, %v545
    %v547 = vstv %s153
    %v548 = vmul.f32 %v547, %v516
    %v549 = vadd.f32 %v546, %v548
    %v550 = vstv %s154
    %v551 = vmul.f32 %v550, %v513
    %v552 = vstv %s155
    %v553 = vmul.f32 %v552, %v514
    %v554 = vadd.f32 %v551, %v553
    %v555 = vstv %s156
    %v556 = vmul.f32 %v555, %v515
    %v557 = vadd.f32 %v554, %v556
    %v558 = vstv %s157
    %v559 = vmul.f32 %v558, %v516
    %v560 = vadd.f32 %v557, %v559
    %561 = vst.msk [vmem:[#allocation3] sm:$0xff] %vm197, %v527
    %s562 = scalar_lea.vmem [#allocation3], 8
    %563 = vst.msk [vmem:[%s562] sm:$0xff] %vm197, %v538
    %s564 = scalar_lea.vmem [#allocation3], 16
    %565 = vst.msk [vmem:[%s564] sm:$0xff] %vm197, %v549
    %s566 = scalar_lea.vmem [#allocation3], 24
    %567 = vst.msk [vmem:[%s566] sm:$0xff] %vm197, %v560
    %v568 = vld [vmem:[%s0 + $0x7] sm:$0x1]
    %v569 = vld [vmem:[%s175 + $0x7] sm:$0x1]
    %v570 = vstv %s126
    %v571 = vmul.f32 %v570, %v502
    %v572 = vstv %s127
    %v573 = vmul.f32 %v572, %v504
    %v574 = vadd.f32 %v571, %v573
    %v575 = vstv %s128
    %v576 = vmul.f32 %v575, %v506
    %v577 = vadd.f32 %v574, %v576
    %v578 = vstv %s129
    %v579 = vmul.f32 %v578, %v508
    %v580 = vadd.f32 %v577, %v579
    %v581 = vstv %s130
    %v582 = vmul.f32 %v581, %v502
    %v583 = vstv %s131
    %v584 = vmul.f32 %v583, %v504
    %v585 = vadd.f32 %v582, %v584
    %v586 = vstv %s132
    %v587 = vmul.f32 %v586, %v506
    %v588 = vadd.f32 %v585, %v587
    %v589 = vstv %s133
    %v590 = vmul.f32 %v589, %v508
    %v591 = vadd.f32 %v588, %v590
    %v592 = vsub.f32 %v568, %v580
    %v593 = vsub.f32 %v569, %v591
    %v594 = vstv %s134
    %v595 = vmul.f32 %v594, %v592
    %v596 = vstv %s135
    %v597 = vmul.f32 %v596, %v593
    %v598 = vadd.f32 %v595, %v597
    %v599 = vstv %s136
    %v600 = vmul.f32 %v599, %v592
    %v601 = vstv %s137
    %v602 = vmul.f32 %v601, %v593
    %v603 = vadd.f32 %v600, %v602
    %v604 = vstv %s138
    %v605 = vmul.f32 %v604, %v592
    %v606 = vstv %s139
    %v607 = vmul.f32 %v606, %v593
    %v608 = vadd.f32 %v605, %v607
    %v609 = vstv %s140
    %v610 = vmul.f32 %v609, %v592
    %v611 = vstv %s141
    %v612 = vmul.f32 %v611, %v593
    %v613 = vadd.f32 %v610, %v612
    %v614 = vadd.f32 %v502, %v598
    %v615 = vadd.f32 %v504, %v603
    %v616 = vadd.f32 %v506, %v608
    %v617 = vadd.f32 %v508, %v613
    %618 = vst.msk [vmem:[%s9 + $0x7] sm:$0x1] %vm209, %v614
    %s619 = scalar_lea.vmem %s9, 8
    %620 = vst.msk [vmem:[%s619 + $0x7] sm:$0x1] %vm209, %v615
    %s621 = scalar_lea.vmem %s9, 16
    %622 = vst.msk [vmem:[%s621 + $0x7] sm:$0x1] %vm209, %v616
    %s623 = scalar_lea.vmem %s9, 24
    %624 = vst.msk [vmem:[%s623 + $0x7] sm:$0x1] %vm209, %v617
    %v625 = vstv %s158
    %v626 = vmul.f32 %v625, %v614
    %v627 = vstv %s159
    %v628 = vmul.f32 %v627, %v615
    %v629 = vadd.f32 %v626, %v628
    %v630 = vstv %s160
    %v631 = vmul.f32 %v630, %v616
    %v632 = vadd.f32 %v629, %v631
    %v633 = vstv %s161
    %v634 = vmul.f32 %v633, %v617
    %v635 = vadd.f32 %v632, %v634
    %v636 = vstv %s162
    %v637 = vmul.f32 %v636, %v614
    %v638 = vstv %s163
    %v639 = vmul.f32 %v638, %v615
    %v640 = vadd.f32 %v637, %v639
    %v641 = vstv %s164
    %v642 = vmul.f32 %v641, %v616
    %v643 = vadd.f32 %v640, %v642
    %v644 = vstv %s165
    %v645 = vmul.f32 %v644, %v617
    %v646 = vadd.f32 %v643, %v645
    %v647 = vstv %s166
    %v648 = vmul.f32 %v647, %v614
    %v649 = vstv %s167
    %v650 = vmul.f32 %v649, %v615
    %v651 = vadd.f32 %v648, %v650
    %v652 = vstv %s168
    %v653 = vmul.f32 %v652, %v616
    %v654 = vadd.f32 %v651, %v653
    %v655 = vstv %s169
    %v656 = vmul.f32 %v655, %v617
    %v657 = vadd.f32 %v654, %v656
    %v658 = vstv %s170
    %v659 = vmul.f32 %v658, %v614
    %v660 = vstv %s171
    %v661 = vmul.f32 %v660, %v615
    %v662 = vadd.f32 %v659, %v661
    %v663 = vstv %s172
    %v664 = vmul.f32 %v663, %v616
    %v665 = vadd.f32 %v662, %v664
    %v666 = vstv %s173
    %v667 = vmul.f32 %v666, %v617
    %v668 = vadd.f32 %v665, %v667
    %v669 = vld [vmem:[#allocation3 + $0x7] sm:$0x1]
    %v670 = vadd.f32 %v635, %v669
    %v671 = vld [vmem:[%s562 + $0x7] sm:$0x1]
    %v672 = vadd.f32 %v646, %v671
    %v673 = vld [vmem:[%s564 + $0x7] sm:$0x1]
    %v674 = vadd.f32 %v657, %v673
    %v675 = vld [vmem:[%s566 + $0x7] sm:$0x1]
    %v676 = vadd.f32 %v668, %v675
    %677 = vst.msk [vmem:[%s9 + $0x6] sm:$0x1] %vm209, %v670
    %678 = vst.msk [vmem:[%s619 + $0x6] sm:$0x1] %vm209, %v672
    %679 = vst.msk [vmem:[%s621 + $0x6] sm:$0x1] %vm209, %v674
    %680 = vst.msk [vmem:[%s623 + $0x6] sm:$0x1] %vm209, %v676
    %v681 = vmul.f32 %v625, %v670
    %v682 = vmul.f32 %v627, %v672
    %v683 = vadd.f32 %v681, %v682
    %v684 = vmul.f32 %v630, %v674
    %v685 = vadd.f32 %v683, %v684
    %v686 = vmul.f32 %v633, %v676
    %v687 = vadd.f32 %v685, %v686
    %v688 = vmul.f32 %v636, %v670
    %v689 = vmul.f32 %v638, %v672
    %v690 = vadd.f32 %v688, %v689
    %v691 = vmul.f32 %v641, %v674
    %v692 = vadd.f32 %v690, %v691
    %v693 = vmul.f32 %v644, %v676
    %v694 = vadd.f32 %v692, %v693
    %v695 = vmul.f32 %v647, %v670
    %v696 = vmul.f32 %v649, %v672
    %v697 = vadd.f32 %v695, %v696
    %v698 = vmul.f32 %v652, %v674
    %v699 = vadd.f32 %v697, %v698
    %v700 = vmul.f32 %v655, %v676
    %v701 = vadd.f32 %v699, %v700
    %v702 = vmul.f32 %v658, %v670
    %v703 = vmul.f32 %v660, %v672
    %v704 = vadd.f32 %v702, %v703
    %v705 = vmul.f32 %v663, %v674
    %v706 = vadd.f32 %v704, %v705
    %v707 = vmul.f32 %v666, %v676
    %v708 = vadd.f32 %v706, %v707
    %v709 = vld [vmem:[#allocation3 + $0x6] sm:$0x1]
    %v710 = vadd.f32 %v687, %v709
    %v711 = vld [vmem:[%s562 + $0x6] sm:$0x1]
    %v712 = vadd.f32 %v694, %v711
    %v713 = vld [vmem:[%s564 + $0x6] sm:$0x1]
    %v714 = vadd.f32 %v701, %v713
    %v715 = vld [vmem:[%s566 + $0x6] sm:$0x1]
    %v716 = vadd.f32 %v708, %v715
    %717 = vst.msk [vmem:[%s9 + $0x5] sm:$0x1] %vm209, %v710
    %718 = vst.msk [vmem:[%s619 + $0x5] sm:$0x1] %vm209, %v712
    %719 = vst.msk [vmem:[%s621 + $0x5] sm:$0x1] %vm209, %v714
    %720 = vst.msk [vmem:[%s623 + $0x5] sm:$0x1] %vm209, %v716
    %v721 = vmul.f32 %v625, %v710
    %v722 = vmul.f32 %v627, %v712
    %v723 = vadd.f32 %v721, %v722
    %v724 = vmul.f32 %v630, %v714
    %v725 = vadd.f32 %v723, %v724
    %v726 = vmul.f32 %v633, %v716
    %v727 = vadd.f32 %v725, %v726
    %v728 = vmul.f32 %v636, %v710
    %v729 = vmul.f32 %v638, %v712
    %v730 = vadd.f32 %v728, %v729
    %v731 = vmul.f32 %v641, %v714
    %v732 = vadd.f32 %v730, %v731
    %v733 = vmul.f32 %v644, %v716
    %v734 = vadd.f32 %v732, %v733
    %v735 = vmul.f32 %v647, %v710
    %v736 = vmul.f32 %v649, %v712
    %v737 = vadd.f32 %v735, %v736
    %v738 = vmul.f32 %v652, %v714
    %v739 = vadd.f32 %v737, %v738
    %v740 = vmul.f32 %v655, %v716
    %v741 = vadd.f32 %v739, %v740
    %v742 = vmul.f32 %v658, %v710
    %v743 = vmul.f32 %v660, %v712
    %v744 = vadd.f32 %v742, %v743
    %v745 = vmul.f32 %v663, %v714
    %v746 = vadd.f32 %v744, %v745
    %v747 = vmul.f32 %v666, %v716
    %v748 = vadd.f32 %v746, %v747
    %v749 = vld [vmem:[#allocation3 + $0x5] sm:$0x1]
    %v750 = vadd.f32 %v727, %v749
    %v751 = vld [vmem:[%s562 + $0x5] sm:$0x1]
    %v752 = vadd.f32 %v734, %v751
    %v753 = vld [vmem:[%s564 + $0x5] sm:$0x1]
    %v754 = vadd.f32 %v741, %v753
    %v755 = vld [vmem:[%s566 + $0x5] sm:$0x1]
    %v756 = vadd.f32 %v748, %v755
    %757 = vst.msk [vmem:[%s9 + $0x4] sm:$0x1] %vm209, %v750
    %758 = vst.msk [vmem:[%s619 + $0x4] sm:$0x1] %vm209, %v752
    %759 = vst.msk [vmem:[%s621 + $0x4] sm:$0x1] %vm209, %v754
    %760 = vst.msk [vmem:[%s623 + $0x4] sm:$0x1] %vm209, %v756
    %v761 = vmul.f32 %v625, %v750
    %v762 = vmul.f32 %v627, %v752
    %v763 = vadd.f32 %v761, %v762
    %v764 = vmul.f32 %v630, %v754
    %v765 = vadd.f32 %v763, %v764
    %v766 = vmul.f32 %v633, %v756
    %v767 = vadd.f32 %v765, %v766
    %v768 = vmul.f32 %v636, %v750
    %v769 = vmul.f32 %v638, %v752
    %v770 = vadd.f32 %v768, %v769
    %v771 = vmul.f32 %v641, %v754
    %v772 = vadd.f32 %v770, %v771
    %v773 = vmul.f32 %v644, %v756
    %v774 = vadd.f32 %v772, %v773
    %v775 = vmul.f32 %v647, %v750
    %v776 = vmul.f32 %v649, %v752
    %v777 = vadd.f32 %v775, %v776
    %v778 = vmul.f32 %v652, %v754
    %v779 = vadd.f32 %v777, %v778
    %v780 = vmul.f32 %v655, %v756
    %v781 = vadd.f32 %v779, %v780
    %v782 = vmul.f32 %v658, %v750
    %v783 = vmul.f32 %v660, %v752
    %v784 = vadd.f32 %v782, %v783
    %v785 = vmul.f32 %v663, %v754
    %v786 = vadd.f32 %v784, %v785
    %v787 = vmul.f32 %v666, %v756
    %v788 = vadd.f32 %v786, %v787
    %v789 = vld [vmem:[#allocation3 + $0x4] sm:$0x1]
    %v790 = vadd.f32 %v767, %v789
    %v791 = vld [vmem:[%s562 + $0x4] sm:$0x1]
    %v792 = vadd.f32 %v774, %v791
    %v793 = vld [vmem:[%s564 + $0x4] sm:$0x1]
    %v794 = vadd.f32 %v781, %v793
    %v795 = vld [vmem:[%s566 + $0x4] sm:$0x1]
    %v796 = vadd.f32 %v788, %v795
    %797 = vst.msk [vmem:[%s9 + $0x3] sm:$0x1] %vm209, %v790
    %798 = vst.msk [vmem:[%s619 + $0x3] sm:$0x1] %vm209, %v792
    %799 = vst.msk [vmem:[%s621 + $0x3] sm:$0x1] %vm209, %v794
    %800 = vst.msk [vmem:[%s623 + $0x3] sm:$0x1] %vm209, %v796
    %v801 = vmul.f32 %v625, %v790
    %v802 = vmul.f32 %v627, %v792
    %v803 = vadd.f32 %v801, %v802
    %v804 = vmul.f32 %v630, %v794
    %v805 = vadd.f32 %v803, %v804
    %v806 = vmul.f32 %v633, %v796
    %v807 = vadd.f32 %v805, %v806
    %v808 = vmul.f32 %v636, %v790
    %v809 = vmul.f32 %v638, %v792
    %v810 = vadd.f32 %v808, %v809
    %v811 = vmul.f32 %v641, %v794
    %v812 = vadd.f32 %v810, %v811
    %v813 = vmul.f32 %v644, %v796
    %v814 = vadd.f32 %v812, %v813
    %v815 = vmul.f32 %v647, %v790
    %v816 = vmul.f32 %v649, %v792
    %v817 = vadd.f32 %v815, %v816
    %v818 = vmul.f32 %v652, %v794
    %v819 = vadd.f32 %v817, %v818
    %v820 = vmul.f32 %v655, %v796
    %v821 = vadd.f32 %v819, %v820
    %v822 = vmul.f32 %v658, %v790
    %v823 = vmul.f32 %v660, %v792
    %v824 = vadd.f32 %v822, %v823
    %v825 = vmul.f32 %v663, %v794
    %v826 = vadd.f32 %v824, %v825
    %v827 = vmul.f32 %v666, %v796
    %v828 = vadd.f32 %v826, %v827
    %v829 = vld [vmem:[#allocation3 + $0x3] sm:$0x1]
    %v830 = vadd.f32 %v807, %v829
    %v831 = vld [vmem:[%s562 + $0x3] sm:$0x1]
    %v832 = vadd.f32 %v814, %v831
    %v833 = vld [vmem:[%s564 + $0x3] sm:$0x1]
    %v834 = vadd.f32 %v821, %v833
    %v835 = vld [vmem:[%s566 + $0x3] sm:$0x1]
    %v836 = vadd.f32 %v828, %v835
    %837 = vst.msk [vmem:[%s9 + $0x2] sm:$0x1] %vm209, %v830
    %838 = vst.msk [vmem:[%s619 + $0x2] sm:$0x1] %vm209, %v832
    %839 = vst.msk [vmem:[%s621 + $0x2] sm:$0x1] %vm209, %v834
    %840 = vst.msk [vmem:[%s623 + $0x2] sm:$0x1] %vm209, %v836
    %v841 = vmul.f32 %v625, %v830
    %v842 = vmul.f32 %v627, %v832
    %v843 = vadd.f32 %v841, %v842
    %v844 = vmul.f32 %v630, %v834
    %v845 = vadd.f32 %v843, %v844
    %v846 = vmul.f32 %v633, %v836
    %v847 = vadd.f32 %v845, %v846
    %v848 = vmul.f32 %v636, %v830
    %v849 = vmul.f32 %v638, %v832
    %v850 = vadd.f32 %v848, %v849
    %v851 = vmul.f32 %v641, %v834
    %v852 = vadd.f32 %v850, %v851
    %v853 = vmul.f32 %v644, %v836
    %v854 = vadd.f32 %v852, %v853
    %v855 = vmul.f32 %v647, %v830
    %v856 = vmul.f32 %v649, %v832
    %v857 = vadd.f32 %v855, %v856
    %v858 = vmul.f32 %v652, %v834
    %v859 = vadd.f32 %v857, %v858
    %v860 = vmul.f32 %v655, %v836
    %v861 = vadd.f32 %v859, %v860
    %v862 = vmul.f32 %v658, %v830
    %v863 = vmul.f32 %v660, %v832
    %v864 = vadd.f32 %v862, %v863
    %v865 = vmul.f32 %v663, %v834
    %v866 = vadd.f32 %v864, %v865
    %v867 = vmul.f32 %v666, %v836
    %v868 = vadd.f32 %v866, %v867
    %v869 = vld [vmem:[#allocation3 + $0x2] sm:$0x1]
    %v870 = vadd.f32 %v847, %v869
    %v871 = vld [vmem:[%s562 + $0x2] sm:$0x1]
    %v872 = vadd.f32 %v854, %v871
    %v873 = vld [vmem:[%s564 + $0x2] sm:$0x1]
    %v874 = vadd.f32 %v861, %v873
    %v875 = vld [vmem:[%s566 + $0x2] sm:$0x1]
    %v876 = vadd.f32 %v868, %v875
    %877 = vst.msk [vmem:[%s9 + $0x1] sm:$0x1] %vm209, %v870
    %878 = vst.msk [vmem:[%s619 + $0x1] sm:$0x1] %vm209, %v872
    %879 = vst.msk [vmem:[%s621 + $0x1] sm:$0x1] %vm209, %v874
    %880 = vst.msk [vmem:[%s623 + $0x1] sm:$0x1] %vm209, %v876
    %v881 = vmul.f32 %v625, %v870
    %v882 = vmul.f32 %v627, %v872
    %v883 = vadd.f32 %v881, %v882
    %v884 = vmul.f32 %v630, %v874
    %v885 = vadd.f32 %v883, %v884
    %v886 = vmul.f32 %v633, %v876
    %v887 = vadd.f32 %v885, %v886
    %v888 = vmul.f32 %v636, %v870
    %v889 = vmul.f32 %v638, %v872
    %v890 = vadd.f32 %v888, %v889
    %v891 = vmul.f32 %v641, %v874
    %v892 = vadd.f32 %v890, %v891
    %v893 = vmul.f32 %v644, %v876
    %v894 = vadd.f32 %v892, %v893
    %v895 = vmul.f32 %v647, %v870
    %v896 = vmul.f32 %v649, %v872
    %v897 = vadd.f32 %v895, %v896
    %v898 = vmul.f32 %v652, %v874
    %v899 = vadd.f32 %v897, %v898
    %v900 = vmul.f32 %v655, %v876
    %v901 = vadd.f32 %v899, %v900
    %v902 = vmul.f32 %v658, %v870
    %v903 = vmul.f32 %v660, %v872
    %v904 = vadd.f32 %v902, %v903
    %v905 = vmul.f32 %v663, %v874
    %v906 = vadd.f32 %v904, %v905
    %v907 = vmul.f32 %v666, %v876
    %v908 = vadd.f32 %v906, %v907
    %v909 = vld [vmem:[#allocation3 + $0x1] sm:$0x1]
    %v910 = vadd.f32 %v887, %v909
    %v911 = vld [vmem:[%s562 + $0x1] sm:$0x1]
    %v912 = vadd.f32 %v894, %v911
    %v913 = vld [vmem:[%s564 + $0x1] sm:$0x1]
    %v914 = vadd.f32 %v901, %v913
    %v915 = vld [vmem:[%s566 + $0x1] sm:$0x1]
    %v916 = vadd.f32 %v908, %v915
    %917 = vst.msk [vmem:[%s9] sm:$0x1] %vm209, %v910
    %918 = vst.msk [vmem:[%s619] sm:$0x1] %vm209, %v912
    %919 = vst.msk [vmem:[%s621] sm:$0x1] %vm209, %v914
    %920 = vst.msk [vmem:[%s623] sm:$0x1] %vm209, %v916
    // Predicated region
    $region58: #{tpu_custom_call.1} parent=1 // pred_check
      _
    $region59: #{tpu_custom_call.1} parent=1 // pred_check_branch
      %922 = sbr.rel (0) target = $region61
    $region60: #{tpu_custom_call.1} parent=1 // pred_region
      _
    $region61: #{tpu_custom_call.1} parent=1 // pred_fallthru
      _
    // Predicated region
    $region62: #{tpu_custom_call.1} parent=1 // pred_check
      _
    $region63: #{tpu_custom_call.1} parent=1 // pred_check_branch
      %924 = sbr.rel (0) target = $region65
    $region64: #{tpu_custom_call.1} parent=1 // pred_region
      _
    $region65: #{tpu_custom_call.1} parent=1 // pred_fallthru
      _
    // Predicated region
    $region66: #{tpu_custom_call.1} parent=1 // pred_check
      _
    $region67: #{tpu_custom_call.1} parent=1 // pred_check_branch
      %926 = sbr.rel (0) target = $region69
    $region68: #{tpu_custom_call.1} parent=1 // pred_region
      _
    $region69: #{tpu_custom_call.1} parent=1 // pred_fallthru
      _
    // Predicated region
    $region70: #{tpu_custom_call.1} parent=1 // pred_check
      _
    $region71: #{tpu_custom_call.1} parent=1 // pred_check_branch
      %928 = sbr.rel (0) target = $region73
    $region72: #{tpu_custom_call.1} parent=1 // pred_region
      _
    $region73: #{tpu_custom_call.1} parent=1 // pred_fallthru
      _
    %929 = vsyncpa [#allocation5], 1
    %930 = vsyncpa [#allocation7], 1
    %931 = vsyncpa [#allocation10], 1
    %932 = vsyncpa [#allocation13], 1

</llo_original>
